<compile_context>
chip_gen: v5e
topology: v5e:2x2
jax: 0.10.0
libtpu: 0.0.40
codegen_flags: <defaults>
</compile_context>

<pallas_src>
import jax
import jax.numpy as jnp
from jax.experimental import pallas as pl
from jax.experimental.pallas import tpu as pltpu

_NSTATS = 5       # dot_ab, dot_aa, dot_bb, pow_out, pow_wf
_NSTATS_PAD = 8   # pad the stats axis so the output block is (TB, 8)


def _make_sxs_kernel(TT, T, need_mask):
    """Kernel for one (TB, TT) tile of the (split, batch-tile, time-tile) grid."""

    def kernel(amp_ref, phs_ref, wf_ref, stats_ref,
               acc_ab, acc_aa, acc_bb, acc_po, acc_pw):
        k = pl.program_id(2)
        nk = pl.num_programs(2)

        # Scratch accumulators are resident across the reduction axis: zero
        # them on the first time tile of each (split, batch-tile).
        @pl.when(k == 0)
        def _init():
            for acc in (acc_ab, acc_aa, acc_bb, acc_po, acc_pw):
                acc[...] = jnp.zeros_like(acc)

        # Load in native dtype, upcast in-register (keeps HBM traffic minimal).
        amp = amp_ref[...].astype(jnp.float32)
        phs = phs_ref[...].astype(jnp.float32)
        wfv = wf_ref[...].astype(jnp.float32)

        if need_mask:
            # Non-dividing time tile: zero the tail columns past T before the
            # reductions (one compare+select per element, negligible vs cos).
            s = pl.program_id(0)
            col0 = (s * nk + k) * TT
            lane = jax.lax.broadcasted_iota(jnp.int32, amp.shape, 1)
            valid = (lane + col0) < T
            amp = jnp.where(valid, amp, 0.0)
            phs = jnp.where(valid, phs, 0.0)
            wfv = jnp.where(valid, wfv, 0.0)

        # to_wave: amplitude/phase -> real strain.  Computed once, reused.
        wave = amp * jnp.cos(phs)

        # Per-row partial reductions over this time tile.
        acc_ab[...] += jnp.sum(wave * wfv, axis=-1, keepdims=True)
        acc_aa[...] += jnp.sum(wave * wave, axis=-1, keepdims=True)
        acc_bb[...] += jnp.sum(wfv * wfv, axis=-1, keepdims=True)
        acc_po[...] += jnp.sum(jnp.abs(wave), axis=-1, keepdims=True)
        acc_pw[...] += jnp.sum(jnp.abs(wfv), axis=-1, keepdims=True)

        # Pack + store the (TB, 8) stats slab once per (split, batch-tile).
        @pl.when(k == nk - 1)
        def _finish():
            tb = acc_ab.shape[0]
            pad = jnp.zeros((tb, _NSTATS_PAD - _NSTATS), jnp.float32)
            stats_ref[...] = jnp.concatenate(
                [acc_ab[...], acc_aa[...], acc_bb[...],
                 acc_po[...], acc_pw[...], pad], axis=-1)

    return kernel


def _pick_time_tile(T, max_tile):
    """Pick the time tile TT (multiple of 128) and whether the packed
    (B, 2T) zero-copy layout is usable (requires TT to divide T exactly)."""
    max_tile = max(128, (max_tile // 128) * 128)
    t128 = -(-T // 128) * 128                      # T rounded up to lanes
    if t128 <= max_tile:
        return t128, (t128 == T)                   # one time tile
    if T % 128 == 0:
        # Largest divisor of T that is a multiple of 128 and <= max_tile.
        for cand in range(max_tile, 127, -128):
            if T % cand == 0:
                if cand >= 1024:                   # big enough to stay off the
                    return cand, True              # per-step-overhead cliff
                break
    # Awkward T: keep the tile large, take cdiv(T, TT) steps, mask the tail.
    return max_tile, False


def _pick_batch_tile(B, max_batch_tile):
    """Batch tile: multiple of 8 (or == B), and >= 2 batch tiles when B > 8 so
    the 'parallel' axis can be sharded across v7x's two TensorCores."""
    max_batch_tile = max(8, (max_batch_tile // 8) * 8)
    if B > max_batch_tile:
        return max_batch_tile
    if B > 8:
        half = -(-B // 2)
        return min(max(8, -(-half // 8) * 8), max_batch_tile)
    return B


def sxs_loss(pred, wf, modes=None, *, max_time_tile=4096, max_batch_tile=128):
    """JAX/Pallas equivalent of SXSLoss.forward(pred, wf).

    pred : (B, 2, T)  -- amplitude and phase channels (f32 or bf16)
    wf   : (B, T)     -- target waveform
    Returns a scalar float32 loss.  (`modes` is unused, as in the reference.)
    """
    B, C, T = pred.shape
    assert C == 2, "pred must have an (amplitude, phase) channel axis of size 2"
    assert wf.shape == (B, T)

    TT, use_packed = _pick_time_tile(T, max_time_tile)
    TB = _pick_batch_tile(B, max_batch_tile)
    nb = pl.cdiv(B, TB)
    nt = pl.cdiv(T, TT)
    need_mask = (T % TT) != 0

    # v7x shards only 'parallel' axes across its 2 TensorCores; if the batch
    # axis has a single tile, split the time range 2-way as an extra parallel
    # axis (partials summed in the epilogue).
    ns = 2 if (nb == 1 and nt >= 2 and nt % 2 == 0) else 1
    ntps = nt // ns

    if use_packed:
        # Free contiguous reshape: amp lives in columns [0, T), phase in
        # [T, 2T).  The same buffer is passed twice; each operand's index_map
        # only touches its own half -> no materialized channel slices and no
        # duplicated HBM traffic.
        packed = pred.reshape(B, 2 * T)
        amp_arr, phs_arr = packed, packed
        phs_off = T // TT
    else:
        # TODO(synk): awkward T (no good 128-multiple divisor): fall back to
        # materialized channel slices (one extra HBM copy of pred).
        amp_arr = pred[:, 0, :]
        phs_arr = pred[:, 1, :]
        phs_off = 0

    # Explicit VMEM budget: double-buffered inputs + scratch + output buffers,
    # with headroom, capped at the 64 MiB v7x physical ceiling.
    pred_isz = jnp.dtype(pred.dtype).itemsize
    wf_isz = jnp.dtype(wf.dtype).itemsize
    footprint = 2 * TB * TT * (2 * pred_isz + wf_isz)
    footprint += 5 * TB * 128 * 4 + 2 * TB * _NSTATS_PAD * 4
    vmem_limit = int(min(max(32 << 20, 3 * footprint // 2), 64 << 20))

    amp_spec = pl.BlockSpec((TB, TT), lambda s, i, k: (i, k + s * ntps))
    phs_spec = pl.BlockSpec((TB, TT), lambda s, i, k: (i, k + s * ntps + phs_off))
    wf_spec = pl.BlockSpec((TB, TT), lambda s, i, k: (i, k + s * ntps))
    out_spec = pl.BlockSpec((None, TB, _NSTATS_PAD), lambda s, i, k: (s, i, 0))

    stats = pl.pallas_call(
        _make_sxs_kernel(TT, T, need_mask),
        out_shape=jax.ShapeDtypeStruct((ns, B, _NSTATS_PAD), jnp.float32),
        grid=(ns, nb, ntps),
        in_specs=[amp_spec, phs_spec, wf_spec],
        out_specs=out_spec,
        scratch_shapes=[pltpu.VMEM((TB, 1), jnp.float32)] * _NSTATS,
        compiler_params=pltpu.CompilerParams(
            dimension_semantics=("parallel", "parallel", "arbitrary"),
            vmem_limit_bytes=vmem_limit),
    )(amp_arr, phs_arr, wf)

    stats = stats.sum(axis=0)          # combine the time-split partials
    dot_ab = stats[:, 0]
    dot_aa = stats[:, 1]
    dot_bb = stats[:, 2]
    pow_out = stats[:, 3]
    pow_wf = stats[:, 4]

    # mymismatch + torch.nan_to_num
    overlap = dot_ab / jnp.sqrt(dot_aa * dot_bb)
    mm_loss = jnp.nan_to_num(1.0 - overlap)

    # nn.L1Loss()(abs(wf).sum(-1), abs(out).sum(-1))  (already mean-reduced)
    wave_power = 1.0
    power_diff = jnp.mean(jnp.abs(pow_wf - pow_out))

    return jnp.log10(jnp.mean(mm_loss * wave_power)) + power_diff


def _sxs_loss_ref(pred, wf):
    """Pure-JAX reference (same assumed to_wave / mymismatch semantics)."""
    amp = pred[:, 0, :].astype(jnp.float32)
    phs = pred[:, 1, :].astype(jnp.float32)
    wfv = wf.astype(jnp.float32)
    wave = amp * jnp.cos(phs)
    dot_ab = jnp.sum(wave * wfv, axis=-1)
    dot_aa = jnp.sum(wave * wave, axis=-1)
    dot_bb = jnp.sum(wfv * wfv, axis=-1)
    mm = jnp.nan_to_num(1.0 - dot_ab / jnp.sqrt(dot_aa * dot_bb))
    power_diff = jnp.mean(jnp.abs(jnp.abs(wfv).sum(-1) - jnp.abs(wave).sum(-1)))
    return jnp.log10(jnp.mean(mm)) + power_diff


def _make_inputs(key, B, T):
    k1, k2, k3 = jax.random.split(key, 3)
    amp = 1.0 + 0.1 * jax.random.normal(k1, (B, T), dtype=jnp.float32)
    phs = jax.random.uniform(k2, (B, T), dtype=jnp.float32,
                             minval=0.0, maxval=6.28)
    pred = jnp.stack([amp, phs], axis=1)                      # (B, 2, T)
    wf = amp * jnp.cos(phs) + 0.05 * jax.random.normal(k3, (B, T),
                                                       dtype=jnp.float32)
    return pred, wf


if __name__ == "__main__":
    key = jax.random.PRNGKey(0)
    loss_fn = jax.jit(sxs_loss)

    # Three small cases covering the main code paths:
    #   (8, 8192)  : packed layout, 2 time tiles, time-split parallel axis
    #   (4, 4736)  : awkward T (128-multiple, no good divisor) -> masked tail
    #   (24, 2560) : single time tile, 2 batch tiles (partial last batch tile)
    cases = [(8, 8192), (4, 4736), (24, 2560)]
    for B, T in cases:
        key, sub = jax.random.split(key)
        pred, wf = _make_inputs(sub, B, T)
        loss = loss_fn(pred, wf)
        jax.block_until_ready(loss)
        ref = _sxs_loss_ref(pred, wf)
        assert loss.shape == () and bool(jnp.isfinite(loss)), (B, T, loss)
        assert jnp.allclose(loss, ref, rtol=5e-3, atol=5e-3), (B, T, loss, ref)

    print("KERNEL_OK")
</pallas_src>

<mosaic_0001>
module attributes {stable_mosaic.version = 11 : i64} {
  func.func @kernel(%arg0: i32, %arg1: i32, %arg2: i32, %arg3: memref<8x4096xf32, #tpu.memory_space<vmem>>, %arg4: memref<8x4096xf32, #tpu.memory_space<vmem>>, %arg5: memref<8x4096xf32, #tpu.memory_space<vmem>>, %arg6: memref<1x8x8xf32, #tpu.memory_space<vmem>>, %arg7: memref<8x1xf32, #tpu.memory_space<vmem>>, %arg8: memref<8x1xf32, #tpu.memory_space<vmem>>, %arg9: memref<8x1xf32, #tpu.memory_space<vmem>>, %arg10: memref<8x1xf32, #tpu.memory_space<vmem>>, %arg11: memref<8x1xf32, #tpu.memory_space<vmem>>) attributes {dimension_semantics = [#tpu.dimension_semantics<parallel>, #tpu.dimension_semantics<parallel>, #tpu.dimension_semantics<arbitrary>], iteration_bounds = array<i64: 2, 1, 1>, scalar_prefetch = 0 : i64, scratch_operands = 5 : i64, tpu.core_type = #tpu.core_type<tc>, window_params = [{transform_indices = @transform_0, window_bounds = array<i64: 8, 4096>}, {transform_indices = @transform_1, window_bounds = array<i64: 8, 4096>}, {transform_indices = @transform_2, window_bounds = array<i64: 8, 4096>}, {transform_indices = @transform_3, window_bounds = array<i64: 1, 8, 8>}]} {
    %c0_i32 = arith.constant 0 : i32
    %0 = arith.cmpi eq, %arg2, %c0_i32 : i32
    %1 = arith.extui %0 : i1 to i32
    %c0_i32_0 = arith.constant 0 : i32
    %2 = arith.cmpi ne, %1, %c0_i32_0 : i32
    scf.if %2 {
      %cst_32 = arith.constant 0.000000e+00 : f32
      %41 = vector.broadcast %cst_32 : f32 to vector<8x1xf32>
      %c0_33 = arith.constant 0 : index
      %c0_34 = arith.constant 0 : index
      %42 = vector.load %arg7[%c0_33, %c0_34] : memref<8x1xf32, #tpu.memory_space<vmem>>, vector<8x1xf32>
      tpu.vector_store %arg7[%c0_33, %c0_34], %41 {strides = array<i32>} : memref<8x1xf32, #tpu.memory_space<vmem>>, vector<8x1xf32>,
      %cst_35 = arith.constant 0.000000e+00 : f32
      %43 = vector.broadcast %cst_35 : f32 to vector<8x1xf32>
      %c0_36 = arith.constant 0 : index
      %c0_37 = arith.constant 0 : index
      %44 = vector.load %arg8[%c0_36, %c0_37] : memref<8x1xf32, #tpu.memory_space<vmem>>, vector<8x1xf32>
      tpu.vector_store %arg8[%c0_36, %c0_37], %43 {strides = array<i32>} : memref<8x1xf32, #tpu.memory_space<vmem>>, vector<8x1xf32>,
      %cst_38 = arith.constant 0.000000e+00 : f32
      %45 = vector.broadcast %cst_38 : f32 to vector<8x1xf32>
      %c0_39 = arith.constant 0 : index
      %c0_40 = arith.constant 0 : index
      %46 = vector.load %arg9[%c0_39, %c0_40] : memref<8x1xf32, #tpu.memory_space<vmem>>, vector<8x1xf32>
      tpu.vector_store %arg9[%c0_39, %c0_40], %45 {strides = array<i32>} : memref<8x1xf32, #tpu.memory_space<vmem>>, vector<8x1xf32>,
      %cst_41 = arith.constant 0.000000e+00 : f32
      %47 = vector.broadcast %cst_41 : f32 to vector<8x1xf32>
      %c0_42 = arith.constant 0 : index
      %c0_43 = arith.constant 0 : index
      %48 = vector.load %arg10[%c0_42, %c0_43] : memref<8x1xf32, #tpu.memory_space<vmem>>, vector<8x1xf32>
      tpu.vector_store %arg10[%c0_42, %c0_43], %47 {strides = array<i32>} : memref<8x1xf32, #tpu.memory_space<vmem>>, vector<8x1xf32>,
      %cst_44 = arith.constant 0.000000e+00 : f32
      %49 = vector.broadcast %cst_44 : f32 to vector<8x1xf32>
      %c0_45 = arith.constant 0 : index
      %c0_46 = arith.constant 0 : index
      %50 = vector.load %arg11[%c0_45, %c0_46] : memref<8x1xf32, #tpu.memory_space<vmem>>, vector<8x1xf32>
      tpu.vector_store %arg11[%c0_45, %c0_46], %49 {strides = array<i32>} : memref<8x1xf32, #tpu.memory_space<vmem>>, vector<8x1xf32>,
    } else {
    }
    %c0 = arith.constant 0 : index
    %c0_1 = arith.constant 0 : index
    %3 = vector.load %arg3[%c0, %c0_1] : memref<8x4096xf32, #tpu.memory_space<vmem>>, vector<8x4096xf32>
    %c0_2 = arith.constant 0 : index
    %c0_3 = arith.constant 0 : index
    %4 = vector.load %arg4[%c0_2, %c0_3] : memref<8x4096xf32, #tpu.memory_space<vmem>>, vector<8x4096xf32>
    %c0_4 = arith.constant 0 : index
    %c0_5 = arith.constant 0 : index
    %5 = vector.load %arg5[%c0_4, %c0_5] : memref<8x4096xf32, #tpu.memory_space<vmem>>, vector<8x4096xf32>
    %6 = math.cos %4 : vector<8x4096xf32>
    %7 = arith.mulf %3, %6 : vector<8x4096xf32>
    %c0_6 = arith.constant 0 : index
    %c0_7 = arith.constant 0 : index
    %8 = vector.load %arg7[%c0_6, %c0_7] : memref<8x1xf32, #tpu.memory_space<vmem>>, vector<8x1xf32>
    %9 = arith.mulf %7, %5 : vector<8x4096xf32>
    %cst = arith.constant dense<0.000000e+00> : vector<8xf32>
    %10 = vector.multi_reduction <add>, %9, %cst [1] : vector<8x4096xf32> to vector<8xf32>
    %11 = vector.shape_cast %10 : vector<8xf32> to vector<8x1xf32>
    %12 = arith.addf %8, %11 : vector<8x1xf32>
    %c0_8 = arith.constant 0 : index
    %c0_9 = arith.constant 0 : index
    %13 = vector.load %arg7[%c0_8, %c0_9] : memref<8x1xf32, #tpu.memory_space<vmem>>, vector<8x1xf32>
    tpu.vector_store %arg7[%c0_8, %c0_9], %12 {strides = array<i32>} : memref<8x1xf32, #tpu.memory_space<vmem>>, vector<8x1xf32>,
    %c0_10 = arith.constant 0 : index
    %c0_11 = arith.constant 0 : index
    %14 = vector.load %arg8[%c0_10, %c0_11] : memref<8x1xf32, #tpu.memory_space<vmem>>, vector<8x1xf32>
    %15 = arith.mulf %7, %7 : vector<8x4096xf32>
    %cst_12 = arith.constant dense<0.000000e+00> : vector<8xf32>
    %16 = vector.multi_reduction <add>, %15, %cst_12 [1] : vector<8x4096xf32> to vector<8xf32>
    %17 = vector.shape_cast %16 : vector<8xf32> to vector<8x1xf32>
    %18 = arith.addf %14, %17 : vector<8x1xf32>
    %c0_13 = arith.constant 0 : index
    %c0_14 = arith.constant 0 : index
    %19 = vector.load %arg8[%c0_13, %c0_14] : memref<8x1xf32, #tpu.memory_space<vmem>>, vector<8x1xf32>
    tpu.vector_store %arg8[%c0_13, %c0_14], %18 {strides = array<i32>} : memref<8x1xf32, #tpu.memory_space<vmem>>, vector<8x1xf32>,
    %c0_15 = arith.constant 0 : index
    %c0_16 = arith.constant 0 : index
    %20 = vector.load %arg9[%c0_15, %c0_16] : memref<8x1xf32, #tpu.memory_space<vmem>>, vector<8x1xf32>
    %21 = arith.mulf %5, %5 : vector<8x4096xf32>
    %cst_17 = arith.constant dense<0.000000e+00> : vector<8xf32>
    %22 = vector.multi_reduction <add>, %21, %cst_17 [1] : vector<8x4096xf32> to vector<8xf32>
    %23 = vector.shape_cast %22 : vector<8xf32> to vector<8x1xf32>
    %24 = arith.addf %20, %23 : vector<8x1xf32>
    %c0_18 = arith.constant 0 : index
    %c0_19 = arith.constant 0 : index
    %25 = vector.load %arg9[%c0_18, %c0_19] : memref<8x1xf32, #tpu.memory_space<vmem>>, vector<8x1xf32>
    tpu.vector_store %arg9[%c0_18, %c0_19], %24 {strides = array<i32>} : memref<8x1xf32, #tpu.memory_space<vmem>>, vector<8x1xf32>,
    %c0_20 = arith.constant 0 : index
    %c0_21 = arith.constant 0 : index
    %26 = vector.load %arg10[%c0_20, %c0_21] : memref<8x1xf32, #tpu.memory_space<vmem>>, vector<8x1xf32>
    %27 = math.absf %7 : vector<8x4096xf32>
    %cst_22 = arith.constant dense<0.000000e+00> : vector<8xf32>
    %28 = vector.multi_reduction <add>, %27, %cst_22 [1] : vector<8x4096xf32> to vector<8xf32>
    %29 = vector.shape_cast %28 : vector<8xf32> to vector<8x1xf32>
    %30 = arith.addf %26, %29 : vector<8x1xf32>
    %c0_23 = arith.constant 0 : index
    %c0_24 = arith.constant 0 : index
    %31 = vector.load %arg10[%c0_23, %c0_24] : memref<8x1xf32, #tpu.memory_space<vmem>>, vector<8x1xf32>
    tpu.vector_store %arg10[%c0_23, %c0_24], %30 {strides = array<i32>} : memref<8x1xf32, #tpu.memory_space<vmem>>, vector<8x1xf32>,
    %c0_25 = arith.constant 0 : index
    %c0_26 = arith.constant 0 : index
    %32 = vector.load %arg11[%c0_25, %c0_26] : memref<8x1xf32, #tpu.memory_space<vmem>>, vector<8x1xf32>
    %33 = math.absf %5 : vector<8x4096xf32>
    %cst_27 = arith.constant dense<0.000000e+00> : vector<8xf32>
    %34 = vector.multi_reduction <add>, %33, %cst_27 [1] : vector<8x4096xf32> to vector<8xf32>
    %35 = vector.shape_cast %34 : vector<8xf32> to vector<8x1xf32>
    %36 = arith.addf %32, %35 : vector<8x1xf32>
    %c0_28 = arith.constant 0 : index
    %c0_29 = arith.constant 0 : index
    %37 = vector.load %arg11[%c0_28, %c0_29] : memref<8x1xf32, #tpu.memory_space<vmem>>, vector<8x1xf32>
    tpu.vector_store %arg11[%c0_28, %c0_29], %36 {strides = array<i32>} : memref<8x1xf32, #tpu.memory_space<vmem>>, vector<8x1xf32>,
    %c0_i32_30 = arith.constant 0 : i32
    %38 = arith.cmpi eq, %arg2, %c0_i32_30 : i32
    %39 = arith.extui %38 : i1 to i32
    %c0_i32_31 = arith.constant 0 : i32
    %40 = arith.cmpi ne, %39, %c0_i32_31 : i32
    scf.if %40 {
      %cst_32 = arith.constant 0.000000e+00 : f32
      %41 = vector.broadcast %cst_32 : f32 to vector<8x3xf32>
      %c0_33 = arith.constant 0 : index
      %c0_34 = arith.constant 0 : index
      %42 = vector.load %arg7[%c0_33, %c0_34] : memref<8x1xf32, #tpu.memory_space<vmem>>, vector<8x1xf32>
      %c0_35 = arith.constant 0 : index
      %c0_36 = arith.constant 0 : index
      %43 = vector.load %arg8[%c0_35, %c0_36] : memref<8x1xf32, #tpu.memory_space<vmem>>, vector<8x1xf32>
      %c0_37 = arith.constant 0 : index
      %c0_38 = arith.constant 0 : index
      %44 = vector.load %arg9[%c0_37, %c0_38] : memref<8x1xf32, #tpu.memory_space<vmem>>, vector<8x1xf32>
      %c0_39 = arith.constant 0 : index
      %c0_40 = arith.constant 0 : index
      %45 = vector.load %arg10[%c0_39, %c0_40] : memref<8x1xf32, #tpu.memory_space<vmem>>, vector<8x1xf32>
      %c0_41 = arith.constant 0 : index
      %c0_42 = arith.constant 0 : index
      %46 = vector.load %arg11[%c0_41, %c0_42] : memref<8x1xf32, #tpu.memory_space<vmem>>, vector<8x1xf32>
      %47 = tpu.concatenate %42, %43, %44, %45, %46, %41 in 1 : vector<8x1xf32>, vector<8x1xf32>, vector<8x1xf32>, vector<8x1xf32>, vector<8x1xf32>, vector<8x3xf32> -> vector<8x8xf32>
      %c0_43 = arith.constant 0 : index
      %c0_44 = arith.constant 0 : index
      %c0_45 = arith.constant 0 : index
      %48 = vector.load %arg6[%c0_43, %c0_44, %c0_45] : memref<1x8x8xf32, #tpu.memory_space<vmem>>, vector<1x8x8xf32>
      %49 = vector.shape_cast %48 : vector<1x8x8xf32> to vector<8x8xf32>
      %50 = vector.shape_cast %47 : vector<8x8xf32> to vector<1x8x8xf32>
      tpu.vector_store %arg6[%c0_43, %c0_44, %c0_45], %50 {strides = array<i32>} : memref<1x8x8xf32, #tpu.memory_space<vmem>>, vector<1x8x8xf32>,
    } else {
    }
    return
  }
  func.func @transform_0(%arg0: i32, %arg1: i32, %arg2: i32) -> (i32, i32) {
    %c1_i32 = arith.constant 1 : i32
    %0 = arith.muli %arg0, %c1_i32 : i32
    %1 = arith.addi %arg2, %0 : i32
    %c0_i32 = arith.constant 0 : i32
    return %arg1, %1 : i32, i32
  }
  func.func @transform_1(%arg0: i32, %arg1: i32, %arg2: i32) -> (i32, i32) {
    %c1_i32 = arith.constant 1 : i32
    %0 = arith.muli %arg0, %c1_i32 : i32
    %1 = arith.addi %arg2, %0 : i32
    %c2_i32 = arith.constant 2 : i32
    %2 = arith.addi %1, %c2_i32 : i32
    %c0_i32 = arith.constant 0 : i32
    return %arg1, %2 : i32, i32
  }
  func.func @transform_2(%arg0: i32, %arg1: i32, %arg2: i32) -> (i32, i32) {
    %c1_i32 = arith.constant 1 : i32
    %0 = arith.muli %arg0, %c1_i32 : i32
    %1 = arith.addi %arg2, %0 : i32
    %c0_i32 = arith.constant 0 : i32
    return %arg1, %1 : i32, i32
  }
  func.func @transform_3(%arg0: i32, %arg1: i32, %arg2: i32) -> (i32, i32, i32) {
    %c0_i32 = arith.constant 0 : i32
    %c0_i32_0 = arith.constant 0 : i32
    return %arg0, %arg1, %c0_i32 : i32, i32, i32
  }
}

</mosaic_0001>

<llo_original>
// kernel: sxs_loss.1
$region0: #{sxs_loss.1}
  #allocation0 [shape = 'u32[]', space=smem, size = 0x4, offset = 0x4, fixed_abs, tag = 'smem constant byte address 0x4 - core index']
  #allocation1 [shape = 'u32[72,128]{1,0:T(1,128)}', space=vmem, size = 0x9000, scoped, tag = 'internal scratch']
  #allocation2 [shape = 'f32[8,1]{1,0:T(8,128)}', space=vmem, size = 0x1000, scoped, tag = 'scratch operand']
  #allocation3 [shape = 'f32[8,1]{1,0:T(8,128)}', space=vmem, size = 0x1000, scoped, tag = 'scratch operand']
  #allocation4 [shape = 'f32[8,1]{1,0:T(8,128)}', space=vmem, size = 0x1000, scoped, tag = 'scratch operand']
  #allocation5 [shape = 'f32[8,1]{1,0:T(8,128)}', space=vmem, size = 0x1000, scoped, tag = 'scratch operand']
  #allocation6 [shape = 'f32[8,1]{1,0:T(8,128)}', space=vmem, size = 0x1000, scoped, tag = 'scratch operand']
  %s0 = inlined_call_operand.vmem [shape: f32[8,16384], index: 0, kind: input, shape index: {}, may-alias: {0,1}]
  %s1 = inlined_call_operand.vmem [shape: f32[8,16384], index: 1, kind: input, shape index: {}, may-alias: {0,1}]
  %s2 = inlined_call_operand.vmem [shape: f32[8,8192], index: 2, kind: input, shape index: {}]
  %s3 = inlined_call_operand.vmem [shape: f32[2,8,8], index: 3, kind: output, shape index: {}]
  %s4 = sld [smem:[#allocation0]]
  $region53: #{sxs_loss.1} parent=0
    _
  %s6 = ssub.s32 1, %s4
  %s7 = scalar_select 0, %s6, %s4
  loop: start=0, step=1, limit=4
  $region2: #{sxs_loss.1} parent=0 // loop_pre_header
    _
  $region3: #{sxs_loss.1} parent=0 // loop_header
    %s9 = sphi 0, %s13
    %p10 = scmp.ge.s32.totalorder %s9, 4
    %s16 = sphi 0, %s35
    %s17 = sphi 0, %s31
    %s18 = sphi 0, %s27
    %s19 = sphi 0, %s16
    %s20 = sphi 0, %s17
    %s21 = sphi 0, %s18
    %s22 = sphi 0, %s19
    %s23 = sphi 0, %s20
    %s24 = sphi 0, %s21
    %s42 = sphi 0, %s44
    %s45 = sphi 0, %s42
    %s46 = sphi 0, %s45
    %s62 = sphi 0, %s46
    %s74 = sphi 0, %s76
    %s77 = sphi 0, %s74
    %s78 = sphi 0, %s77
    %s94 = sphi 0, %s78
    %s104 = sphi 0, %s106
    %s107 = sphi 0, %s104
    %s108 = sphi 0, %s107
    %s124 = sphi 0, %s108
    %s132 = sphi 0, %s134
    %s135 = sphi 0, %s132
    %s136 = sphi 0, %s135
    %s152 = sphi 0, %s136
  $region4: #{sxs_loss.1} parent=0 // loop_header_branch
    %12 = sbr.rel (%p10) target = $region8
  $region5: #{sxs_loss.1} parent=0 // loop_body
    %s14 = ssub.s32 %s9, 1
    %s15 = ssub.s32 %s9, 2
    %s25 = sadd.s32 1, %s18
    %p26 = scmp.ge.s32.totalorder %s25, 1
    %s27 = scalar_select %p26, 0, %s25
    %s28 = sadd.s32 1, %s17
    %s29 = scalar_select %p26, %s28, %s17
    %p30 = scmp.ge.s32.totalorder %s29, 1
    %s31 = scalar_select %p30, 0, %s29
    %s32 = sadd.s32 1, %s16
    %s33 = scalar_select %p30, %s32, %s16
    %p34 = scmp.ge.s32.totalorder %s33, 2
    %s35 = scalar_select %p34, 0, %s33
    %s36 = sadd.s32 %s18, %s16
    %s37 = sadd.s32 %s27, %s35
    %s38 = ssub.s32 %s17, %s31
    %s39 = ssub.s32 %s36, %s37
    %s40 = sor.u32 %s38, %s39
    %p41 = scmp.eq.s32.totalorder %s40, 0
    %s43 = sadd.s32 %s42, 1
    %s44 = scalar_select %p41, %s42, %s43
    %p47 = pneg %p41
    %p48 = scmp.eq.s32.totalorder %s9, 1
    %p49 = por %p47, %p48
    %p50 = scmp.ne.s32.totalorder %s42, %s45
    %p51 = scmp.eq.s32.totalorder %s9, 0
    %p52 = por %p50, %p51
    %p53 = scmp.ne.s32.totalorder %s42, %s45
    %p54 = scmp.eq.s32.totalorder %s14, 1
    %p55 = por %p53, %p54
    %p56 = scmp.ne.s32.totalorder %s45, %s46
    %p57 = scmp.eq.s32.totalorder %s14, 0
    %p58 = por %p56, %p57
    %p59 = scmp.ne.s32.totalorder %s45, %s46
    %p60 = scmp.eq.s32.totalorder %s15, 1
    %p61 = por %p59, %p60
    %p63 = scmp.ne.s32.totalorder %s46, %s62
    %p64 = scmp.eq.s32.totalorder %s15, 0
    %p65 = por %p63, %p64
    %s66 = sadd.s32 %s18, %s16
    %s67 = sadd.s32 %s66, 2
    %s68 = sadd.s32 %s27, %s35
    %s69 = sadd.s32 %s68, 2
    %s70 = ssub.s32 %s17, %s31
    %s71 = ssub.s32 %s67, %s69
    %s72 = sor.u32 %s70, %s71
    %p73 = scmp.eq.s32.totalorder %s72, 0
    %s75 = sadd.s32 %s74, 1
    %s76 = scalar_select %p73, %s74, %s75
    %p79 = pneg %p73
    %p80 = scmp.eq.s32.totalorder %s9, 1
    %p81 = por %p79, %p80
    %p82 = scmp.ne.s32.totalorder %s74, %s77
    %p83 = scmp.eq.s32.totalorder %s9, 0
    %p84 = por %p82, %p83
    %p85 = scmp.ne.s32.totalorder %s74, %s77
    %p86 = scmp.eq.s32.totalorder %s14, 1
    %p87 = por %p85, %p86
    %p88 = scmp.ne.s32.totalorder %s77, %s78
    %p89 = scmp.eq.s32.totalorder %s14, 0
    %p90 = por %p88, %p89
    %p91 = scmp.ne.s32.totalorder %s77, %s78
    %p92 = scmp.eq.s32.totalorder %s15, 1
    %p93 = por %p91, %p92
    %p95 = scmp.ne.s32.totalorder %s78, %s94
    %p96 = scmp.eq.s32.totalorder %s15, 0
    %p97 = por %p95, %p96
    %s98 = sadd.s32 %s18, %s16
    %s99 = sadd.s32 %s27, %s35
    %s100 = ssub.s32 %s17, %s31
    %s101 = ssub.s32 %s98, %s99
    %s102 = sor.u32 %s100, %s101
    %p103 = scmp.eq.s32.totalorder %s102, 0
    %s105 = sadd.s32 %s104, 1
    %s106 = scalar_select %p103, %s104, %s105
    %p109 = pneg %p103
    %p110 = scmp.eq.s32.totalorder %s9, 1
    %p111 = por %p109, %p110
    %p112 = scmp.ne.s32.totalorder %s104, %s107
    %p113 = scmp.eq.s32.totalorder %s9, 0
    %p114 = por %p112, %p113
    %p115 = scmp.ne.s32.totalorder %s104, %s107
    %p116 = scmp.eq.s32.totalorder %s14, 1
    %p117 = por %p115, %p116
    %p118 = scmp.ne.s32.totalorder %s107, %s108
    %p119 = scmp.eq.s32.totalorder %s14, 0
    %p120 = por %p118, %p119
    %p121 = scmp.ne.s32.totalorder %s107, %s108
    %p122 = scmp.eq.s32.totalorder %s15, 1
    %p123 = por %p121, %p122
    %p125 = scmp.ne.s32.totalorder %s108, %s124
    %p126 = scmp.eq.s32.totalorder %s15, 0
    %p127 = por %p125, %p126
    %s128 = ssub.s32 %s16, %s35
    %s129 = ssub.s32 %s17, %s31
    %s130 = sor.u32 %s128, %s129
    %p131 = scmp.eq.s32.totalorder %s130, 0
    %s133 = sadd.s32 %s132, 1
    %s134 = scalar_select %p131, %s132, %s133
    %p137 = pneg %p131
    %p138 = scmp.eq.s32.totalorder %s9, 1
    %p139 = por %p137, %p138
    %p140 = scmp.ne.s32.totalorder %s132, %s135
    %p141 = scmp.eq.s32.totalorder %s9, 0
    %p142 = por %p140, %p141
    %p143 = scmp.ne.s32.totalorder %s132, %s135
    %p144 = scmp.eq.s32.totalorder %s14, 1
    %p145 = por %p143, %p144
    %p146 = scmp.ne.s32.totalorder %s135, %s136
    %p147 = scmp.eq.s32.totalorder %s14, 0
    %p148 = por %p146, %p147
    %p149 = scmp.ne.s32.totalorder %s135, %s136
    %p150 = scmp.eq.s32.totalorder %s15, 1
    %p151 = por %p149, %p150
    %p153 = scmp.ne.s32.totalorder %s136, %s152
    %p154 = scmp.eq.s32.totalorder %s15, 0
    %p155 = por %p153, %p154
    %p156 = scmp.le.s32.totalorder 1, %s9
    %p157 = scmp.lt.s32.totalorder %s9, 3
    %p158 = pnand %p156, %p157
    %p159 = pneg %p158
    // Predicated region
    $region9: #{sxs_loss.1} parent=5 // pred_check
      _
    $region10: #{sxs_loss.1} parent=5 // pred_check_branch
      %161 = sbr.rel (%p158) target = $region12
    $region11: #{sxs_loss.1} parent=5 // pred_region
      %s162 = ssub.s32 %s9, 1
    $region12: #{sxs_loss.1} parent=5 // pred_fallthru
      _
    %p163 = scmp.lt.s32.totalorder %s9, 2
    // Predicated region
    $region13: #{sxs_loss.1} parent=5 // pred_check
      %p164 = pneg %p163
    $region14: #{sxs_loss.1} parent=5 // pred_check_branch
      %166 = sbr.rel (%p164) target = $region16
    $region15: #{sxs_loss.1} parent=5 // pred_region
      // Predicated region
      $region17: #{sxs_loss.1} parent=15 // pred_check
        %p167 = pneg %p52
      $region18: #{sxs_loss.1} parent=15 // pred_check_branch
        %169 = sbr.rel (%p167) target = $region20
      $region19: #{sxs_loss.1} parent=15 // pred_region
        %s170 = sadd.s32 %s18, %s16
        %s171 = smul.u32 32, %s170
        %p172 = scmp.lt.s32.totalorder %s17, 0
        %s173 = scalar_select %p172, %s17, 0
        %p174 = scmp.lt.s32.totalorder %s171, 127
        %s175 = scalar_select %p174, %s171, 127
        %s176 = smul.addr %s173, 128
        %s177 = sadd.s32 %s175, %s176
        %s178 = smul.addr %s177, 8
        %s179 = scalar_lea.vmem %s0, %s178
        %s180 = sadd.s32 %s18, %s16
        %s181 = smul.u32 32, %s180
      $region20: #{sxs_loss.1} parent=15 // pred_fallthru
        _
      // Predicated region
      $region21: #{sxs_loss.1} parent=15 // pred_check
        %p182 = pneg %p84
      $region22: #{sxs_loss.1} parent=15 // pred_check_branch
        %184 = sbr.rel (%p182) target = $region24
      $region23: #{sxs_loss.1} parent=15 // pred_region
        %s185 = sadd.s32 %s18, %s16
        %s186 = sadd.s32 %s185, 2
        %s187 = smul.u32 32, %s186
        %p188 = scmp.lt.s32.totalorder %s17, 0
        %s189 = scalar_select %p188, %s17, 0
        %p190 = scmp.lt.s32.totalorder %s187, 127
        %s191 = scalar_select %p190, %s187, 127
        %s192 = smul.addr %s189, 128
        %s193 = sadd.s32 %s191, %s192
        %s194 = smul.addr %s193, 8
        %s195 = scalar_lea.vmem %s1, %s194
        %s196 = sadd.s32 %s18, %s16
        %s197 = sadd.s32 %s196, 2
        %s198 = smul.u32 32, %s197
      $region24: #{sxs_loss.1} parent=15 // pred_fallthru
        _
      // Predicated region
      $region25: #{sxs_loss.1} parent=15 // pred_check
        %p199 = pneg %p114
      $region26: #{sxs_loss.1} parent=15 // pred_check_branch
        %201 = sbr.rel (%p199) target = $region28
      $region27: #{sxs_loss.1} parent=15 // pred_region
        %s202 = sadd.s32 %s18, %s16
        %s203 = smul.u32 32, %s202
        %p204 = scmp.lt.s32.totalorder %s17, 0
        %s205 = scalar_select %p204, %s17, 0
        %p206 = scmp.lt.s32.totalorder %s203, 63
        %s207 = scalar_select %p206, %s203, 63
        %s208 = smul.addr %s205, 64
        %s209 = sadd.s32 %s207, %s208
        %s210 = smul.addr %s209, 8
        %s211 = scalar_lea.vmem %s2, %s210
        %s212 = sadd.s32 %s18, %s16
        %s213 = smul.u32 32, %s212
      $region28: #{sxs_loss.1} parent=15 // pred_fallthru
        _
    $region16: #{sxs_loss.1} parent=5 // pred_fallthru
      _
    %p214 = scmp.le.s32.totalorder 1, %s9
    %p215 = scmp.lt.s32.totalorder %s9, 3
    %p216 = pnand %p214, %p215
    %p217 = pneg %p216
    // Predicated region
    $region29: #{sxs_loss.1} parent=5 // pred_check
      _
    $region30: #{sxs_loss.1} parent=5 // pred_check_branch
      %219 = sbr.rel (%p216) target = $region32
    $region31: #{sxs_loss.1} parent=5 // pred_region
      %s220 = ssub.s32 %s9, 1
      %s221 = sadd.s32 %s21, %s19
      %s222 = smul.u32 32, %s221
      %p223 = scmp.lt.s32.totalorder %s20, 0
      %s224 = scalar_select %p223, %s20, 0
      %p225 = scmp.lt.s32.totalorder %s222, 127
      %s226 = scalar_select %p225, %s222, 127
      %s227 = smul.addr %s224, 128
      %s228 = sadd.s32 %s226, %s227
      %s229 = smul.addr %s228, 8
      %s230 = scalar_lea.vmem %s0, %s229
      %p231 = pneg %p58
      %p232 = pneg %p55
      %s233 = sadd.s32 %s21, %s19
      %s234 = sadd.s32 %s233, 2
      %s235 = smul.u32 32, %s234
      %p236 = scmp.lt.s32.totalorder %s20, 0
      %s237 = scalar_select %p236, %s20, 0
      %p238 = scmp.lt.s32.totalorder %s235, 127
      %s239 = scalar_select %p238, %s235, 127
      %s240 = smul.addr %s237, 128
      %s241 = sadd.s32 %s239, %s240
      %s242 = smul.addr %s241, 8
      %s243 = scalar_lea.vmem %s1, %s242
      %p244 = pneg %p90
      %p245 = pneg %p87
      %s246 = sadd.s32 %s21, %s19
      %s247 = smul.u32 32, %s246
      %p248 = scmp.lt.s32.totalorder %s20, 0
      %s249 = scalar_select %p248, %s20, 0
      %p250 = scmp.lt.s32.totalorder %s247, 63
      %s251 = scalar_select %p250, %s247, 63
      %s252 = smul.addr %s249, 64
      %s253 = sadd.s32 %s251, %s252
      %s254 = smul.addr %s253, 8
      %s255 = scalar_lea.vmem %s2, %s254
      %p256 = pneg %p120
      %p257 = pneg %p117
      %p258 = pneg %p148
      %p259 = pneg %p145
      %p260 = scmp.lt.s32.totalorder %s19, 1
      %s261 = scalar_select %p260, %s19, 1
      %p262 = scmp.lt.s32.totalorder %s20, 0
      %s263 = scalar_select %p262, %s20, 0
      %s264 = sadd.s32 %s263, %s261
      %s265 = smul.addr %s264, 8
      %s266 = scalar_lea.vmem %s3, %s265
      %s267 = sadd.s32 %s21, %s19
      %s268 = smul.u32 32, %s267
      %p269 = scmp.lt.s32.totalorder %s20, 0
      %s270 = scalar_select %p269, %s20, 0
      %p271 = scmp.lt.s32.totalorder %s268, 127
      %s272 = scalar_select %p271, %s268, 127
      %s273 = smul.addr %s270, 128
      %s274 = sadd.s32 %s272, %s273
      %s275 = smul.addr %s274, 8
      %s276 = scalar_lea.vmem %s0, %s275
      %s277 = sadd.s32 %s21, %s19
      %s278 = smul.u32 32, %s277
      %s279 = sadd.s32 %s21, %s19
      %s280 = sadd.s32 %s279, 2
      %s281 = smul.u32 32, %s280
      %p282 = scmp.lt.s32.totalorder %s20, 0
      %s283 = scalar_select %p282, %s20, 0
      %p284 = scmp.lt.s32.totalorder %s281, 127
      %s285 = scalar_select %p284, %s281, 127
      %s286 = smul.addr %s283, 128
      %s287 = sadd.s32 %s285, %s286
      %s288 = smul.addr %s287, 8
      %s289 = scalar_lea.vmem %s1, %s288
      %s290 = sadd.s32 %s21, %s19
      %s291 = sadd.s32 %s290, 2
      %s292 = smul.u32 32, %s291
      %s293 = sadd.s32 %s21, %s19
      %s294 = smul.u32 32, %s293
      %p295 = scmp.lt.s32.totalorder %s20, 0
      %s296 = scalar_select %p295, %s20, 0
      %p297 = scmp.lt.s32.totalorder %s294, 63
      %s298 = scalar_select %p297, %s294, 63
      %s299 = smul.addr %s296, 64
      %s300 = sadd.s32 %s298, %s299
      %s301 = smul.addr %s300, 8
      %s302 = scalar_lea.vmem %s2, %s301
      %s303 = sadd.s32 %s21, %s19
      %s304 = smul.u32 32, %s303
      %p305 = scmp.lt.s32.totalorder %s19, 1
      %s306 = scalar_select %p305, %s19, 1
      %p307 = scmp.lt.s32.totalorder %s20, 0
      %s308 = scalar_select %p307, %s20, 0
      %s309 = sadd.s32 %s308, %s306
      %s310 = smul.addr %s309, 8
      %s311 = scalar_lea.vmem %s3, %s310
      %p312 = scmp.eq.s32.totalorder %s21, 0
      // Predicated region
      $region33: #{sxs_loss.1} parent=31 // pred_check
        %p313 = pneg %p312
      $region34: #{sxs_loss.1} parent=31 // pred_check_branch
        %315 = sbr.rel (%p313) target = $region36
      $region35: #{sxs_loss.1} parent=31 // pred_region
        %vm316 = vcmask 7168
        %317 = vst.msk [vmem:[#allocation2] sm:$0xff] %vm316, 0.0
        %318 = vst.msk [vmem:[#allocation3] sm:$0xff] %vm316, 0.0
        %319 = vst.msk [vmem:[#allocation4] sm:$0xff] %vm316, 0.0
        %320 = vst.msk [vmem:[#allocation5] sm:$0xff] %vm316, 0.0
        %321 = vst.msk [vmem:[#allocation6] sm:$0xff] %vm316, 0.0
      $region36: #{sxs_loss.1} parent=31 // pred_fallthru
        _
      %v322 = vld [vmem:[%s276] sm:$0xff]
      %v323 = vld [vmem:[%s276 + $0x8] sm:$0xff]
      %v324 = vld [vmem:[%s276 + $0x10] sm:$0xff]
      %v325 = vld [vmem:[%s276 + $0x18] sm:$0xff]
      %v326 = vld [vmem:[%s276 + $0x20] sm:$0xff]
      %v327 = vld [vmem:[%s276 + $0x28] sm:$0xff]
      %v328 = vld [vmem:[%s276 + $0x30] sm:$0xff]
      %v329 = vld [vmem:[%s276 + $0x38] sm:$0xff]
      %v330 = vld [vmem:[%s276 + $0x40] sm:$0xff]
      %v331 = vld [vmem:[%s276 + $0x48] sm:$0xff]
      %v332 = vld [vmem:[%s276 + $0x50] sm:$0xff]
      %v333 = vld [vmem:[%s276 + $0x58] sm:$0xff]
      %v334 = vld [vmem:[%s276 + $0x60] sm:$0xff]
      %v335 = vld [vmem:[%s276 + $0x68] sm:$0xff]
      %v336 = vld [vmem:[%s276 + $0x70] sm:$0xff]
      %v337 = vld [vmem:[%s276 + $0x78] sm:$0xff]
      %v338 = vld [vmem:[%s276 + $0x80] sm:$0xff]
      %v339 = vld [vmem:[%s276 + $0x88] sm:$0xff]
      %v340 = vld [vmem:[%s276 + $0x90] sm:$0xff]
      %v341 = vld [vmem:[%s276 + $0x98] sm:$0xff]
      %v342 = vld [vmem:[%s276 + $0xa0] sm:$0xff]
      %v343 = vld [vmem:[%s276 + $0xa8] sm:$0xff]
      %v344 = vld [vmem:[%s276 + $0xb0] sm:$0xff]
      %v345 = vld [vmem:[%s276 + $0xb8] sm:$0xff]
      %v346 = vld [vmem:[%s276 + $0xc0] sm:$0xff]
      %v347 = vld [vmem:[%s276 + $0xc8] sm:$0xff]
      %v348 = vld [vmem:[%s276 + $0xd0] sm:$0xff]
      %v349 = vld [vmem:[%s276 + $0xd8] sm:$0xff]
      %v350 = vld [vmem:[%s276 + $0xe0] sm:$0xff]
      %v351 = vld [vmem:[%s276 + $0xe8] sm:$0xff]
      %v352 = vld [vmem:[%s276 + $0xf0] sm:$0xff]
      %v353 = vld [vmem:[%s276 + $0xf8] sm:$0xff]
      %v354 = vld [vmem:[%s289] sm:$0xff]
      %v355 = vld [vmem:[%s289 + $0x8] sm:$0xff]
      %v356 = vld [vmem:[%s289 + $0x10] sm:$0xff]
      %v357 = vld [vmem:[%s289 + $0x18] sm:$0xff]
      %v358 = vld [vmem:[%s289 + $0x20] sm:$0xff]
      %v359 = vld [vmem:[%s289 + $0x28] sm:$0xff]
      %v360 = vld [vmem:[%s289 + $0x30] sm:$0xff]
      %v361 = vld [vmem:[%s289 + $0x38] sm:$0xff]
      %v362 = vld [vmem:[%s289 + $0x40] sm:$0xff]
      %v363 = vld [vmem:[%s289 + $0x48] sm:$0xff]
      %v364 = vld [vmem:[%s289 + $0x50] sm:$0xff]
      %v365 = vld [vmem:[%s289 + $0x58] sm:$0xff]
      %v366 = vld [vmem:[%s289 + $0x60] sm:$0xff]
      %v367 = vld [vmem:[%s289 + $0x68] sm:$0xff]
      %v368 = vld [vmem:[%s289 + $0x70] sm:$0xff]
      %v369 = vld [vmem:[%s289 + $0x78] sm:$0xff]
      %v370 = vld [vmem:[%s289 + $0x80] sm:$0xff]
      %v371 = vld [vmem:[%s289 + $0x88] sm:$0xff]
      %v372 = vld [vmem:[%s289 + $0x90] sm:$0xff]
      %v373 = vld [vmem:[%s289 + $0x98] sm:$0xff]
      %v374 = vld [vmem:[%s289 + $0xa0] sm:$0xff]
      %v375 = vld [vmem:[%s289 + $0xa8] sm:$0xff]
      %v376 = vld [vmem:[%s289 + $0xb0] sm:$0xff]
      %v377 = vld [vmem:[%s289 + $0xb8] sm:$0xff]
      %v378 = vld [vmem:[%s289 + $0xc0] sm:$0xff]
      %v379 = vld [vmem:[%s289 + $0xc8] sm:$0xff]
      %v380 = vld [vmem:[%s289 + $0xd0] sm:$0xff]
      %v381 = vld [vmem:[%s289 + $0xd8] sm:$0xff]
      %v382 = vld [vmem:[%s289 + $0xe0] sm:$0xff]
      %v383 = vld [vmem:[%s289 + $0xe8] sm:$0xff]
      %v384 = vld [vmem:[%s289 + $0xf0] sm:$0xff]
      %v385 = vld [vmem:[%s289 + $0xf8] sm:$0xff]
      %v386 = vld [vmem:[%s302] sm:$0xff]
      %v387 = vld [vmem:[%s302 + $0x8] sm:$0xff]
      %v388 = vld [vmem:[%s302 + $0x10] sm:$0xff]
      %v389 = vld [vmem:[%s302 + $0x18] sm:$0xff]
      %v390 = vld [vmem:[%s302 + $0x20] sm:$0xff]
      %v391 = vld [vmem:[%s302 + $0x28] sm:$0xff]
      %v392 = vld [vmem:[%s302 + $0x30] sm:$0xff]
      %v393 = vld [vmem:[%s302 + $0x38] sm:$0xff]
      %v394 = vld [vmem:[%s302 + $0x40] sm:$0xff]
      %v395 = vld [vmem:[%s302 + $0x48] sm:$0xff]
      %v396 = vld [vmem:[%s302 + $0x50] sm:$0xff]
      %v397 = vld [vmem:[%s302 + $0x58] sm:$0xff]
      %v398 = vld [vmem:[%s302 + $0x60] sm:$0xff]
      %v399 = vld [vmem:[%s302 + $0x68] sm:$0xff]
      %v400 = vld [vmem:[%s302 + $0x70] sm:$0xff]
      %v401 = vld [vmem:[%s302 + $0x78] sm:$0xff]
      %v402 = vld [vmem:[%s302 + $0x80] sm:$0xff]
      %v403 = vld [vmem:[%s302 + $0x88] sm:$0xff]
      %v404 = vld [vmem:[%s302 + $0x90] sm:$0xff]
      %v405 = vld [vmem:[%s302 + $0x98] sm:$0xff]
      %v406 = vld [vmem:[%s302 + $0xa0] sm:$0xff]
      %v407 = vld [vmem:[%s302 + $0xa8] sm:$0xff]
      %v408 = vld [vmem:[%s302 + $0xb0] sm:$0xff]
      %v409 = vld [vmem:[%s302 + $0xb8] sm:$0xff]
      %v410 = vld [vmem:[%s302 + $0xc0] sm:$0xff]
      %v411 = vld [vmem:[%s302 + $0xc8] sm:$0xff]
      %v412 = vld [vmem:[%s302 + $0xd0] sm:$0xff]
      %v413 = vld [vmem:[%s302 + $0xd8] sm:$0xff]
      %v414 = vld [vmem:[%s302 + $0xe0] sm:$0xff]
      %v415 = vld [vmem:[%s302 + $0xe8] sm:$0xff]
      %v416 = vld [vmem:[%s302 + $0xf0] sm:$0xff]
      %v417 = vld [vmem:[%s302 + $0xf8] sm:$0xff]
      %v418 = vand.u32 2147483647, %v354
      %vm419 = vcmp.le.f32.partialorder %v418, 0.7853982
      %vm420 = vcmp.lt.s32.totalorder %v354, 0
      %v421 = vand.u32 %v354, 2139095040
      %v422 = vshrl.u32 %v421, 23
      %v423 = vsub.s32 %v422, 127
      %v424 = vand.u32 2147483647, %v354
      %v425 = vand.u32 %v424, 8388607
      %v426 = vor.u32 %v425, 8388608
      %v427 = vsub.s32 0, %v426
      %v428 = vadd.s32 %v423, 1
      %vm429 = vcmp.gt.s32.totalorder %v428, 0
      %v430 = vsel %vm429, %v428, 0
      %v431 = vshrl.u32 %v430, 5
      %v432 = vand.u32 %v430, 31
      %v433 = vsub.s32 32, %v432
      %v434 = vshrl.u32 683565275, %v433
      %v435 = vshll.u32 683565275, %v432
      %v436 = vshrl.u32 2475754826, %v433
      %v437 = vor.u32 %v435, %v436
      %v438 = vshll.u32 2475754826, %v432
      %v439 = vshrl.u32 2131351028, %v433
      %v440 = vor.u32 %v438, %v439
      %v441 = vshll.u32 2131351028, %v432
      %v442 = vshrl.u32 2102212464, %v433
      %v443 = vor.u32 %v441, %v442
      %v444 = vshll.u32 2102212464, %v432
      %v445 = vshrl.u32 920167782, %v433
      %v446 = vor.u32 %v444, %v445
      %v447 = vshll.u32 920167782, %v432
      %v448 = vshrl.u32 1326507024, %v433
      %v449 = vor.u32 %v447, %v448
      %vm450 = vcmp.lt.s32.totalorder %v431, 1
      %vm451 = vcmp.lt.s32.totalorder %v431, 2
      %vm452 = vcmp.lt.s32.totalorder %v431, 3
      %vm453 = vcmp.lt.s32.totalorder %v431, 4
      %v454 = vsel %vm450, %v434, %v437
      %v455 = vsel %vm453, %v443, 2102212464
      %v456 = vsel %vm452, %v440, %v455
      %v457 = vsel %vm451, %v454, %v456
      %v458 = vsel %vm450, %v437, %v440
      %v459 = vsel %vm453, %v446, 920167782
      %v460 = vsel %vm452, %v443, %v459
      %v461 = vsel %vm451, %v458, %v460
      %v462 = vsel %vm450, %v440, %v443
      %v463 = vsel %vm453, %v449, 1326507024
      %v464 = vsel %vm452, %v446, %v463
      %v465 = vsel %vm451, %v462, %v464
      %v466 = vshll.u32 %v426, 8
      %v467 = vand.u32 %v466, 65535
      %v468 = vshrl.u32 %v466, 16
      %v469 = vand.u32 %v465, 65535
      %v470 = vshrl.u32 %v465, 16
      %v471 = vmul.u32 %v467, %v469
      %v472 = vmul.u32 %v467, %v470
      %v473 = vmul.u32 %v468, %v469
      %v474 = vmul.u32 %v468, %v470
      %v475 = vshll.u32 %v472, 16
      %v476 = vshrl.u32 %v472, 16
      %v477 = vshll.u32 %v473, 16
      %v478 = vshrl.u32 %v473, 16
      %vm479 = vc.u32 %v471, %v475
      %v480 = vsel %vm479, 1, 0
      %v481 = vadd.s32 %v471, %v475
      %v482 = vadd.s32 %v474, %v480
      %vm483 = vc.u32 %v481, %v477
      %v484 = vsel %vm483, 1, 0
      %v485 = vadd.s32 %v481, %v477
      %v486 = vadd.s32 %v482, %v484
      %v487 = vadd.s32 %v486, %v476
      %v488 = vadd.s32 %v487, %v478
      %v489 = vand.u32 %v466, 65535
      %v490 = vshrl.u32 %v466, 16
      %v491 = vand.u32 %v461, 65535
      %v492 = vshrl.u32 %v461, 16
      %v493 = vmul.u32 %v489, %v491
      %v494 = vmul.u32 %v489, %v492
      %v495 = vmul.u32 %v490, %v491
      %v496 = vmul.u32 %v490, %v492
      %v497 = vshll.u32 %v494, 16
      %v498 = vshrl.u32 %v494, 16
      %v499 = vshll.u32 %v495, 16
      %v500 = vshrl.u32 %v495, 16
      %vm501 = vc.u32 %v493, %v497
      %v502 = vsel %vm501, 1, 0
      %v503 = vadd.s32 %v493, %v497
      %v504 = vadd.s32 %v496, %v502
      %vm505 = vc.u32 %v503, %v499
      %v506 = vsel %vm505, 1, 0
      %v507 = vadd.s32 %v503, %v499
      %v508 = vadd.s32 %v504, %v506
      %v509 = vadd.s32 %v508, %v498
      %v510 = vadd.s32 %v509, %v500
      %v511 = vmul.u32 %v466, %v457
      %v512 = vadd.s32 %v488, %v507
      %vm513 = vc.u32 %v488, %v507
      %v514 = vadd.s32 %v510, 1
      %v515 = vsel %vm513, %v514, %v510
      %v516 = vadd.s32 %v511, %v515
      %v517 = vadd.s32 %v516, 536870912
      %v518 = vshrl.u32 %v517, 30
      %v519 = vshll.u32 %v518, 30
      %v520 = vsub.s32 %v516, %v519
      %vm521 = vcmp.lt.s32.totalorder %v520, 0
      %v522 = vsub.s32 0, %v520
      %v523 = vsel %vm521, %v522, %v520
      %v524 = vclz %v523
      %v525 = vsub.s32 %v524, 2
      %vm526 = vcmp.gt.s32.totalorder 0, %v525
      %v527 = vsel %vm526, 0, %v525
      %v528 = vsub.s32 32, %v527
      %v529 = vshll.u32 %v520, %v527
      %v530 = vshrl.u32 %v512, %v528
      %v531 = vor.u32 %v529, %v530
      %v532 = vsub.s32 4294967266, %v527
      %v533 = vadd.s32 %v532, 127
      %v534 = vshll.u32 %v533, 23
      %v535 = vor.u32 4788187, %v534
      %v536 = vand.u32 2147483647, %v535
      %v538 = vcvt.s32.f32 %v531
      %v539 = vmul.f32 %v538, %v536
      %v540 = vxor.u32 %v539, 2147483648
      %v541 = vsel %vm420, %v540, %v539
      %v542 = vsub.s32 4, %v518
      %v543 = vsel %vm420, %v542, %v518
      %v544 = vsel %vm419, %v354, %v541
      %v545 = vsel %vm419, 0, %v543
      %v546 = vmul.f32 %v544, %v544
      %v547 = vmul.f32 %v546, -0.001358992
      %v548 = vadd.f32 %v547, 0.041655596
      %v549 = vmul.f32 %v546, %v548
      %v550 = vadd.f32 %v549, -0.4999988
      %v551 = vmul.f32 %v546, %v550
      %v552 = vadd.f32 1.0, %v551
      %v553 = vmul.f32 %v544, %v544
      %v554 = vmul.f32 %v553, -0.00019511016
      %v555 = vadd.f32 %v554, 0.008332121
      %v556 = vmul.f32 %v553, %v555
      %v557 = vadd.f32 %v556, -0.16666654
      %v558 = vmul.f32 %v553, %v557
      %v559 = vadd.f32 %v558, 1.0
      %v560 = vmul.f32 %v559, %v544
      %vm561 = vweird.f32 %v354
      %v562 = vand.u32 %v545, 3
      %vm563 = vcmp.lt.s32.totalorder %v562, 2
      %vm564 = vcmp.eq.s32.totalorder %v562, 0
      %v565 = vxor.u32 %v560, 2147483648
      %v566 = vsel %vm564, %v552, %v565
      %vm567 = vcmp.eq.s32.totalorder %v562, 2
      %v568 = vxor.u32 %v552, 2147483648
      %v569 = vsel %vm567, %v568, %v560
      %v570 = vsel %vm563, %v566, %v569
      %v571 = vsel %vm561, nan, %v570
      %v572 = vand.u32 2147483647, %v355
      %vm573 = vcmp.le.f32.partialorder %v572, 0.7853982
      %vm574 = vcmp.lt.s32.totalorder %v355, 0
      %v575 = vand.u32 %v355, 2139095040
      %v576 = vshrl.u32 %v575, 23
      %v577 = vsub.s32 %v576, 127
      %v578 = vand.u32 2147483647, %v355
      %v579 = vand.u32 %v578, 8388607
      %v580 = vor.u32 %v579, 8388608
      %v581 = vsub.s32 0, %v580
      %v582 = vadd.s32 %v577, 1
      %vm583 = vcmp.gt.s32.totalorder %v582, 0
      %v584 = vsel %vm583, %v582, 0
      %v585 = vshrl.u32 %v584, 5
      %v586 = vand.u32 %v584, 31
      %v587 = vsub.s32 32, %v586
      %v588 = vshrl.u32 683565275, %v587
      %v589 = vshll.u32 683565275, %v586
      %v590 = vshrl.u32 2475754826, %v587
      %v591 = vor.u32 %v589, %v590
      %v592 = vshll.u32 2475754826, %v586
      %v593 = vshrl.u32 2131351028, %v587
      %v594 = vor.u32 %v592, %v593
      %v595 = vshll.u32 2131351028, %v586
      %v596 = vshrl.u32 2102212464, %v587
      %v597 = vor.u32 %v595, %v596
      %v598 = vshll.u32 2102212464, %v586
      %v599 = vshrl.u32 920167782, %v587
      %v600 = vor.u32 %v598, %v599
      %v601 = vshll.u32 920167782, %v586
      %v602 = vshrl.u32 1326507024, %v587
      %v603 = vor.u32 %v601, %v602
      %vm604 = vcmp.lt.s32.totalorder %v585, 1
      %vm605 = vcmp.lt.s32.totalorder %v585, 2
      %vm606 = vcmp.lt.s32.totalorder %v585, 3
      %vm607 = vcmp.lt.s32.totalorder %v585, 4
      %v608 = vsel %vm604, %v588, %v591
      %v609 = vsel %vm607, %v597, 2102212464
      %v610 = vsel %vm606, %v594, %v609
      %v611 = vsel %vm605, %v608, %v610
      %v612 = vsel %vm604, %v591, %v594
      %v613 = vsel %vm607, %v600, 920167782
      %v614 = vsel %vm606, %v597, %v613
      %v615 = vsel %vm605, %v612, %v614
      %v616 = vsel %vm604, %v594, %v597
      %v617 = vsel %vm607, %v603, 1326507024
      %v618 = vsel %vm606, %v600, %v617
      %v619 = vsel %vm605, %v616, %v618
      %v620 = vshll.u32 %v580, 8
      %v621 = vand.u32 %v620, 65535
      %v622 = vshrl.u32 %v620, 16
      %v623 = vand.u32 %v619, 65535
      %v624 = vshrl.u32 %v619, 16
      %v625 = vmul.u32 %v621, %v623
      %v626 = vmul.u32 %v621, %v624
      %v627 = vmul.u32 %v622, %v623
      %v628 = vmul.u32 %v622, %v624
      %v629 = vshll.u32 %v626, 16
      %v630 = vshrl.u32 %v626, 16
      %v631 = vshll.u32 %v627, 16
      %v632 = vshrl.u32 %v627, 16
      %vm633 = vc.u32 %v625, %v629
      %v634 = vsel %vm633, 1, 0
      %v635 = vadd.s32 %v625, %v629
      %v636 = vadd.s32 %v628, %v634
      %vm637 = vc.u32 %v635, %v631
      %v638 = vsel %vm637, 1, 0
      %v639 = vadd.s32 %v635, %v631
      %v640 = vadd.s32 %v636, %v638
      %v641 = vadd.s32 %v640, %v630
      %v642 = vadd.s32 %v641, %v632
      %v643 = vand.u32 %v620, 65535
      %v644 = vshrl.u32 %v620, 16
      %v645 = vand.u32 %v615, 65535
      %v646 = vshrl.u32 %v615, 16
      %v647 = vmul.u32 %v643, %v645
      %v648 = vmul.u32 %v643, %v646
      %v649 = vmul.u32 %v644, %v645
      %v650 = vmul.u32 %v644, %v646
      %v651 = vshll.u32 %v648, 16
      %v652 = vshrl.u32 %v648, 16
      %v653 = vshll.u32 %v649, 16
      %v654 = vshrl.u32 %v649, 16
      %vm655 = vc.u32 %v647, %v651
      %v656 = vsel %vm655, 1, 0
      %v657 = vadd.s32 %v647, %v651
      %v658 = vadd.s32 %v650, %v656
      %vm659 = vc.u32 %v657, %v653
      %v660 = vsel %vm659, 1, 0
      %v661 = vadd.s32 %v657, %v653
      %v662 = vadd.s32 %v658, %v660
      %v663 = vadd.s32 %v662, %v652
      %v664 = vadd.s32 %v663, %v654
      %v665 = vmul.u32 %v620, %v611
      %v666 = vadd.s32 %v642, %v661
      %vm667 = vc.u32 %v642, %v661
      %v668 = vadd.s32 %v664, 1
      %v669 = vsel %vm667, %v668, %v664
      %v670 = vadd.s32 %v665, %v669
      %v671 = vadd.s32 %v670, 536870912
      %v672 = vshrl.u32 %v671, 30
      %v673 = vshll.u32 %v672, 30
      %v674 = vsub.s32 %v670, %v673
      %vm675 = vcmp.lt.s32.totalorder %v674, 0
      %v676 = vsub.s32 0, %v674
      %v677 = vsel %vm675, %v676, %v674
      %v678 = vclz %v677
      %v679 = vsub.s32 %v678, 2
      %vm680 = vcmp.gt.s32.totalorder 0, %v679
      %v681 = vsel %vm680, 0, %v679
      %v682 = vsub.s32 32, %v681
      %v683 = vshll.u32 %v674, %v681
      %v684 = vshrl.u32 %v666, %v682
      %v685 = vor.u32 %v683, %v684
      %v686 = vsub.s32 4294967266, %v681
      %v687 = vadd.s32 %v686, 127
      %v688 = vshll.u32 %v687, 23
      %v689 = vor.u32 4788187, %v688
      %v690 = vand.u32 2147483647, %v689
      %v692 = vcvt.s32.f32 %v685
      %v693 = vmul.f32 %v692, %v690
      %v694 = vxor.u32 %v693, 2147483648
      %v695 = vsel %vm574, %v694, %v693
      %v696 = vsub.s32 4, %v672
      %v697 = vsel %vm574, %v696, %v672
      %v698 = vsel %vm573, %v355, %v695
      %v699 = vsel %vm573, 0, %v697
      %v700 = vmul.f32 %v698, %v698
      %v701 = vmul.f32 %v700, -0.001358992
      %v702 = vadd.f32 %v701, 0.041655596
      %v703 = vmul.f32 %v700, %v702
      %v704 = vadd.f32 %v703, -0.4999988
      %v705 = vmul.f32 %v700, %v704
      %v706 = vadd.f32 1.0, %v705
      %v707 = vmul.f32 %v698, %v698
      %v708 = vmul.f32 %v707, -0.00019511016
      %v709 = vadd.f32 %v708, 0.008332121
      %v710 = vmul.f32 %v707, %v709
      %v711 = vadd.f32 %v710, -0.16666654
      %v712 = vmul.f32 %v707, %v711
      %v713 = vadd.f32 %v712, 1.0
      %v714 = vmul.f32 %v713, %v698
      %vm715 = vweird.f32 %v355
      %v716 = vand.u32 %v699, 3
      %vm717 = vcmp.lt.s32.totalorder %v716, 2
      %vm718 = vcmp.eq.s32.totalorder %v716, 0
      %v719 = vxor.u32 %v714, 2147483648
      %v720 = vsel %vm718, %v706, %v719
      %vm721 = vcmp.eq.s32.totalorder %v716, 2
      %v722 = vxor.u32 %v706, 2147483648
      %v723 = vsel %vm721, %v722, %v714
      %v724 = vsel %vm717, %v720, %v723
      %v725 = vsel %vm715, nan, %v724
      %v726 = vand.u32 2147483647, %v356
      %vm727 = vcmp.le.f32.partialorder %v726, 0.7853982
      %vm728 = vcmp.lt.s32.totalorder %v356, 0
      %v729 = vand.u32 %v356, 2139095040
      %v730 = vshrl.u32 %v729, 23
      %v731 = vsub.s32 %v730, 127
      %v732 = vand.u32 2147483647, %v356
      %v733 = vand.u32 %v732, 8388607
      %v734 = vor.u32 %v733, 8388608
      %v735 = vsub.s32 0, %v734
      %v736 = vadd.s32 %v731, 1
      %vm737 = vcmp.gt.s32.totalorder %v736, 0
      %v738 = vsel %vm737, %v736, 0
      %v739 = vshrl.u32 %v738, 5
      %v740 = vand.u32 %v738, 31
      %v741 = vsub.s32 32, %v740
      %v742 = vshrl.u32 683565275, %v741
      %v743 = vshll.u32 683565275, %v740
      %v744 = vshrl.u32 2475754826, %v741
      %v745 = vor.u32 %v743, %v744
      %v746 = vshll.u32 2475754826, %v740
      %v747 = vshrl.u32 2131351028, %v741
      %v748 = vor.u32 %v746, %v747
      %v749 = vshll.u32 2131351028, %v740
      %v750 = vshrl.u32 2102212464, %v741
      %v751 = vor.u32 %v749, %v750
      %v752 = vshll.u32 2102212464, %v740
      %v753 = vshrl.u32 920167782, %v741
      %v754 = vor.u32 %v752, %v753
      %v755 = vshll.u32 920167782, %v740
      %v756 = vshrl.u32 1326507024, %v741
      %v757 = vor.u32 %v755, %v756
      %vm758 = vcmp.lt.s32.totalorder %v739, 1
      %vm759 = vcmp.lt.s32.totalorder %v739, 2
      %vm760 = vcmp.lt.s32.totalorder %v739, 3
      %vm761 = vcmp.lt.s32.totalorder %v739, 4
      %v762 = vsel %vm758, %v742, %v745
      %v763 = vsel %vm761, %v751, 2102212464
      %v764 = vsel %vm760, %v748, %v763
      %v765 = vsel %vm759, %v762, %v764
      %v766 = vsel %vm758, %v745, %v748
      %v767 = vsel %vm761, %v754, 920167782
      %v768 = vsel %vm760, %v751, %v767
      %v769 = vsel %vm759, %v766, %v768
      %v770 = vsel %vm758, %v748, %v751
      %v771 = vsel %vm761, %v757, 1326507024
      %v772 = vsel %vm760, %v754, %v771
      %v773 = vsel %vm759, %v770, %v772
      %v774 = vshll.u32 %v734, 8
      %v775 = vand.u32 %v774, 65535
      %v776 = vshrl.u32 %v774, 16
      %v777 = vand.u32 %v773, 65535
      %v778 = vshrl.u32 %v773, 16
      %v779 = vmul.u32 %v775, %v777
      %v780 = vmul.u32 %v775, %v778
      %v781 = vmul.u32 %v776, %v777
      %v782 = vmul.u32 %v776, %v778
      %v783 = vshll.u32 %v780, 16
      %v784 = vshrl.u32 %v780, 16
      %v785 = vshll.u32 %v781, 16
      %v786 = vshrl.u32 %v781, 16
      %vm787 = vc.u32 %v779, %v783
      %v788 = vsel %vm787, 1, 0
      %v789 = vadd.s32 %v779, %v783
      %v790 = vadd.s32 %v782, %v788
      %vm791 = vc.u32 %v789, %v785
      %v792 = vsel %vm791, 1, 0
      %v793 = vadd.s32 %v789, %v785
      %v794 = vadd.s32 %v790, %v792
      %v795 = vadd.s32 %v794, %v784
      %v796 = vadd.s32 %v795, %v786
      %v797 = vand.u32 %v774, 65535
      %v798 = vshrl.u32 %v774, 16
      %v799 = vand.u32 %v769, 65535
      %v800 = vshrl.u32 %v769, 16
      %v801 = vmul.u32 %v797, %v799
      %v802 = vmul.u32 %v797, %v800
      %v803 = vmul.u32 %v798, %v799
      %v804 = vmul.u32 %v798, %v800
      %v805 = vshll.u32 %v802, 16
      %v806 = vshrl.u32 %v802, 16
      %v807 = vshll.u32 %v803, 16
      %v808 = vshrl.u32 %v803, 16
      %vm809 = vc.u32 %v801, %v805
      %v810 = vsel %vm809, 1, 0
      %v811 = vadd.s32 %v801, %v805
      %v812 = vadd.s32 %v804, %v810
      %vm813 = vc.u32 %v811, %v807
      %v814 = vsel %vm813, 1, 0
      %v815 = vadd.s32 %v811, %v807
      %v816 = vadd.s32 %v812, %v814
      %v817 = vadd.s32 %v816, %v806
      %v818 = vadd.s32 %v817, %v808
      %v819 = vmul.u32 %v774, %v765
      %v820 = vadd.s32 %v796, %v815
      %vm821 = vc.u32 %v796, %v815
      %v822 = vadd.s32 %v818, 1
      %v823 = vsel %vm821, %v822, %v818
      %v824 = vadd.s32 %v819, %v823
      %v825 = vadd.s32 %v824, 536870912
      %v826 = vshrl.u32 %v825, 30
      %v827 = vshll.u32 %v826, 30
      %v828 = vsub.s32 %v824, %v827
      %vm829 = vcmp.lt.s32.totalorder %v828, 0
      %v830 = vsub.s32 0, %v828
      %v831 = vsel %vm829, %v830, %v828
      %v832 = vclz %v831
      %v833 = vsub.s32 %v832, 2
      %vm834 = vcmp.gt.s32.totalorder 0, %v833
      %v835 = vsel %vm834, 0, %v833
      %v836 = vsub.s32 32, %v835
      %v837 = vshll.u32 %v828, %v835
      %v838 = vshrl.u32 %v820, %v836
      %v839 = vor.u32 %v837, %v838
      %v840 = vsub.s32 4294967266, %v835
      %v841 = vadd.s32 %v840, 127
      %v842 = vshll.u32 %v841, 23
      %v843 = vor.u32 4788187, %v842
      %v844 = vand.u32 2147483647, %v843
      %v846 = vcvt.s32.f32 %v839
      %v847 = vmul.f32 %v846, %v844
      %v848 = vxor.u32 %v847, 2147483648
      %v849 = vsel %vm728, %v848, %v847
      %v850 = vsub.s32 4, %v826
      %v851 = vsel %vm728, %v850, %v826
      %v852 = vsel %vm727, %v356, %v849
      %v853 = vsel %vm727, 0, %v851
      %v854 = vmul.f32 %v852, %v852
      %v855 = vmul.f32 %v854, -0.001358992
      %v856 = vadd.f32 %v855, 0.041655596
      %v857 = vmul.f32 %v854, %v856
      %v858 = vadd.f32 %v857, -0.4999988
      %v859 = vmul.f32 %v854, %v858
      %v860 = vadd.f32 1.0, %v859
      %v861 = vmul.f32 %v852, %v852
      %v862 = vmul.f32 %v861, -0.00019511016
      %v863 = vadd.f32 %v862, 0.008332121
      %v864 = vmul.f32 %v861, %v863
      %v865 = vadd.f32 %v864, -0.16666654
      %v866 = vmul.f32 %v861, %v865
      %v867 = vadd.f32 %v866, 1.0
      %v868 = vmul.f32 %v867, %v852
      %vm869 = vweird.f32 %v356
      %v870 = vand.u32 %v853, 3
      %vm871 = vcmp.lt.s32.totalorder %v870, 2
      %vm872 = vcmp.eq.s32.totalorder %v870, 0
      %v873 = vxor.u32 %v868, 2147483648
      %v874 = vsel %vm872, %v860, %v873
      %vm875 = vcmp.eq.s32.totalorder %v870, 2
      %v876 = vxor.u32 %v860, 2147483648
      %v877 = vsel %vm875, %v876, %v868
      %v878 = vsel %vm871, %v874, %v877
      %v879 = vsel %vm869, nan, %v878
      %v880 = vand.u32 2147483647, %v357
      %vm881 = vcmp.le.f32.partialorder %v880, 0.7853982
      %vm882 = vcmp.lt.s32.totalorder %v357, 0
      %v883 = vand.u32 %v357, 2139095040
      %v884 = vshrl.u32 %v883, 23
      %v885 = vsub.s32 %v884, 127
      %v886 = vand.u32 2147483647, %v357
      %v887 = vand.u32 %v886, 8388607
      %v888 = vor.u32 %v887, 8388608
      %v889 = vsub.s32 0, %v888
      %v890 = vadd.s32 %v885, 1
      %vm891 = vcmp.gt.s32.totalorder %v890, 0
      %v892 = vsel %vm891, %v890, 0
      %v893 = vshrl.u32 %v892, 5
      %v894 = vand.u32 %v892, 31
      %v895 = vsub.s32 32, %v894
      %v896 = vshrl.u32 683565275, %v895
      %v897 = vshll.u32 683565275, %v894
      %v898 = vshrl.u32 2475754826, %v895
      %v899 = vor.u32 %v897, %v898
      %v900 = vshll.u32 2475754826, %v894
      %v901 = vshrl.u32 2131351028, %v895
      %v902 = vor.u32 %v900, %v901
      %v903 = vshll.u32 2131351028, %v894
      %v904 = vshrl.u32 2102212464, %v895
      %v905 = vor.u32 %v903, %v904
      %v906 = vshll.u32 2102212464, %v894
      %v907 = vshrl.u32 920167782, %v895
      %v908 = vor.u32 %v906, %v907
      %v909 = vshll.u32 920167782, %v894
      %v910 = vshrl.u32 1326507024, %v895
      %v911 = vor.u32 %v909, %v910
      %vm912 = vcmp.lt.s32.totalorder %v893, 1
      %vm913 = vcmp.lt.s32.totalorder %v893, 2
      %vm914 = vcmp.lt.s32.totalorder %v893, 3
      %vm915 = vcmp.lt.s32.totalorder %v893, 4
      %v916 = vsel %vm912, %v896, %v899
      %v917 = vsel %vm915, %v905, 2102212464
      %v918 = vsel %vm914, %v902, %v917
      %v919 = vsel %vm913, %v916, %v918
      %v920 = vsel %vm912, %v899, %v902
      %v921 = vsel %vm915, %v908, 920167782
      %v922 = vsel %vm914, %v905, %v921
      %v923 = vsel %vm913, %v920, %v922
      %v924 = vsel %vm912, %v902, %v905
      %v925 = vsel %vm915, %v911, 1326507024
      %v926 = vsel %vm914, %v908, %v925
      %v927 = vsel %vm913, %v924, %v926
      %v928 = vshll.u32 %v888, 8
      %v929 = vand.u32 %v928, 65535
      %v930 = vshrl.u32 %v928, 16
      %v931 = vand.u32 %v927, 65535
      %v932 = vshrl.u32 %v927, 16
      %v933 = vmul.u32 %v929, %v931
      %v934 = vmul.u32 %v929, %v932
      %v935 = vmul.u32 %v930, %v931
      %v936 = vmul.u32 %v930, %v932
      %v937 = vshll.u32 %v934, 16
      %v938 = vshrl.u32 %v934, 16
      %v939 = vshll.u32 %v935, 16
      %v940 = vshrl.u32 %v935, 16
      %vm941 = vc.u32 %v933, %v937
      %v942 = vsel %vm941, 1, 0
      %v943 = vadd.s32 %v933, %v937
      %v944 = vadd.s32 %v936, %v942
      %vm945 = vc.u32 %v943, %v939
      %v946 = vsel %vm945, 1, 0
      %v947 = vadd.s32 %v943, %v939
      %v948 = vadd.s32 %v944, %v946
      %v949 = vadd.s32 %v948, %v938
      %v950 = vadd.s32 %v949, %v940
      %v951 = vand.u32 %v928, 65535
      %v952 = vshrl.u32 %v928, 16
      %v953 = vand.u32 %v923, 65535
      %v954 = vshrl.u32 %v923, 16
      %v955 = vmul.u32 %v951, %v953
      %v956 = vmul.u32 %v951, %v954
      %v957 = vmul.u32 %v952, %v953
      %v958 = vmul.u32 %v952, %v954
      %v959 = vshll.u32 %v956, 16
      %v960 = vshrl.u32 %v956, 16
      %v961 = vshll.u32 %v957, 16
      %v962 = vshrl.u32 %v957, 16
      %vm963 = vc.u32 %v955, %v959
      %v964 = vsel %vm963, 1, 0
      %v965 = vadd.s32 %v955, %v959
      %v966 = vadd.s32 %v958, %v964
      %vm967 = vc.u32 %v965, %v961
      %v968 = vsel %vm967, 1, 0
      %v969 = vadd.s32 %v965, %v961
      %v970 = vadd.s32 %v966, %v968
      %v971 = vadd.s32 %v970, %v960
      %v972 = vadd.s32 %v971, %v962
      %v973 = vmul.u32 %v928, %v919
      %v974 = vadd.s32 %v950, %v969
      %vm975 = vc.u32 %v950, %v969
      %v976 = vadd.s32 %v972, 1
      %v977 = vsel %vm975, %v976, %v972
      %v978 = vadd.s32 %v973, %v977
      %v979 = vadd.s32 %v978, 536870912
      %v980 = vshrl.u32 %v979, 30
      %v981 = vshll.u32 %v980, 30
      %v982 = vsub.s32 %v978, %v981
      %vm983 = vcmp.lt.s32.totalorder %v982, 0
      %v984 = vsub.s32 0, %v982
      %v985 = vsel %vm983, %v984, %v982
      %v986 = vclz %v985
      %v987 = vsub.s32 %v986, 2
      %vm988 = vcmp.gt.s32.totalorder 0, %v987
      %v989 = vsel %vm988, 0, %v987
      %v990 = vsub.s32 32, %v989
      %v991 = vshll.u32 %v982, %v989
      %v992 = vshrl.u32 %v974, %v990
      %v993 = vor.u32 %v991, %v992
      %v994 = vsub.s32 4294967266, %v989
      %v995 = vadd.s32 %v994, 127
      %v996 = vshll.u32 %v995, 23
      %v997 = vor.u32 4788187, %v996
      %v998 = vand.u32 2147483647, %v997
      %v1000 = vcvt.s32.f32 %v993
      %v1001 = vmul.f32 %v1000, %v998
      %v1002 = vxor.u32 %v1001, 2147483648
      %v1003 = vsel %vm882, %v1002, %v1001
      %v1004 = vsub.s32 4, %v980
      %v1005 = vsel %vm882, %v1004, %v980
      %v1006 = vsel %vm881, %v357, %v1003
      %v1007 = vsel %vm881, 0, %v1005
      %v1008 = vmul.f32 %v1006, %v1006
      %v1009 = vmul.f32 %v1008, -0.001358992
      %v1010 = vadd.f32 %v1009, 0.041655596
      %v1011 = vmul.f32 %v1008, %v1010
      %v1012 = vadd.f32 %v1011, -0.4999988
      %v1013 = vmul.f32 %v1008, %v1012
      %v1014 = vadd.f32 1.0, %v1013
      %v1015 = vmul.f32 %v1006, %v1006
      %v1016 = vmul.f32 %v1015, -0.00019511016
      %v1017 = vadd.f32 %v1016, 0.008332121
      %v1018 = vmul.f32 %v1015, %v1017
      %v1019 = vadd.f32 %v1018, -0.16666654
      %v1020 = vmul.f32 %v1015, %v1019
      %v1021 = vadd.f32 %v1020, 1.0
      %v1022 = vmul.f32 %v1021, %v1006
      %vm1023 = vweird.f32 %v357
      %v1024 = vand.u32 %v1007, 3
      %vm1025 = vcmp.lt.s32.totalorder %v1024, 2
      %vm1026 = vcmp.eq.s32.totalorder %v1024, 0
      %v1027 = vxor.u32 %v1022, 2147483648
      %v1028 = vsel %vm1026, %v1014, %v1027
      %vm1029 = vcmp.eq.s32.totalorder %v1024, 2
      %v1030 = vxor.u32 %v1014, 2147483648
      %v1031 = vsel %vm1029, %v1030, %v1022
      %v1032 = vsel %vm1025, %v1028, %v1031
      %v1033 = vsel %vm1023, nan, %v1032
      %v1034 = vand.u32 2147483647, %v358
      %vm1035 = vcmp.le.f32.partialorder %v1034, 0.7853982
      %vm1036 = vcmp.lt.s32.totalorder %v358, 0
      %v1037 = vand.u32 %v358, 2139095040
      %v1038 = vshrl.u32 %v1037, 23
      %v1039 = vsub.s32 %v1038, 127
      %v1040 = vand.u32 2147483647, %v358
      %v1041 = vand.u32 %v1040, 8388607
      %v1042 = vor.u32 %v1041, 8388608
      %v1043 = vsub.s32 0, %v1042
      %v1044 = vadd.s32 %v1039, 1
      %vm1045 = vcmp.gt.s32.totalorder %v1044, 0
      %v1046 = vsel %vm1045, %v1044, 0
      %v1047 = vshrl.u32 %v1046, 5
      %v1048 = vand.u32 %v1046, 31
      %v1049 = vsub.s32 32, %v1048
      %v1050 = vshrl.u32 683565275, %v1049
      %v1051 = vshll.u32 683565275, %v1048
      %v1052 = vshrl.u32 2475754826, %v1049
      %v1053 = vor.u32 %v1051, %v1052
      %v1054 = vshll.u32 2475754826, %v1048
      %v1055 = vshrl.u32 2131351028, %v1049
      %v1056 = vor.u32 %v1054, %v1055
      %v1057 = vshll.u32 2131351028, %v1048
      %v1058 = vshrl.u32 2102212464, %v1049
      %v1059 = vor.u32 %v1057, %v1058
      %v1060 = vshll.u32 2102212464, %v1048
      %v1061 = vshrl.u32 920167782, %v1049
      %v1062 = vor.u32 %v1060, %v1061
      %v1063 = vshll.u32 920167782, %v1048
      %v1064 = vshrl.u32 1326507024, %v1049
      %v1065 = vor.u32 %v1063, %v1064
      %vm1066 = vcmp.lt.s32.totalorder %v1047, 1
      %vm1067 = vcmp.lt.s32.totalorder %v1047, 2
      %vm1068 = vcmp.lt.s32.totalorder %v1047, 3
      %vm1069 = vcmp.lt.s32.totalorder %v1047, 4
      %v1070 = vsel %vm1066, %v1050, %v1053
      %v1071 = vsel %vm1069, %v1059, 2102212464
      %v1072 = vsel %vm1068, %v1056, %v1071
      %v1073 = vsel %vm1067, %v1070, %v1072
      %v1074 = vsel %vm1066, %v1053, %v1056
      %v1075 = vsel %vm1069, %v1062, 920167782
      %v1076 = vsel %vm1068, %v1059, %v1075
      %v1077 = vsel %vm1067, %v1074, %v1076
      %v1078 = vsel %vm1066, %v1056, %v1059
      %v1079 = vsel %vm1069, %v1065, 1326507024
      %v1080 = vsel %vm1068, %v1062, %v1079
      %v1081 = vsel %vm1067, %v1078, %v1080
      %v1082 = vshll.u32 %v1042, 8
      %v1083 = vand.u32 %v1082, 65535
      %v1084 = vshrl.u32 %v1082, 16
      %v1085 = vand.u32 %v1081, 65535
      %v1086 = vshrl.u32 %v1081, 16
      %v1087 = vmul.u32 %v1083, %v1085
      %v1088 = vmul.u32 %v1083, %v1086
      %v1089 = vmul.u32 %v1084, %v1085
      %v1090 = vmul.u32 %v1084, %v1086
      %v1091 = vshll.u32 %v1088, 16
      %v1092 = vshrl.u32 %v1088, 16
      %v1093 = vshll.u32 %v1089, 16
      %v1094 = vshrl.u32 %v1089, 16
      %vm1095 = vc.u32 %v1087, %v1091
      %v1096 = vsel %vm1095, 1, 0
      %v1097 = vadd.s32 %v1087, %v1091
      %v1098 = vadd.s32 %v1090, %v1096
      %vm1099 = vc.u32 %v1097, %v1093
      %v1100 = vsel %vm1099, 1, 0
      %v1101 = vadd.s32 %v1097, %v1093
      %v1102 = vadd.s32 %v1098, %v1100
      %v1103 = vadd.s32 %v1102, %v1092
      %v1104 = vadd.s32 %v1103, %v1094
      %v1105 = vand.u32 %v1082, 65535
      %v1106 = vshrl.u32 %v1082, 16
      %v1107 = vand.u32 %v1077, 65535
      %v1108 = vshrl.u32 %v1077, 16
      %v1109 = vmul.u32 %v1105, %v1107
      %v1110 = vmul.u32 %v1105, %v1108
      %v1111 = vmul.u32 %v1106, %v1107
      %v1112 = vmul.u32 %v1106, %v1108
      %v1113 = vshll.u32 %v1110, 16
      %v1114 = vshrl.u32 %v1110, 16
      %v1115 = vshll.u32 %v1111, 16
      %v1116 = vshrl.u32 %v1111, 16
      %vm1117 = vc.u32 %v1109, %v1113
      %v1118 = vsel %vm1117, 1, 0
      %v1119 = vadd.s32 %v1109, %v1113
      %v1120 = vadd.s32 %v1112, %v1118
      %vm1121 = vc.u32 %v1119, %v1115
      %v1122 = vsel %vm1121, 1, 0
      %v1123 = vadd.s32 %v1119, %v1115
      %v1124 = vadd.s32 %v1120, %v1122
      %v1125 = vadd.s32 %v1124, %v1114
      %v1126 = vadd.s32 %v1125, %v1116
      %v1127 = vmul.u32 %v1082, %v1073
      %v1128 = vadd.s32 %v1104, %v1123
      %vm1129 = vc.u32 %v1104, %v1123
      %v1130 = vadd.s32 %v1126, 1
      %v1131 = vsel %vm1129, %v1130, %v1126
      %v1132 = vadd.s32 %v1127, %v1131
      %v1133 = vadd.s32 %v1132, 536870912
      %v1134 = vshrl.u32 %v1133, 30
      %v1135 = vshll.u32 %v1134, 30
      %v1136 = vsub.s32 %v1132, %v1135
      %vm1137 = vcmp.lt.s32.totalorder %v1136, 0
      %v1138 = vsub.s32 0, %v1136
      %v1139 = vsel %vm1137, %v1138, %v1136
      %v1140 = vclz %v1139
      %v1141 = vsub.s32 %v1140, 2
      %vm1142 = vcmp.gt.s32.totalorder 0, %v1141
      %v1143 = vsel %vm1142, 0, %v1141
      %v1144 = vsub.s32 32, %v1143
      %v1145 = vshll.u32 %v1136, %v1143
      %v1146 = vshrl.u32 %v1128, %v1144
      %v1147 = vor.u32 %v1145, %v1146
      %v1148 = vsub.s32 4294967266, %v1143
      %v1149 = vadd.s32 %v1148, 127
      %v1150 = vshll.u32 %v1149, 23
      %v1151 = vor.u32 4788187, %v1150
      %v1152 = vand.u32 2147483647, %v1151
      %v1154 = vcvt.s32.f32 %v1147
      %v1155 = vmul.f32 %v1154, %v1152
      %v1156 = vxor.u32 %v1155, 2147483648
      %v1157 = vsel %vm1036, %v1156, %v1155
      %v1158 = vsub.s32 4, %v1134
      %v1159 = vsel %vm1036, %v1158, %v1134
      %v1160 = vsel %vm1035, %v358, %v1157
      %v1161 = vsel %vm1035, 0, %v1159
      %v1162 = vmul.f32 %v1160, %v1160
      %v1163 = vmul.f32 %v1162, -0.001358992
      %v1164 = vadd.f32 %v1163, 0.041655596
      %v1165 = vmul.f32 %v1162, %v1164
      %v1166 = vadd.f32 %v1165, -0.4999988
      %v1167 = vmul.f32 %v1162, %v1166
      %v1168 = vadd.f32 1.0, %v1167
      %v1169 = vmul.f32 %v1160, %v1160
      %v1170 = vmul.f32 %v1169, -0.00019511016
      %v1171 = vadd.f32 %v1170, 0.008332121
      %v1172 = vmul.f32 %v1169, %v1171
      %v1173 = vadd.f32 %v1172, -0.16666654
      %v1174 = vmul.f32 %v1169, %v1173
      %v1175 = vadd.f32 %v1174, 1.0
      %v1176 = vmul.f32 %v1175, %v1160
      %vm1177 = vweird.f32 %v358
      %v1178 = vand.u32 %v1161, 3
      %vm1179 = vcmp.lt.s32.totalorder %v1178, 2
      %vm1180 = vcmp.eq.s32.totalorder %v1178, 0
      %v1181 = vxor.u32 %v1176, 2147483648
      %v1182 = vsel %vm1180, %v1168, %v1181
      %vm1183 = vcmp.eq.s32.totalorder %v1178, 2
      %v1184 = vxor.u32 %v1168, 2147483648
      %v1185 = vsel %vm1183, %v1184, %v1176
      %v1186 = vsel %vm1179, %v1182, %v1185
      %v1187 = vsel %vm1177, nan, %v1186
      %v1188 = vand.u32 2147483647, %v359
      %vm1189 = vcmp.le.f32.partialorder %v1188, 0.7853982
      %vm1190 = vcmp.lt.s32.totalorder %v359, 0
      %v1191 = vand.u32 %v359, 2139095040
      %v1192 = vshrl.u32 %v1191, 23
      %v1193 = vsub.s32 %v1192, 127
      %v1194 = vand.u32 2147483647, %v359
      %v1195 = vand.u32 %v1194, 8388607
      %v1196 = vor.u32 %v1195, 8388608
      %v1197 = vsub.s32 0, %v1196
      %v1198 = vadd.s32 %v1193, 1
      %vm1199 = vcmp.gt.s32.totalorder %v1198, 0
      %v1200 = vsel %vm1199, %v1198, 0
      %v1201 = vshrl.u32 %v1200, 5
      %v1202 = vand.u32 %v1200, 31
      %v1203 = vsub.s32 32, %v1202
      %v1204 = vshrl.u32 683565275, %v1203
      %v1205 = vshll.u32 683565275, %v1202
      %v1206 = vshrl.u32 2475754826, %v1203
      %v1207 = vor.u32 %v1205, %v1206
      %v1208 = vshll.u32 2475754826, %v1202
      %v1209 = vshrl.u32 2131351028, %v1203
      %v1210 = vor.u32 %v1208, %v1209
      %v1211 = vshll.u32 2131351028, %v1202
      %v1212 = vshrl.u32 2102212464, %v1203
      %v1213 = vor.u32 %v1211, %v1212
      %v1214 = vshll.u32 2102212464, %v1202
      %v1215 = vshrl.u32 920167782, %v1203
      %v1216 = vor.u32 %v1214, %v1215
      %v1217 = vshll.u32 920167782, %v1202
      %v1218 = vshrl.u32 1326507024, %v1203
      %v1219 = vor.u32 %v1217, %v1218
      %vm1220 = vcmp.lt.s32.totalorder %v1201, 1
      %vm1221 = vcmp.lt.s32.totalorder %v1201, 2
      %vm1222 = vcmp.lt.s32.totalorder %v1201, 3
      %vm1223 = vcmp.lt.s32.totalorder %v1201, 4
      %v1224 = vsel %vm1220, %v1204, %v1207
      %v1225 = vsel %vm1223, %v1213, 2102212464
      %v1226 = vsel %vm1222, %v1210, %v1225
      %v1227 = vsel %vm1221, %v1224, %v1226
      %v1228 = vsel %vm1220, %v1207, %v1210
      %v1229 = vsel %vm1223, %v1216, 920167782
      %v1230 = vsel %vm1222, %v1213, %v1229
      %v1231 = vsel %vm1221, %v1228, %v1230
      %v1232 = vsel %vm1220, %v1210, %v1213
      %v1233 = vsel %vm1223, %v1219, 1326507024
      %v1234 = vsel %vm1222, %v1216, %v1233
      %v1235 = vsel %vm1221, %v1232, %v1234
      %v1236 = vshll.u32 %v1196, 8
      %v1237 = vand.u32 %v1236, 65535
      %v1238 = vshrl.u32 %v1236, 16
      %v1239 = vand.u32 %v1235, 65535
      %v1240 = vshrl.u32 %v1235, 16
      %v1241 = vmul.u32 %v1237, %v1239
      %v1242 = vmul.u32 %v1237, %v1240
      %v1243 = vmul.u32 %v1238, %v1239
      %v1244 = vmul.u32 %v1238, %v1240
      %v1245 = vshll.u32 %v1242, 16
      %v1246 = vshrl.u32 %v1242, 16
      %v1247 = vshll.u32 %v1243, 16
      %v1248 = vshrl.u32 %v1243, 16
      %vm1249 = vc.u32 %v1241, %v1245
      %v1250 = vsel %vm1249, 1, 0
      %v1251 = vadd.s32 %v1241, %v1245
      %v1252 = vadd.s32 %v1244, %v1250
      %vm1253 = vc.u32 %v1251, %v1247
      %v1254 = vsel %vm1253, 1, 0
      %v1255 = vadd.s32 %v1251, %v1247
      %v1256 = vadd.s32 %v1252, %v1254
      %v1257 = vadd.s32 %v1256, %v1246
      %v1258 = vadd.s32 %v1257, %v1248
      %v1259 = vand.u32 %v1236, 65535
      %v1260 = vshrl.u32 %v1236, 16
      %v1261 = vand.u32 %v1231, 65535
      %v1262 = vshrl.u32 %v1231, 16
      %v1263 = vmul.u32 %v1259, %v1261
      %v1264 = vmul.u32 %v1259, %v1262
      %v1265 = vmul.u32 %v1260, %v1261
      %v1266 = vmul.u32 %v1260, %v1262
      %v1267 = vshll.u32 %v1264, 16
      %v1268 = vshrl.u32 %v1264, 16
      %v1269 = vshll.u32 %v1265, 16
      %v1270 = vshrl.u32 %v1265, 16
      %vm1271 = vc.u32 %v1263, %v1267
      %v1272 = vsel %vm1271, 1, 0
      %v1273 = vadd.s32 %v1263, %v1267
      %v1274 = vadd.s32 %v1266, %v1272
      %vm1275 = vc.u32 %v1273, %v1269
      %v1276 = vsel %vm1275, 1, 0
      %v1277 = vadd.s32 %v1273, %v1269
      %v1278 = vadd.s32 %v1274, %v1276
      %v1279 = vadd.s32 %v1278, %v1268
      %v1280 = vadd.s32 %v1279, %v1270
      %v1281 = vmul.u32 %v1236, %v1227
      %v1282 = vadd.s32 %v1258, %v1277
      %vm1283 = vc.u32 %v1258, %v1277
      %v1284 = vadd.s32 %v1280, 1
      %v1285 = vsel %vm1283, %v1284, %v1280
      %v1286 = vadd.s32 %v1281, %v1285
      %v1287 = vadd.s32 %v1286, 536870912
      %v1288 = vshrl.u32 %v1287, 30
      %v1289 = vshll.u32 %v1288, 30
      %v1290 = vsub.s32 %v1286, %v1289
      %vm1291 = vcmp.lt.s32.totalorder %v1290, 0
      %v1292 = vsub.s32 0, %v1290
      %v1293 = vsel %vm1291, %v1292, %v1290
      %v1294 = vclz %v1293
      %v1295 = vsub.s32 %v1294, 2
      %vm1296 = vcmp.gt.s32.totalorder 0, %v1295
      %v1297 = vsel %vm1296, 0, %v1295
      %v1298 = vsub.s32 32, %v1297
      %v1299 = vshll.u32 %v1290, %v1297
      %v1300 = vshrl.u32 %v1282, %v1298
      %v1301 = vor.u32 %v1299, %v1300
      %v1302 = vsub.s32 4294967266, %v1297
      %v1303 = vadd.s32 %v1302, 127
      %v1304 = vshll.u32 %v1303, 23
      %v1305 = vor.u32 4788187, %v1304
      %v1306 = vand.u32 2147483647, %v1305
      %v1308 = vcvt.s32.f32 %v1301
      %v1309 = vmul.f32 %v1308, %v1306
      %v1310 = vxor.u32 %v1309, 2147483648
      %v1311 = vsel %vm1190, %v1310, %v1309
      %v1312 = vsub.s32 4, %v1288
      %v1313 = vsel %vm1190, %v1312, %v1288
      %v1314 = vsel %vm1189, %v359, %v1311
      %v1315 = vsel %vm1189, 0, %v1313
      %v1316 = vmul.f32 %v1314, %v1314
      %v1317 = vmul.f32 %v1316, -0.001358992
      %v1318 = vadd.f32 %v1317, 0.041655596
      %v1319 = vmul.f32 %v1316, %v1318
      %v1320 = vadd.f32 %v1319, -0.4999988
      %v1321 = vmul.f32 %v1316, %v1320
      %v1322 = vadd.f32 1.0, %v1321
      %v1323 = vmul.f32 %v1314, %v1314
      %v1324 = vmul.f32 %v1323, -0.00019511016
      %v1325 = vadd.f32 %v1324, 0.008332121
      %v1326 = vmul.f32 %v1323, %v1325
      %v1327 = vadd.f32 %v1326, -0.16666654
      %v1328 = vmul.f32 %v1323, %v1327
      %v1329 = vadd.f32 %v1328, 1.0
      %v1330 = vmul.f32 %v1329, %v1314
      %vm1331 = vweird.f32 %v359
      %v1332 = vand.u32 %v1315, 3
      %vm1333 = vcmp.lt.s32.totalorder %v1332, 2
      %vm1334 = vcmp.eq.s32.totalorder %v1332, 0
      %v1335 = vxor.u32 %v1330, 2147483648
      %v1336 = vsel %vm1334, %v1322, %v1335
      %vm1337 = vcmp.eq.s32.totalorder %v1332, 2
      %v1338 = vxor.u32 %v1322, 2147483648
      %v1339 = vsel %vm1337, %v1338, %v1330
      %v1340 = vsel %vm1333, %v1336, %v1339
      %v1341 = vsel %vm1331, nan, %v1340
      %v1342 = vand.u32 2147483647, %v360
      %vm1343 = vcmp.le.f32.partialorder %v1342, 0.7853982
      %vm1344 = vcmp.lt.s32.totalorder %v360, 0
      %v1345 = vand.u32 %v360, 2139095040
      %v1346 = vshrl.u32 %v1345, 23
      %v1347 = vsub.s32 %v1346, 127
      %v1348 = vand.u32 2147483647, %v360
      %v1349 = vand.u32 %v1348, 8388607
      %v1350 = vor.u32 %v1349, 8388608
      %v1351 = vsub.s32 0, %v1350
      %v1352 = vadd.s32 %v1347, 1
      %vm1353 = vcmp.gt.s32.totalorder %v1352, 0
      %v1354 = vsel %vm1353, %v1352, 0
      %v1355 = vshrl.u32 %v1354, 5
      %v1356 = vand.u32 %v1354, 31
      %v1357 = vsub.s32 32, %v1356
      %v1358 = vshrl.u32 683565275, %v1357
      %v1359 = vshll.u32 683565275, %v1356
      %v1360 = vshrl.u32 2475754826, %v1357
      %v1361 = vor.u32 %v1359, %v1360
      %v1362 = vshll.u32 2475754826, %v1356
      %v1363 = vshrl.u32 2131351028, %v1357
      %v1364 = vor.u32 %v1362, %v1363
      %v1365 = vshll.u32 2131351028, %v1356
      %v1366 = vshrl.u32 2102212464, %v1357
      %v1367 = vor.u32 %v1365, %v1366
      %v1368 = vshll.u32 2102212464, %v1356
      %v1369 = vshrl.u32 920167782, %v1357
      %v1370 = vor.u32 %v1368, %v1369
      %v1371 = vshll.u32 920167782, %v1356
      %v1372 = vshrl.u32 1326507024, %v1357
      %v1373 = vor.u32 %v1371, %v1372
      %vm1374 = vcmp.lt.s32.totalorder %v1355, 1
      %vm1375 = vcmp.lt.s32.totalorder %v1355, 2
      %vm1376 = vcmp.lt.s32.totalorder %v1355, 3
      %vm1377 = vcmp.lt.s32.totalorder %v1355, 4
      %v1378 = vsel %vm1374, %v1358, %v1361
      %v1379 = vsel %vm1377, %v1367, 2102212464
      %v1380 = vsel %vm1376, %v1364, %v1379
      %v1381 = vsel %vm1375, %v1378, %v1380
      %v1382 = vsel %vm1374, %v1361, %v1364
      %v1383 = vsel %vm1377, %v1370, 920167782
      %v1384 = vsel %vm1376, %v1367, %v1383
      %v1385 = vsel %vm1375, %v1382, %v1384
      %v1386 = vsel %vm1374, %v1364, %v1367
      %v1387 = vsel %vm1377, %v1373, 1326507024
      %v1388 = vsel %vm1376, %v1370, %v1387
      %v1389 = vsel %vm1375, %v1386, %v1388
      %v1390 = vshll.u32 %v1350, 8
      %v1391 = vand.u32 %v1390, 65535
      %v1392 = vshrl.u32 %v1390, 16
      %v1393 = vand.u32 %v1389, 65535
      %v1394 = vshrl.u32 %v1389, 16
      %v1395 = vmul.u32 %v1391, %v1393
      %v1396 = vmul.u32 %v1391, %v1394
      %v1397 = vmul.u32 %v1392, %v1393
      %v1398 = vmul.u32 %v1392, %v1394
      %v1399 = vshll.u32 %v1396, 16
      %v1400 = vshrl.u32 %v1396, 16
      %v1401 = vshll.u32 %v1397, 16
      %v1402 = vshrl.u32 %v1397, 16
      %vm1403 = vc.u32 %v1395, %v1399
      %v1404 = vsel %vm1403, 1, 0
      %v1405 = vadd.s32 %v1395, %v1399
      %v1406 = vadd.s32 %v1398, %v1404
      %vm1407 = vc.u32 %v1405, %v1401
      %v1408 = vsel %vm1407, 1, 0
      %v1409 = vadd.s32 %v1405, %v1401
      %v1410 = vadd.s32 %v1406, %v1408
      %v1411 = vadd.s32 %v1410, %v1400
      %v1412 = vadd.s32 %v1411, %v1402
      %v1413 = vand.u32 %v1390, 65535
      %v1414 = vshrl.u32 %v1390, 16
      %v1415 = vand.u32 %v1385, 65535
      %v1416 = vshrl.u32 %v1385, 16
      %v1417 = vmul.u32 %v1413, %v1415
      %v1418 = vmul.u32 %v1413, %v1416
      %v1419 = vmul.u32 %v1414, %v1415
      %v1420 = vmul.u32 %v1414, %v1416
      %v1421 = vshll.u32 %v1418, 16
      %v1422 = vshrl.u32 %v1418, 16
      %v1423 = vshll.u32 %v1419, 16
      %v1424 = vshrl.u32 %v1419, 16
      %vm1425 = vc.u32 %v1417, %v1421
      %v1426 = vsel %vm1425, 1, 0
      %v1427 = vadd.s32 %v1417, %v1421
      %v1428 = vadd.s32 %v1420, %v1426
      %vm1429 = vc.u32 %v1427, %v1423
      %v1430 = vsel %vm1429, 1, 0
      %v1431 = vadd.s32 %v1427, %v1423
      %v1432 = vadd.s32 %v1428, %v1430
      %v1433 = vadd.s32 %v1432, %v1422
      %v1434 = vadd.s32 %v1433, %v1424
      %v1435 = vmul.u32 %v1390, %v1381
      %v1436 = vadd.s32 %v1412, %v1431
      %vm1437 = vc.u32 %v1412, %v1431
      %v1438 = vadd.s32 %v1434, 1
      %v1439 = vsel %vm1437, %v1438, %v1434
      %v1440 = vadd.s32 %v1435, %v1439
      %v1441 = vadd.s32 %v1440, 536870912
      %v1442 = vshrl.u32 %v1441, 30
      %v1443 = vshll.u32 %v1442, 30
      %v1444 = vsub.s32 %v1440, %v1443
      %vm1445 = vcmp.lt.s32.totalorder %v1444, 0
      %v1446 = vsub.s32 0, %v1444
      %v1447 = vsel %vm1445, %v1446, %v1444
      %v1448 = vclz %v1447
      %v1449 = vsub.s32 %v1448, 2
      %vm1450 = vcmp.gt.s32.totalorder 0, %v1449
      %v1451 = vsel %vm1450, 0, %v1449
      %v1452 = vsub.s32 32, %v1451
      %v1453 = vshll.u32 %v1444, %v1451
      %v1454 = vshrl.u32 %v1436, %v1452
      %v1455 = vor.u32 %v1453, %v1454
      %v1456 = vsub.s32 4294967266, %v1451
      %v1457 = vadd.s32 %v1456, 127
      %v1458 = vshll.u32 %v1457, 23
      %v1459 = vor.u32 4788187, %v1458
      %v1460 = vand.u32 2147483647, %v1459
      %v1462 = vcvt.s32.f32 %v1455
      %v1463 = vmul.f32 %v1462, %v1460
      %v1464 = vxor.u32 %v1463, 2147483648
      %v1465 = vsel %vm1344, %v1464, %v1463
      %v1466 = vsub.s32 4, %v1442
      %v1467 = vsel %vm1344, %v1466, %v1442
      %v1468 = vsel %vm1343, %v360, %v1465
      %v1469 = vsel %vm1343, 0, %v1467
      %v1470 = vmul.f32 %v1468, %v1468
      %v1471 = vmul.f32 %v1470, -0.001358992
      %v1472 = vadd.f32 %v1471, 0.041655596
      %v1473 = vmul.f32 %v1470, %v1472
      %v1474 = vadd.f32 %v1473, -0.4999988
      %v1475 = vmul.f32 %v1470, %v1474
      %v1476 = vadd.f32 1.0, %v1475
      %v1477 = vmul.f32 %v1468, %v1468
      %v1478 = vmul.f32 %v1477, -0.00019511016
      %v1479 = vadd.f32 %v1478, 0.008332121
      %v1480 = vmul.f32 %v1477, %v1479
      %v1481 = vadd.f32 %v1480, -0.16666654
      %v1482 = vmul.f32 %v1477, %v1481
      %v1483 = vadd.f32 %v1482, 1.0
      %v1484 = vmul.f32 %v1483, %v1468
      %vm1485 = vweird.f32 %v360
      %v1486 = vand.u32 %v1469, 3
      %vm1487 = vcmp.lt.s32.totalorder %v1486, 2
      %vm1488 = vcmp.eq.s32.totalorder %v1486, 0
      %v1489 = vxor.u32 %v1484, 2147483648
      %v1490 = vsel %vm1488, %v1476, %v1489
      %vm1491 = vcmp.eq.s32.totalorder %v1486, 2
      %v1492 = vxor.u32 %v1476, 2147483648
      %v1493 = vsel %vm1491, %v1492, %v1484
      %v1494 = vsel %vm1487, %v1490, %v1493
      %v1495 = vsel %vm1485, nan, %v1494
      %v1496 = vand.u32 2147483647, %v361
      %vm1497 = vcmp.le.f32.partialorder %v1496, 0.7853982
      %vm1498 = vcmp.lt.s32.totalorder %v361, 0
      %v1499 = vand.u32 %v361, 2139095040
      %v1500 = vshrl.u32 %v1499, 23
      %v1501 = vsub.s32 %v1500, 127
      %v1502 = vand.u32 2147483647, %v361
      %v1503 = vand.u32 %v1502, 8388607
      %v1504 = vor.u32 %v1503, 8388608
      %v1505 = vsub.s32 0, %v1504
      %v1506 = vadd.s32 %v1501, 1
      %vm1507 = vcmp.gt.s32.totalorder %v1506, 0
      %v1508 = vsel %vm1507, %v1506, 0
      %v1509 = vshrl.u32 %v1508, 5
      %v1510 = vand.u32 %v1508, 31
      %v1511 = vsub.s32 32, %v1510
      %v1512 = vshrl.u32 683565275, %v1511
      %v1513 = vshll.u32 683565275, %v1510
      %v1514 = vshrl.u32 2475754826, %v1511
      %v1515 = vor.u32 %v1513, %v1514
      %v1516 = vshll.u32 2475754826, %v1510
      %v1517 = vshrl.u32 2131351028, %v1511
      %v1518 = vor.u32 %v1516, %v1517
      %v1519 = vshll.u32 2131351028, %v1510
      %v1520 = vshrl.u32 2102212464, %v1511
      %v1521 = vor.u32 %v1519, %v1520
      %v1522 = vshll.u32 2102212464, %v1510
      %v1523 = vshrl.u32 920167782, %v1511
      %v1524 = vor.u32 %v1522, %v1523
      %v1525 = vshll.u32 920167782, %v1510
      %v1526 = vshrl.u32 1326507024, %v1511
      %v1527 = vor.u32 %v1525, %v1526
      %vm1528 = vcmp.lt.s32.totalorder %v1509, 1
      %vm1529 = vcmp.lt.s32.totalorder %v1509, 2
      %vm1530 = vcmp.lt.s32.totalorder %v1509, 3
      %vm1531 = vcmp.lt.s32.totalorder %v1509, 4
      %v1532 = vsel %vm1528, %v1512, %v1515
      %v1533 = vsel %vm1531, %v1521, 2102212464
      %v1534 = vsel %vm1530, %v1518, %v1533
      %v1535 = vsel %vm1529, %v1532, %v1534
      %v1536 = vsel %vm1528, %v1515, %v1518
      %v1537 = vsel %vm1531, %v1524, 920167782
      %v1538 = vsel %vm1530, %v1521, %v1537
      %v1539 = vsel %vm1529, %v1536, %v1538
      %v1540 = vsel %vm1528, %v1518, %v1521
      %v1541 = vsel %vm1531, %v1527, 1326507024
      %v1542 = vsel %vm1530, %v1524, %v1541
      %v1543 = vsel %vm1529, %v1540, %v1542
      %v1544 = vshll.u32 %v1504, 8
      %v1545 = vand.u32 %v1544, 65535
      %v1546 = vshrl.u32 %v1544, 16
      %v1547 = vand.u32 %v1543, 65535
      %v1548 = vshrl.u32 %v1543, 16
      %v1549 = vmul.u32 %v1545, %v1547
      %v1550 = vmul.u32 %v1545, %v1548
      %v1551 = vmul.u32 %v1546, %v1547
      %v1552 = vmul.u32 %v1546, %v1548
      %v1553 = vshll.u32 %v1550, 16
      %v1554 = vshrl.u32 %v1550, 16
      %v1555 = vshll.u32 %v1551, 16
      %v1556 = vshrl.u32 %v1551, 16
      %vm1557 = vc.u32 %v1549, %v1553
      %v1558 = vsel %vm1557, 1, 0
      %v1559 = vadd.s32 %v1549, %v1553
      %v1560 = vadd.s32 %v1552, %v1558
      %vm1561 = vc.u32 %v1559, %v1555
      %v1562 = vsel %vm1561, 1, 0
      %v1563 = vadd.s32 %v1559, %v1555
      %v1564 = vadd.s32 %v1560, %v1562
      %v1565 = vadd.s32 %v1564, %v1554
      %v1566 = vadd.s32 %v1565, %v1556
      %v1567 = vand.u32 %v1544, 65535
      %v1568 = vshrl.u32 %v1544, 16
      %v1569 = vand.u32 %v1539, 65535
      %v1570 = vshrl.u32 %v1539, 16
      %v1571 = vmul.u32 %v1567, %v1569
      %v1572 = vmul.u32 %v1567, %v1570
      %v1573 = vmul.u32 %v1568, %v1569
      %v1574 = vmul.u32 %v1568, %v1570
      %v1575 = vshll.u32 %v1572, 16
      %v1576 = vshrl.u32 %v1572, 16
      %v1577 = vshll.u32 %v1573, 16
      %v1578 = vshrl.u32 %v1573, 16
      %vm1579 = vc.u32 %v1571, %v1575
      %v1580 = vsel %vm1579, 1, 0
      %v1581 = vadd.s32 %v1571, %v1575
      %v1582 = vadd.s32 %v1574, %v1580
      %vm1583 = vc.u32 %v1581, %v1577
      %v1584 = vsel %vm1583, 1, 0
      %v1585 = vadd.s32 %v1581, %v1577
      %v1586 = vadd.s32 %v1582, %v1584
      %v1587 = vadd.s32 %v1586, %v1576
      %v1588 = vadd.s32 %v1587, %v1578
      %v1589 = vmul.u32 %v1544, %v1535
      %v1590 = vadd.s32 %v1566, %v1585
      %vm1591 = vc.u32 %v1566, %v1585
      %v1592 = vadd.s32 %v1588, 1
      %v1593 = vsel %vm1591, %v1592, %v1588
      %v1594 = vadd.s32 %v1589, %v1593
      %v1595 = vadd.s32 %v1594, 536870912
      %v1596 = vshrl.u32 %v1595, 30
      %v1597 = vshll.u32 %v1596, 30
      %v1598 = vsub.s32 %v1594, %v1597
      %vm1599 = vcmp.lt.s32.totalorder %v1598, 0
      %v1600 = vsub.s32 0, %v1598
      %v1601 = vsel %vm1599, %v1600, %v1598
      %v1602 = vclz %v1601
      %v1603 = vsub.s32 %v1602, 2
      %vm1604 = vcmp.gt.s32.totalorder 0, %v1603
      %v1605 = vsel %vm1604, 0, %v1603
      %v1606 = vsub.s32 32, %v1605
      %v1607 = vshll.u32 %v1598, %v1605
      %v1608 = vshrl.u32 %v1590, %v1606
      %v1609 = vor.u32 %v1607, %v1608
      %v1610 = vsub.s32 4294967266, %v1605
      %v1611 = vadd.s32 %v1610, 127
      %v1612 = vshll.u32 %v1611, 23
      %v1613 = vor.u32 4788187, %v1612
      %v1614 = vand.u32 2147483647, %v1613
      %v1616 = vcvt.s32.f32 %v1609
      %v1617 = vmul.f32 %v1616, %v1614
      %v1618 = vxor.u32 %v1617, 2147483648
      %v1619 = vsel %vm1498, %v1618, %v1617
      %v1620 = vsub.s32 4, %v1596
      %v1621 = vsel %vm1498, %v1620, %v1596
      %v1622 = vsel %vm1497, %v361, %v1619
      %v1623 = vsel %vm1497, 0, %v1621
      %v1624 = vmul.f32 %v1622, %v1622
      %v1625 = vmul.f32 %v1624, -0.001358992
      %v1626 = vadd.f32 %v1625, 0.041655596
      %v1627 = vmul.f32 %v1624, %v1626
      %v1628 = vadd.f32 %v1627, -0.4999988
      %v1629 = vmul.f32 %v1624, %v1628
      %v1630 = vadd.f32 1.0, %v1629
      %v1631 = vmul.f32 %v1622, %v1622
      %v1632 = vmul.f32 %v1631, -0.00019511016
      %v1633 = vadd.f32 %v1632, 0.008332121
      %v1634 = vmul.f32 %v1631, %v1633
      %v1635 = vadd.f32 %v1634, -0.16666654
      %v1636 = vmul.f32 %v1631, %v1635
      %v1637 = vadd.f32 %v1636, 1.0
      %v1638 = vmul.f32 %v1637, %v1622
      %vm1639 = vweird.f32 %v361
      %v1640 = vand.u32 %v1623, 3
      %vm1641 = vcmp.lt.s32.totalorder %v1640, 2
      %vm1642 = vcmp.eq.s32.totalorder %v1640, 0
      %v1643 = vxor.u32 %v1638, 2147483648
      %v1644 = vsel %vm1642, %v1630, %v1643
      %vm1645 = vcmp.eq.s32.totalorder %v1640, 2
      %v1646 = vxor.u32 %v1630, 2147483648
      %v1647 = vsel %vm1645, %v1646, %v1638
      %v1648 = vsel %vm1641, %v1644, %v1647
      %v1649 = vsel %vm1639, nan, %v1648
      %v1650 = vand.u32 2147483647, %v362
      %vm1651 = vcmp.le.f32.partialorder %v1650, 0.7853982
      %vm1652 = vcmp.lt.s32.totalorder %v362, 0
      %v1653 = vand.u32 %v362, 2139095040
      %v1654 = vshrl.u32 %v1653, 23
      %v1655 = vsub.s32 %v1654, 127
      %v1656 = vand.u32 2147483647, %v362
      %v1657 = vand.u32 %v1656, 8388607
      %v1658 = vor.u32 %v1657, 8388608
      %v1659 = vsub.s32 0, %v1658
      %v1660 = vadd.s32 %v1655, 1
      %vm1661 = vcmp.gt.s32.totalorder %v1660, 0
      %v1662 = vsel %vm1661, %v1660, 0
      %v1663 = vshrl.u32 %v1662, 5
      %v1664 = vand.u32 %v1662, 31
      %v1665 = vsub.s32 32, %v1664
      %v1666 = vshrl.u32 683565275, %v1665
      %v1667 = vshll.u32 683565275, %v1664
      %v1668 = vshrl.u32 2475754826, %v1665
      %v1669 = vor.u32 %v1667, %v1668
      %v1670 = vshll.u32 2475754826, %v1664
      %v1671 = vshrl.u32 2131351028, %v1665
      %v1672 = vor.u32 %v1670, %v1671
      %v1673 = vshll.u32 2131351028, %v1664
      %v1674 = vshrl.u32 2102212464, %v1665
      %v1675 = vor.u32 %v1673, %v1674
      %v1676 = vshll.u32 2102212464, %v1664
      %v1677 = vshrl.u32 920167782, %v1665
      %v1678 = vor.u32 %v1676, %v1677
      %v1679 = vshll.u32 920167782, %v1664
      %v1680 = vshrl.u32 1326507024, %v1665
      %v1681 = vor.u32 %v1679, %v1680
      %vm1682 = vcmp.lt.s32.totalorder %v1663, 1
      %vm1683 = vcmp.lt.s32.totalorder %v1663, 2
      %vm1684 = vcmp.lt.s32.totalorder %v1663, 3
      %vm1685 = vcmp.lt.s32.totalorder %v1663, 4
      %v1686 = vsel %vm1682, %v1666, %v1669
      %v1687 = vsel %vm1685, %v1675, 2102212464
      %v1688 = vsel %vm1684, %v1672, %v1687
      %v1689 = vsel %vm1683, %v1686, %v1688
      %v1690 = vsel %vm1682, %v1669, %v1672
      %v1691 = vsel %vm1685, %v1678, 920167782
      %v1692 = vsel %vm1684, %v1675, %v1691
      %v1693 = vsel %vm1683, %v1690, %v1692
      %v1694 = vsel %vm1682, %v1672, %v1675
      %v1695 = vsel %vm1685, %v1681, 1326507024
      %v1696 = vsel %vm1684, %v1678, %v1695
      %v1697 = vsel %vm1683, %v1694, %v1696
      %v1698 = vshll.u32 %v1658, 8
      %v1699 = vand.u32 %v1698, 65535
      %v1700 = vshrl.u32 %v1698, 16
      %v1701 = vand.u32 %v1697, 65535
      %v1702 = vshrl.u32 %v1697, 16
      %v1703 = vmul.u32 %v1699, %v1701
      %v1704 = vmul.u32 %v1699, %v1702
      %v1705 = vmul.u32 %v1700, %v1701
      %v1706 = vmul.u32 %v1700, %v1702
      %v1707 = vshll.u32 %v1704, 16
      %v1708 = vshrl.u32 %v1704, 16
      %v1709 = vshll.u32 %v1705, 16
      %v1710 = vshrl.u32 %v1705, 16
      %vm1711 = vc.u32 %v1703, %v1707
      %v1712 = vsel %vm1711, 1, 0
      %v1713 = vadd.s32 %v1703, %v1707
      %v1714 = vadd.s32 %v1706, %v1712
      %vm1715 = vc.u32 %v1713, %v1709
      %v1716 = vsel %vm1715, 1, 0
      %v1717 = vadd.s32 %v1713, %v1709
      %v1718 = vadd.s32 %v1714, %v1716
      %v1719 = vadd.s32 %v1718, %v1708
      %v1720 = vadd.s32 %v1719, %v1710
      %v1721 = vand.u32 %v1698, 65535
      %v1722 = vshrl.u32 %v1698, 16
      %v1723 = vand.u32 %v1693, 65535
      %v1724 = vshrl.u32 %v1693, 16
      %v1725 = vmul.u32 %v1721, %v1723
      %v1726 = vmul.u32 %v1721, %v1724
      %v1727 = vmul.u32 %v1722, %v1723
      %v1728 = vmul.u32 %v1722, %v1724
      %v1729 = vshll.u32 %v1726, 16
      %v1730 = vshrl.u32 %v1726, 16
      %v1731 = vshll.u32 %v1727, 16
      %v1732 = vshrl.u32 %v1727, 16
      %vm1733 = vc.u32 %v1725, %v1729
      %v1734 = vsel %vm1733, 1, 0
      %v1735 = vadd.s32 %v1725, %v1729
      %v1736 = vadd.s32 %v1728, %v1734
      %vm1737 = vc.u32 %v1735, %v1731
      %v1738 = vsel %vm1737, 1, 0
      %v1739 = vadd.s32 %v1735, %v1731
      %v1740 = vadd.s32 %v1736, %v1738
      %v1741 = vadd.s32 %v1740, %v1730
      %v1742 = vadd.s32 %v1741, %v1732
      %v1743 = vmul.u32 %v1698, %v1689
      %v1744 = vadd.s32 %v1720, %v1739
      %vm1745 = vc.u32 %v1720, %v1739
      %v1746 = vadd.s32 %v1742, 1
      %v1747 = vsel %vm1745, %v1746, %v1742
      %v1748 = vadd.s32 %v1743, %v1747
      %v1749 = vadd.s32 %v1748, 536870912
      %v1750 = vshrl.u32 %v1749, 30
      %v1751 = vshll.u32 %v1750, 30
      %v1752 = vsub.s32 %v1748, %v1751
      %vm1753 = vcmp.lt.s32.totalorder %v1752, 0
      %v1754 = vsub.s32 0, %v1752
      %v1755 = vsel %vm1753, %v1754, %v1752
      %v1756 = vclz %v1755
      %v1757 = vsub.s32 %v1756, 2
      %vm1758 = vcmp.gt.s32.totalorder 0, %v1757
      %v1759 = vsel %vm1758, 0, %v1757
      %v1760 = vsub.s32 32, %v1759
      %v1761 = vshll.u32 %v1752, %v1759
      %v1762 = vshrl.u32 %v1744, %v1760
      %v1763 = vor.u32 %v1761, %v1762
      %v1764 = vsub.s32 4294967266, %v1759
      %v1765 = vadd.s32 %v1764, 127
      %v1766 = vshll.u32 %v1765, 23
      %v1767 = vor.u32 4788187, %v1766
      %v1768 = vand.u32 2147483647, %v1767
      %v1770 = vcvt.s32.f32 %v1763
      %v1771 = vmul.f32 %v1770, %v1768
      %v1772 = vxor.u32 %v1771, 2147483648
      %v1773 = vsel %vm1652, %v1772, %v1771
      %v1774 = vsub.s32 4, %v1750
      %v1775 = vsel %vm1652, %v1774, %v1750
      %v1776 = vsel %vm1651, %v362, %v1773
      %v1777 = vsel %vm1651, 0, %v1775
      %v1778 = vmul.f32 %v1776, %v1776
      %v1779 = vmul.f32 %v1778, -0.001358992
      %v1780 = vadd.f32 %v1779, 0.041655596
      %v1781 = vmul.f32 %v1778, %v1780
      %v1782 = vadd.f32 %v1781, -0.4999988
      %v1783 = vmul.f32 %v1778, %v1782
      %v1784 = vadd.f32 1.0, %v1783
      %v1785 = vmul.f32 %v1776, %v1776
      %v1786 = vmul.f32 %v1785, -0.00019511016
      %v1787 = vadd.f32 %v1786, 0.008332121
      %v1788 = vmul.f32 %v1785, %v1787
      %v1789 = vadd.f32 %v1788, -0.16666654
      %v1790 = vmul.f32 %v1785, %v1789
      %v1791 = vadd.f32 %v1790, 1.0
      %v1792 = vmul.f32 %v1791, %v1776
      %vm1793 = vweird.f32 %v362
      %v1794 = vand.u32 %v1777, 3
      %vm1795 = vcmp.lt.s32.totalorder %v1794, 2
      %vm1796 = vcmp.eq.s32.totalorder %v1794, 0
      %v1797 = vxor.u32 %v1792, 2147483648
      %v1798 = vsel %vm1796, %v1784, %v1797
      %vm1799 = vcmp.eq.s32.totalorder %v1794, 2
      %v1800 = vxor.u32 %v1784, 2147483648
      %v1801 = vsel %vm1799, %v1800, %v1792
      %v1802 = vsel %vm1795, %v1798, %v1801
      %v1803 = vsel %vm1793, nan, %v1802
      %v1804 = vand.u32 2147483647, %v363
      %vm1805 = vcmp.le.f32.partialorder %v1804, 0.7853982
      %vm1806 = vcmp.lt.s32.totalorder %v363, 0
      %v1807 = vand.u32 %v363, 2139095040
      %v1808 = vshrl.u32 %v1807, 23
      %v1809 = vsub.s32 %v1808, 127
      %v1810 = vand.u32 2147483647, %v363
      %v1811 = vand.u32 %v1810, 8388607
      %v1812 = vor.u32 %v1811, 8388608
      %v1813 = vsub.s32 0, %v1812
      %v1814 = vadd.s32 %v1809, 1
      %vm1815 = vcmp.gt.s32.totalorder %v1814, 0
      %v1816 = vsel %vm1815, %v1814, 0
      %v1817 = vshrl.u32 %v1816, 5
      %v1818 = vand.u32 %v1816, 31
      %v1819 = vsub.s32 32, %v1818
      %v1820 = vshrl.u32 683565275, %v1819
      %v1821 = vshll.u32 683565275, %v1818
      %v1822 = vshrl.u32 2475754826, %v1819
      %v1823 = vor.u32 %v1821, %v1822
      %v1824 = vshll.u32 2475754826, %v1818
      %v1825 = vshrl.u32 2131351028, %v1819
      %v1826 = vor.u32 %v1824, %v1825
      %v1827 = vshll.u32 2131351028, %v1818
      %v1828 = vshrl.u32 2102212464, %v1819
      %v1829 = vor.u32 %v1827, %v1828
      %v1830 = vshll.u32 2102212464, %v1818
      %v1831 = vshrl.u32 920167782, %v1819
      %v1832 = vor.u32 %v1830, %v1831
      %v1833 = vshll.u32 920167782, %v1818
      %v1834 = vshrl.u32 1326507024, %v1819
      %v1835 = vor.u32 %v1833, %v1834
      %vm1836 = vcmp.lt.s32.totalorder %v1817, 1
      %vm1837 = vcmp.lt.s32.totalorder %v1817, 2
      %vm1838 = vcmp.lt.s32.totalorder %v1817, 3
      %vm1839 = vcmp.lt.s32.totalorder %v1817, 4
      %v1840 = vsel %vm1836, %v1820, %v1823
      %v1841 = vsel %vm1839, %v1829, 2102212464
      %v1842 = vsel %vm1838, %v1826, %v1841
      %v1843 = vsel %vm1837, %v1840, %v1842
      %v1844 = vsel %vm1836, %v1823, %v1826
      %v1845 = vsel %vm1839, %v1832, 920167782
      %v1846 = vsel %vm1838, %v1829, %v1845
      %v1847 = vsel %vm1837, %v1844, %v1846
      %v1848 = vsel %vm1836, %v1826, %v1829
      %v1849 = vsel %vm1839, %v1835, 1326507024
      %v1850 = vsel %vm1838, %v1832, %v1849
      %v1851 = vsel %vm1837, %v1848, %v1850
      %v1852 = vshll.u32 %v1812, 8
      %v1853 = vand.u32 %v1852, 65535
      %v1854 = vshrl.u32 %v1852, 16
      %v1855 = vand.u32 %v1851, 65535
      %v1856 = vshrl.u32 %v1851, 16
      %v1857 = vmul.u32 %v1853, %v1855
      %v1858 = vmul.u32 %v1853, %v1856
      %v1859 = vmul.u32 %v1854, %v1855
      %v1860 = vmul.u32 %v1854, %v1856
      %v1861 = vshll.u32 %v1858, 16
      %v1862 = vshrl.u32 %v1858, 16
      %v1863 = vshll.u32 %v1859, 16
      %v1864 = vshrl.u32 %v1859, 16
      %vm1865 = vc.u32 %v1857, %v1861
      %v1866 = vsel %vm1865, 1, 0
      %v1867 = vadd.s32 %v1857, %v1861
      %v1868 = vadd.s32 %v1860, %v1866
      %vm1869 = vc.u32 %v1867, %v1863
      %v1870 = vsel %vm1869, 1, 0
      %v1871 = vadd.s32 %v1867, %v1863
      %v1872 = vadd.s32 %v1868, %v1870
      %v1873 = vadd.s32 %v1872, %v1862
      %v1874 = vadd.s32 %v1873, %v1864
      %v1875 = vand.u32 %v1852, 65535
      %v1876 = vshrl.u32 %v1852, 16
      %v1877 = vand.u32 %v1847, 65535
      %v1878 = vshrl.u32 %v1847, 16
      %v1879 = vmul.u32 %v1875, %v1877
      %v1880 = vmul.u32 %v1875, %v1878
      %v1881 = vmul.u32 %v1876, %v1877
      %v1882 = vmul.u32 %v1876, %v1878
      %v1883 = vshll.u32 %v1880, 16
      %v1884 = vshrl.u32 %v1880, 16
      %v1885 = vshll.u32 %v1881, 16
      %v1886 = vshrl.u32 %v1881, 16
      %vm1887 = vc.u32 %v1879, %v1883
      %v1888 = vsel %vm1887, 1, 0
      %v1889 = vadd.s32 %v1879, %v1883
      %v1890 = vadd.s32 %v1882, %v1888
      %vm1891 = vc.u32 %v1889, %v1885
      %v1892 = vsel %vm1891, 1, 0
      %v1893 = vadd.s32 %v1889, %v1885
      %v1894 = vadd.s32 %v1890, %v1892
      %v1895 = vadd.s32 %v1894, %v1884
      %v1896 = vadd.s32 %v1895, %v1886
      %v1897 = vmul.u32 %v1852, %v1843
      %v1898 = vadd.s32 %v1874, %v1893
      %vm1899 = vc.u32 %v1874, %v1893
      %v1900 = vadd.s32 %v1896, 1
      %v1901 = vsel %vm1899, %v1900, %v1896
      %v1902 = vadd.s32 %v1897, %v1901
      %v1903 = vadd.s32 %v1902, 536870912
      %v1904 = vshrl.u32 %v1903, 30
      %v1905 = vshll.u32 %v1904, 30
      %v1906 = vsub.s32 %v1902, %v1905
      %vm1907 = vcmp.lt.s32.totalorder %v1906, 0
      %v1908 = vsub.s32 0, %v1906
      %v1909 = vsel %vm1907, %v1908, %v1906
      %v1910 = vclz %v1909
      %v1911 = vsub.s32 %v1910, 2
      %vm1912 = vcmp.gt.s32.totalorder 0, %v1911
      %v1913 = vsel %vm1912, 0, %v1911
      %v1914 = vsub.s32 32, %v1913
      %v1915 = vshll.u32 %v1906, %v1913
      %v1916 = vshrl.u32 %v1898, %v1914
      %v1917 = vor.u32 %v1915, %v1916
      %v1918 = vsub.s32 4294967266, %v1913
      %v1919 = vadd.s32 %v1918, 127
      %v1920 = vshll.u32 %v1919, 23
      %v1921 = vor.u32 4788187, %v1920
      %v1922 = vand.u32 2147483647, %v1921
      %v1924 = vcvt.s32.f32 %v1917
      %v1925 = vmul.f32 %v1924, %v1922
      %v1926 = vxor.u32 %v1925, 2147483648
      %v1927 = vsel %vm1806, %v1926, %v1925
      %v1928 = vsub.s32 4, %v1904
      %v1929 = vsel %vm1806, %v1928, %v1904
      %v1930 = vsel %vm1805, %v363, %v1927
      %v1931 = vsel %vm1805, 0, %v1929
      %v1932 = vmul.f32 %v1930, %v1930
      %v1933 = vmul.f32 %v1932, -0.001358992
      %v1934 = vadd.f32 %v1933, 0.041655596
      %v1935 = vmul.f32 %v1932, %v1934
      %v1936 = vadd.f32 %v1935, -0.4999988
      %v1937 = vmul.f32 %v1932, %v1936
      %v1938 = vadd.f32 1.0, %v1937
      %v1939 = vmul.f32 %v1930, %v1930
      %v1940 = vmul.f32 %v1939, -0.00019511016
      %v1941 = vadd.f32 %v1940, 0.008332121
      %v1942 = vmul.f32 %v1939, %v1941
      %v1943 = vadd.f32 %v1942, -0.16666654
      %v1944 = vmul.f32 %v1939, %v1943
      %v1945 = vadd.f32 %v1944, 1.0
      %v1946 = vmul.f32 %v1945, %v1930
      %vm1947 = vweird.f32 %v363
      %v1948 = vand.u32 %v1931, 3
      %vm1949 = vcmp.lt.s32.totalorder %v1948, 2
      %vm1950 = vcmp.eq.s32.totalorder %v1948, 0
      %v1951 = vxor.u32 %v1946, 2147483648
      %v1952 = vsel %vm1950, %v1938, %v1951
      %vm1953 = vcmp.eq.s32.totalorder %v1948, 2
      %v1954 = vxor.u32 %v1938, 2147483648
      %v1955 = vsel %vm1953, %v1954, %v1946
      %v1956 = vsel %vm1949, %v1952, %v1955
      %v1957 = vsel %vm1947, nan, %v1956
      %v1958 = vand.u32 2147483647, %v364
      %vm1959 = vcmp.le.f32.partialorder %v1958, 0.7853982
      %vm1960 = vcmp.lt.s32.totalorder %v364, 0
      %v1961 = vand.u32 %v364, 2139095040
      %v1962 = vshrl.u32 %v1961, 23
      %v1963 = vsub.s32 %v1962, 127
      %v1964 = vand.u32 2147483647, %v364
      %v1965 = vand.u32 %v1964, 8388607
      %v1966 = vor.u32 %v1965, 8388608
      %v1967 = vsub.s32 0, %v1966
      %v1968 = vadd.s32 %v1963, 1
      %vm1969 = vcmp.gt.s32.totalorder %v1968, 0
      %v1970 = vsel %vm1969, %v1968, 0
      %v1971 = vshrl.u32 %v1970, 5
      %v1972 = vand.u32 %v1970, 31
      %v1973 = vsub.s32 32, %v1972
      %v1974 = vshrl.u32 683565275, %v1973
      %v1975 = vshll.u32 683565275, %v1972
      %v1976 = vshrl.u32 2475754826, %v1973
      %v1977 = vor.u32 %v1975, %v1976
      %v1978 = vshll.u32 2475754826, %v1972
      %v1979 = vshrl.u32 2131351028, %v1973
      %v1980 = vor.u32 %v1978, %v1979
      %v1981 = vshll.u32 2131351028, %v1972
      %v1982 = vshrl.u32 2102212464, %v1973
      %v1983 = vor.u32 %v1981, %v1982
      %v1984 = vshll.u32 2102212464, %v1972
      %v1985 = vshrl.u32 920167782, %v1973
      %v1986 = vor.u32 %v1984, %v1985
      %v1987 = vshll.u32 920167782, %v1972
      %v1988 = vshrl.u32 1326507024, %v1973
      %v1989 = vor.u32 %v1987, %v1988
      %vm1990 = vcmp.lt.s32.totalorder %v1971, 1
      %vm1991 = vcmp.lt.s32.totalorder %v1971, 2
      %vm1992 = vcmp.lt.s32.totalorder %v1971, 3
      %vm1993 = vcmp.lt.s32.totalorder %v1971, 4
      %v1994 = vsel %vm1990, %v1974, %v1977
      %v1995 = vsel %vm1993, %v1983, 2102212464
      %v1996 = vsel %vm1992, %v1980, %v1995
      %v1997 = vsel %vm1991, %v1994, %v1996
      %v1998 = vsel %vm1990, %v1977, %v1980
      %v1999 = vsel %vm1993, %v1986, 920167782
      %v2000 = vsel %vm1992, %v1983, %v1999
      %v2001 = vsel %vm1991, %v1998, %v2000
      %v2002 = vsel %vm1990, %v1980, %v1983
      %v2003 = vsel %vm1993, %v1989, 1326507024
      %v2004 = vsel %vm1992, %v1986, %v2003
      %v2005 = vsel %vm1991, %v2002, %v2004
      %v2006 = vshll.u32 %v1966, 8
      %v2007 = vand.u32 %v2006, 65535
      %v2008 = vshrl.u32 %v2006, 16
      %v2009 = vand.u32 %v2005, 65535
      %v2010 = vshrl.u32 %v2005, 16
      %v2011 = vmul.u32 %v2007, %v2009
      %v2012 = vmul.u32 %v2007, %v2010
      %v2013 = vmul.u32 %v2008, %v2009
      %v2014 = vmul.u32 %v2008, %v2010
      %v2015 = vshll.u32 %v2012, 16
      %v2016 = vshrl.u32 %v2012, 16
      %v2017 = vshll.u32 %v2013, 16
      %v2018 = vshrl.u32 %v2013, 16
      %vm2019 = vc.u32 %v2011, %v2015
      %v2020 = vsel %vm2019, 1, 0
      %v2021 = vadd.s32 %v2011, %v2015
      %v2022 = vadd.s32 %v2014, %v2020
      %vm2023 = vc.u32 %v2021, %v2017
      %v2024 = vsel %vm2023, 1, 0
      %v2025 = vadd.s32 %v2021, %v2017
      %v2026 = vadd.s32 %v2022, %v2024
      %v2027 = vadd.s32 %v2026, %v2016
      %v2028 = vadd.s32 %v2027, %v2018
      %v2029 = vand.u32 %v2006, 65535
      %v2030 = vshrl.u32 %v2006, 16
      %v2031 = vand.u32 %v2001, 65535
      %v2032 = vshrl.u32 %v2001, 16
      %v2033 = vmul.u32 %v2029, %v2031
      %v2034 = vmul.u32 %v2029, %v2032
      %v2035 = vmul.u32 %v2030, %v2031
      %v2036 = vmul.u32 %v2030, %v2032
      %v2037 = vshll.u32 %v2034, 16
      %v2038 = vshrl.u32 %v2034, 16
      %v2039 = vshll.u32 %v2035, 16
      %v2040 = vshrl.u32 %v2035, 16
      %vm2041 = vc.u32 %v2033, %v2037
      %v2042 = vsel %vm2041, 1, 0
      %v2043 = vadd.s32 %v2033, %v2037
      %v2044 = vadd.s32 %v2036, %v2042
      %vm2045 = vc.u32 %v2043, %v2039
      %v2046 = vsel %vm2045, 1, 0
      %v2047 = vadd.s32 %v2043, %v2039
      %v2048 = vadd.s32 %v2044, %v2046
      %v2049 = vadd.s32 %v2048, %v2038
      %v2050 = vadd.s32 %v2049, %v2040
      %v2051 = vmul.u32 %v2006, %v1997
      %v2052 = vadd.s32 %v2028, %v2047
      %vm2053 = vc.u32 %v2028, %v2047
      %v2054 = vadd.s32 %v2050, 1
      %v2055 = vsel %vm2053, %v2054, %v2050
      %v2056 = vadd.s32 %v2051, %v2055
      %v2057 = vadd.s32 %v2056, 536870912
      %v2058 = vshrl.u32 %v2057, 30
      %v2059 = vshll.u32 %v2058, 30
      %v2060 = vsub.s32 %v2056, %v2059
      %vm2061 = vcmp.lt.s32.totalorder %v2060, 0
      %v2062 = vsub.s32 0, %v2060
      %v2063 = vsel %vm2061, %v2062, %v2060
      %v2064 = vclz %v2063
      %v2065 = vsub.s32 %v2064, 2
      %vm2066 = vcmp.gt.s32.totalorder 0, %v2065
      %v2067 = vsel %vm2066, 0, %v2065
      %v2068 = vsub.s32 32, %v2067
      %v2069 = vshll.u32 %v2060, %v2067
      %v2070 = vshrl.u32 %v2052, %v2068
      %v2071 = vor.u32 %v2069, %v2070
      %v2072 = vsub.s32 4294967266, %v2067
      %v2073 = vadd.s32 %v2072, 127
      %v2074 = vshll.u32 %v2073, 23
      %v2075 = vor.u32 4788187, %v2074
      %v2076 = vand.u32 2147483647, %v2075
      %v2078 = vcvt.s32.f32 %v2071
      %v2079 = vmul.f32 %v2078, %v2076
      %v2080 = vxor.u32 %v2079, 2147483648
      %v2081 = vsel %vm1960, %v2080, %v2079
      %v2082 = vsub.s32 4, %v2058
      %v2083 = vsel %vm1960, %v2082, %v2058
      %v2084 = vsel %vm1959, %v364, %v2081
      %v2085 = vsel %vm1959, 0, %v2083
      %v2086 = vmul.f32 %v2084, %v2084
      %v2087 = vmul.f32 %v2086, -0.001358992
      %v2088 = vadd.f32 %v2087, 0.041655596
      %v2089 = vmul.f32 %v2086, %v2088
      %v2090 = vadd.f32 %v2089, -0.4999988
      %v2091 = vmul.f32 %v2086, %v2090
      %v2092 = vadd.f32 1.0, %v2091
      %v2093 = vmul.f32 %v2084, %v2084
      %v2094 = vmul.f32 %v2093, -0.00019511016
      %v2095 = vadd.f32 %v2094, 0.008332121
      %v2096 = vmul.f32 %v2093, %v2095
      %v2097 = vadd.f32 %v2096, -0.16666654
      %v2098 = vmul.f32 %v2093, %v2097
      %v2099 = vadd.f32 %v2098, 1.0
      %v2100 = vmul.f32 %v2099, %v2084
      %vm2101 = vweird.f32 %v364
      %v2102 = vand.u32 %v2085, 3
      %vm2103 = vcmp.lt.s32.totalorder %v2102, 2
      %vm2104 = vcmp.eq.s32.totalorder %v2102, 0
      %v2105 = vxor.u32 %v2100, 2147483648
      %v2106 = vsel %vm2104, %v2092, %v2105
      %vm2107 = vcmp.eq.s32.totalorder %v2102, 2
      %v2108 = vxor.u32 %v2092, 2147483648
      %v2109 = vsel %vm2107, %v2108, %v2100
      %v2110 = vsel %vm2103, %v2106, %v2109
      %v2111 = vsel %vm2101, nan, %v2110
      %v2112 = vand.u32 2147483647, %v365
      %vm2113 = vcmp.le.f32.partialorder %v2112, 0.7853982
      %vm2114 = vcmp.lt.s32.totalorder %v365, 0
      %v2115 = vand.u32 %v365, 2139095040
      %v2116 = vshrl.u32 %v2115, 23
      %v2117 = vsub.s32 %v2116, 127
      %v2118 = vand.u32 2147483647, %v365
      %v2119 = vand.u32 %v2118, 8388607
      %v2120 = vor.u32 %v2119, 8388608
      %v2121 = vsub.s32 0, %v2120
      %v2122 = vadd.s32 %v2117, 1
      %vm2123 = vcmp.gt.s32.totalorder %v2122, 0
      %v2124 = vsel %vm2123, %v2122, 0
      %v2125 = vshrl.u32 %v2124, 5
      %v2126 = vand.u32 %v2124, 31
      %v2127 = vsub.s32 32, %v2126
      %v2128 = vshrl.u32 683565275, %v2127
      %v2129 = vshll.u32 683565275, %v2126
      %v2130 = vshrl.u32 2475754826, %v2127
      %v2131 = vor.u32 %v2129, %v2130
      %v2132 = vshll.u32 2475754826, %v2126
      %v2133 = vshrl.u32 2131351028, %v2127
      %v2134 = vor.u32 %v2132, %v2133
      %v2135 = vshll.u32 2131351028, %v2126
      %v2136 = vshrl.u32 2102212464, %v2127
      %v2137 = vor.u32 %v2135, %v2136
      %v2138 = vshll.u32 2102212464, %v2126
      %v2139 = vshrl.u32 920167782, %v2127
      %v2140 = vor.u32 %v2138, %v2139
      %v2141 = vshll.u32 920167782, %v2126
      %v2142 = vshrl.u32 1326507024, %v2127
      %v2143 = vor.u32 %v2141, %v2142
      %vm2144 = vcmp.lt.s32.totalorder %v2125, 1
      %vm2145 = vcmp.lt.s32.totalorder %v2125, 2
      %vm2146 = vcmp.lt.s32.totalorder %v2125, 3
      %vm2147 = vcmp.lt.s32.totalorder %v2125, 4
      %v2148 = vsel %vm2144, %v2128, %v2131
      %v2149 = vsel %vm2147, %v2137, 2102212464
      %v2150 = vsel %vm2146, %v2134, %v2149
      %v2151 = vsel %vm2145, %v2148, %v2150
      %v2152 = vsel %vm2144, %v2131, %v2134
      %v2153 = vsel %vm2147, %v2140, 920167782
      %v2154 = vsel %vm2146, %v2137, %v2153
      %v2155 = vsel %vm2145, %v2152, %v2154
      %v2156 = vsel %vm2144, %v2134, %v2137
      %v2157 = vsel %vm2147, %v2143, 1326507024
      %v2158 = vsel %vm2146, %v2140, %v2157
      %v2159 = vsel %vm2145, %v2156, %v2158
      %v2160 = vshll.u32 %v2120, 8
      %v2161 = vand.u32 %v2160, 65535
      %v2162 = vshrl.u32 %v2160, 16
      %v2163 = vand.u32 %v2159, 65535
      %v2164 = vshrl.u32 %v2159, 16
      %v2165 = vmul.u32 %v2161, %v2163
      %v2166 = vmul.u32 %v2161, %v2164
      %v2167 = vmul.u32 %v2162, %v2163
      %v2168 = vmul.u32 %v2162, %v2164
      %v2169 = vshll.u32 %v2166, 16
      %v2170 = vshrl.u32 %v2166, 16
      %v2171 = vshll.u32 %v2167, 16
      %v2172 = vshrl.u32 %v2167, 16
      %vm2173 = vc.u32 %v2165, %v2169
      %v2174 = vsel %vm2173, 1, 0
      %v2175 = vadd.s32 %v2165, %v2169
      %v2176 = vadd.s32 %v2168, %v2174
      %vm2177 = vc.u32 %v2175, %v2171
      %v2178 = vsel %vm2177, 1, 0
      %v2179 = vadd.s32 %v2175, %v2171
      %v2180 = vadd.s32 %v2176, %v2178
      %v2181 = vadd.s32 %v2180, %v2170
      %v2182 = vadd.s32 %v2181, %v2172
      %v2183 = vand.u32 %v2160, 65535
      %v2184 = vshrl.u32 %v2160, 16
      %v2185 = vand.u32 %v2155, 65535
      %v2186 = vshrl.u32 %v2155, 16
      %v2187 = vmul.u32 %v2183, %v2185
      %v2188 = vmul.u32 %v2183, %v2186
      %v2189 = vmul.u32 %v2184, %v2185
      %v2190 = vmul.u32 %v2184, %v2186
      %v2191 = vshll.u32 %v2188, 16
      %v2192 = vshrl.u32 %v2188, 16
      %v2193 = vshll.u32 %v2189, 16
      %v2194 = vshrl.u32 %v2189, 16
      %vm2195 = vc.u32 %v2187, %v2191
      %v2196 = vsel %vm2195, 1, 0
      %v2197 = vadd.s32 %v2187, %v2191
      %v2198 = vadd.s32 %v2190, %v2196
      %vm2199 = vc.u32 %v2197, %v2193
      %v2200 = vsel %vm2199, 1, 0
      %v2201 = vadd.s32 %v2197, %v2193
      %v2202 = vadd.s32 %v2198, %v2200
      %v2203 = vadd.s32 %v2202, %v2192
      %v2204 = vadd.s32 %v2203, %v2194
      %v2205 = vmul.u32 %v2160, %v2151
      %v2206 = vadd.s32 %v2182, %v2201
      %vm2207 = vc.u32 %v2182, %v2201
      %v2208 = vadd.s32 %v2204, 1
      %v2209 = vsel %vm2207, %v2208, %v2204
      %v2210 = vadd.s32 %v2205, %v2209
      %v2211 = vadd.s32 %v2210, 536870912
      %v2212 = vshrl.u32 %v2211, 30
      %v2213 = vshll.u32 %v2212, 30
      %v2214 = vsub.s32 %v2210, %v2213
      %vm2215 = vcmp.lt.s32.totalorder %v2214, 0
      %v2216 = vsub.s32 0, %v2214
      %v2217 = vsel %vm2215, %v2216, %v2214
      %v2218 = vclz %v2217
      %v2219 = vsub.s32 %v2218, 2
      %vm2220 = vcmp.gt.s32.totalorder 0, %v2219
      %v2221 = vsel %vm2220, 0, %v2219
      %v2222 = vsub.s32 32, %v2221
      %v2223 = vshll.u32 %v2214, %v2221
      %v2224 = vshrl.u32 %v2206, %v2222
      %v2225 = vor.u32 %v2223, %v2224
      %v2226 = vsub.s32 4294967266, %v2221
      %v2227 = vadd.s32 %v2226, 127
      %v2228 = vshll.u32 %v2227, 23
      %v2229 = vor.u32 4788187, %v2228
      %v2230 = vand.u32 2147483647, %v2229
      %v2232 = vcvt.s32.f32 %v2225
      %v2233 = vmul.f32 %v2232, %v2230
      %v2234 = vxor.u32 %v2233, 2147483648
      %v2235 = vsel %vm2114, %v2234, %v2233
      %v2236 = vsub.s32 4, %v2212
      %v2237 = vsel %vm2114, %v2236, %v2212
      %v2238 = vsel %vm2113, %v365, %v2235
      %v2239 = vsel %vm2113, 0, %v2237
      %v2240 = vmul.f32 %v2238, %v2238
      %v2241 = vmul.f32 %v2240, -0.001358992
      %v2242 = vadd.f32 %v2241, 0.041655596
      %v2243 = vmul.f32 %v2240, %v2242
      %v2244 = vadd.f32 %v2243, -0.4999988
      %v2245 = vmul.f32 %v2240, %v2244
      %v2246 = vadd.f32 1.0, %v2245
      %v2247 = vmul.f32 %v2238, %v2238
      %v2248 = vmul.f32 %v2247, -0.00019511016
      %v2249 = vadd.f32 %v2248, 0.008332121
      %v2250 = vmul.f32 %v2247, %v2249
      %v2251 = vadd.f32 %v2250, -0.16666654
      %v2252 = vmul.f32 %v2247, %v2251
      %v2253 = vadd.f32 %v2252, 1.0
      %v2254 = vmul.f32 %v2253, %v2238
      %vm2255 = vweird.f32 %v365
      %v2256 = vand.u32 %v2239, 3
      %vm2257 = vcmp.lt.s32.totalorder %v2256, 2
      %vm2258 = vcmp.eq.s32.totalorder %v2256, 0
      %v2259 = vxor.u32 %v2254, 2147483648
      %v2260 = vsel %vm2258, %v2246, %v2259
      %vm2261 = vcmp.eq.s32.totalorder %v2256, 2
      %v2262 = vxor.u32 %v2246, 2147483648
      %v2263 = vsel %vm2261, %v2262, %v2254
      %v2264 = vsel %vm2257, %v2260, %v2263
      %v2265 = vsel %vm2255, nan, %v2264
      %v2266 = vand.u32 2147483647, %v366
      %vm2267 = vcmp.le.f32.partialorder %v2266, 0.7853982
      %vm2268 = vcmp.lt.s32.totalorder %v366, 0
      %v2269 = vand.u32 %v366, 2139095040
      %v2270 = vshrl.u32 %v2269, 23
      %v2271 = vsub.s32 %v2270, 127
      %v2272 = vand.u32 2147483647, %v366
      %v2273 = vand.u32 %v2272, 8388607
      %v2274 = vor.u32 %v2273, 8388608
      %v2275 = vsub.s32 0, %v2274
      %v2276 = vadd.s32 %v2271, 1
      %vm2277 = vcmp.gt.s32.totalorder %v2276, 0
      %v2278 = vsel %vm2277, %v2276, 0
      %v2279 = vshrl.u32 %v2278, 5
      %v2280 = vand.u32 %v2278, 31
      %v2281 = vsub.s32 32, %v2280
      %v2282 = vshrl.u32 683565275, %v2281
      %v2283 = vshll.u32 683565275, %v2280
      %v2284 = vshrl.u32 2475754826, %v2281
      %v2285 = vor.u32 %v2283, %v2284
      %v2286 = vshll.u32 2475754826, %v2280
      %v2287 = vshrl.u32 2131351028, %v2281
      %v2288 = vor.u32 %v2286, %v2287
      %v2289 = vshll.u32 2131351028, %v2280
      %v2290 = vshrl.u32 2102212464, %v2281
      %v2291 = vor.u32 %v2289, %v2290
      %v2292 = vshll.u32 2102212464, %v2280
      %v2293 = vshrl.u32 920167782, %v2281
      %v2294 = vor.u32 %v2292, %v2293
      %v2295 = vshll.u32 920167782, %v2280
      %v2296 = vshrl.u32 1326507024, %v2281
      %v2297 = vor.u32 %v2295, %v2296
      %vm2298 = vcmp.lt.s32.totalorder %v2279, 1
      %vm2299 = vcmp.lt.s32.totalorder %v2279, 2
      %vm2300 = vcmp.lt.s32.totalorder %v2279, 3
      %vm2301 = vcmp.lt.s32.totalorder %v2279, 4
      %v2302 = vsel %vm2298, %v2282, %v2285
      %v2303 = vsel %vm2301, %v2291, 2102212464
      %v2304 = vsel %vm2300, %v2288, %v2303
      %v2305 = vsel %vm2299, %v2302, %v2304
      %v2306 = vsel %vm2298, %v2285, %v2288
      %v2307 = vsel %vm2301, %v2294, 920167782
      %v2308 = vsel %vm2300, %v2291, %v2307
      %v2309 = vsel %vm2299, %v2306, %v2308
      %v2310 = vsel %vm2298, %v2288, %v2291
      %v2311 = vsel %vm2301, %v2297, 1326507024
      %v2312 = vsel %vm2300, %v2294, %v2311
      %v2313 = vsel %vm2299, %v2310, %v2312
      %v2314 = vshll.u32 %v2274, 8
      %v2315 = vand.u32 %v2314, 65535
      %v2316 = vshrl.u32 %v2314, 16
      %v2317 = vand.u32 %v2313, 65535
      %v2318 = vshrl.u32 %v2313, 16
      %v2319 = vmul.u32 %v2315, %v2317
      %v2320 = vmul.u32 %v2315, %v2318
      %v2321 = vmul.u32 %v2316, %v2317
      %v2322 = vmul.u32 %v2316, %v2318
      %v2323 = vshll.u32 %v2320, 16
      %v2324 = vshrl.u32 %v2320, 16
      %v2325 = vshll.u32 %v2321, 16
      %v2326 = vshrl.u32 %v2321, 16
      %vm2327 = vc.u32 %v2319, %v2323
      %v2328 = vsel %vm2327, 1, 0
      %v2329 = vadd.s32 %v2319, %v2323
      %v2330 = vadd.s32 %v2322, %v2328
      %vm2331 = vc.u32 %v2329, %v2325
      %v2332 = vsel %vm2331, 1, 0
      %v2333 = vadd.s32 %v2329, %v2325
      %v2334 = vadd.s32 %v2330, %v2332
      %v2335 = vadd.s32 %v2334, %v2324
      %v2336 = vadd.s32 %v2335, %v2326
      %v2337 = vand.u32 %v2314, 65535
      %v2338 = vshrl.u32 %v2314, 16
      %v2339 = vand.u32 %v2309, 65535
      %v2340 = vshrl.u32 %v2309, 16
      %v2341 = vmul.u32 %v2337, %v2339
      %v2342 = vmul.u32 %v2337, %v2340
      %v2343 = vmul.u32 %v2338, %v2339
      %v2344 = vmul.u32 %v2338, %v2340
      %v2345 = vshll.u32 %v2342, 16
      %v2346 = vshrl.u32 %v2342, 16
      %v2347 = vshll.u32 %v2343, 16
      %v2348 = vshrl.u32 %v2343, 16
      %vm2349 = vc.u32 %v2341, %v2345
      %v2350 = vsel %vm2349, 1, 0
      %v2351 = vadd.s32 %v2341, %v2345
      %v2352 = vadd.s32 %v2344, %v2350
      %vm2353 = vc.u32 %v2351, %v2347
      %v2354 = vsel %vm2353, 1, 0
      %v2355 = vadd.s32 %v2351, %v2347
      %v2356 = vadd.s32 %v2352, %v2354
      %v2357 = vadd.s32 %v2356, %v2346
      %v2358 = vadd.s32 %v2357, %v2348
      %v2359 = vmul.u32 %v2314, %v2305
      %v2360 = vadd.s32 %v2336, %v2355
      %vm2361 = vc.u32 %v2336, %v2355
      %v2362 = vadd.s32 %v2358, 1
      %v2363 = vsel %vm2361, %v2362, %v2358
      %v2364 = vadd.s32 %v2359, %v2363
      %v2365 = vadd.s32 %v2364, 536870912
      %v2366 = vshrl.u32 %v2365, 30
      %v2367 = vshll.u32 %v2366, 30
      %v2368 = vsub.s32 %v2364, %v2367
      %vm2369 = vcmp.lt.s32.totalorder %v2368, 0
      %v2370 = vsub.s32 0, %v2368
      %v2371 = vsel %vm2369, %v2370, %v2368
      %v2372 = vclz %v2371
      %v2373 = vsub.s32 %v2372, 2
      %vm2374 = vcmp.gt.s32.totalorder 0, %v2373
      %v2375 = vsel %vm2374, 0, %v2373
      %v2376 = vsub.s32 32, %v2375
      %v2377 = vshll.u32 %v2368, %v2375
      %v2378 = vshrl.u32 %v2360, %v2376
      %v2379 = vor.u32 %v2377, %v2378
      %v2380 = vsub.s32 4294967266, %v2375
      %v2381 = vadd.s32 %v2380, 127
      %v2382 = vshll.u32 %v2381, 23
      %v2383 = vor.u32 4788187, %v2382
      %v2384 = vand.u32 2147483647, %v2383
      %v2386 = vcvt.s32.f32 %v2379
      %v2387 = vmul.f32 %v2386, %v2384
      %v2388 = vxor.u32 %v2387, 2147483648
      %v2389 = vsel %vm2268, %v2388, %v2387
      %v2390 = vsub.s32 4, %v2366
      %v2391 = vsel %vm2268, %v2390, %v2366
      %v2392 = vsel %vm2267, %v366, %v2389
      %v2393 = vsel %vm2267, 0, %v2391
      %v2394 = vmul.f32 %v2392, %v2392
      %v2395 = vmul.f32 %v2394, -0.001358992
      %v2396 = vadd.f32 %v2395, 0.041655596
      %v2397 = vmul.f32 %v2394, %v2396
      %v2398 = vadd.f32 %v2397, -0.4999988
      %v2399 = vmul.f32 %v2394, %v2398
      %v2400 = vadd.f32 1.0, %v2399
      %v2401 = vmul.f32 %v2392, %v2392
      %v2402 = vmul.f32 %v2401, -0.00019511016
      %v2403 = vadd.f32 %v2402, 0.008332121
      %v2404 = vmul.f32 %v2401, %v2403
      %v2405 = vadd.f32 %v2404, -0.16666654
      %v2406 = vmul.f32 %v2401, %v2405
      %v2407 = vadd.f32 %v2406, 1.0
      %v2408 = vmul.f32 %v2407, %v2392
      %vm2409 = vweird.f32 %v366
      %v2410 = vand.u32 %v2393, 3
      %vm2411 = vcmp.lt.s32.totalorder %v2410, 2
      %vm2412 = vcmp.eq.s32.totalorder %v2410, 0
      %v2413 = vxor.u32 %v2408, 2147483648
      %v2414 = vsel %vm2412, %v2400, %v2413
      %vm2415 = vcmp.eq.s32.totalorder %v2410, 2
      %v2416 = vxor.u32 %v2400, 2147483648
      %v2417 = vsel %vm2415, %v2416, %v2408
      %v2418 = vsel %vm2411, %v2414, %v2417
      %v2419 = vsel %vm2409, nan, %v2418
      %v2420 = vand.u32 2147483647, %v367
      %vm2421 = vcmp.le.f32.partialorder %v2420, 0.7853982
      %vm2422 = vcmp.lt.s32.totalorder %v367, 0
      %v2423 = vand.u32 %v367, 2139095040
      %v2424 = vshrl.u32 %v2423, 23
      %v2425 = vsub.s32 %v2424, 127
      %v2426 = vand.u32 2147483647, %v367
      %v2427 = vand.u32 %v2426, 8388607
      %v2428 = vor.u32 %v2427, 8388608
      %v2429 = vsub.s32 0, %v2428
      %v2430 = vadd.s32 %v2425, 1
      %vm2431 = vcmp.gt.s32.totalorder %v2430, 0
      %v2432 = vsel %vm2431, %v2430, 0
      %v2433 = vshrl.u32 %v2432, 5
      %v2434 = vand.u32 %v2432, 31
      %v2435 = vsub.s32 32, %v2434
      %v2436 = vshrl.u32 683565275, %v2435
      %v2437 = vshll.u32 683565275, %v2434
      %v2438 = vshrl.u32 2475754826, %v2435
      %v2439 = vor.u32 %v2437, %v2438
      %v2440 = vshll.u32 2475754826, %v2434
      %v2441 = vshrl.u32 2131351028, %v2435
      %v2442 = vor.u32 %v2440, %v2441
      %v2443 = vshll.u32 2131351028, %v2434
      %v2444 = vshrl.u32 2102212464, %v2435
      %v2445 = vor.u32 %v2443, %v2444
      %v2446 = vshll.u32 2102212464, %v2434
      %v2447 = vshrl.u32 920167782, %v2435
      %v2448 = vor.u32 %v2446, %v2447
      %v2449 = vshll.u32 920167782, %v2434
      %v2450 = vshrl.u32 1326507024, %v2435
      %v2451 = vor.u32 %v2449, %v2450
      %vm2452 = vcmp.lt.s32.totalorder %v2433, 1
      %vm2453 = vcmp.lt.s32.totalorder %v2433, 2
      %vm2454 = vcmp.lt.s32.totalorder %v2433, 3
      %vm2455 = vcmp.lt.s32.totalorder %v2433, 4
      %v2456 = vsel %vm2452, %v2436, %v2439
      %v2457 = vsel %vm2455, %v2445, 2102212464
      %v2458 = vsel %vm2454, %v2442, %v2457
      %v2459 = vsel %vm2453, %v2456, %v2458
      %v2460 = vsel %vm2452, %v2439, %v2442
      %v2461 = vsel %vm2455, %v2448, 920167782
      %v2462 = vsel %vm2454, %v2445, %v2461
      %v2463 = vsel %vm2453, %v2460, %v2462
      %v2464 = vsel %vm2452, %v2442, %v2445
      %v2465 = vsel %vm2455, %v2451, 1326507024
      %v2466 = vsel %vm2454, %v2448, %v2465
      %v2467 = vsel %vm2453, %v2464, %v2466
      %v2468 = vshll.u32 %v2428, 8
      %v2469 = vand.u32 %v2468, 65535
      %v2470 = vshrl.u32 %v2468, 16
      %v2471 = vand.u32 %v2467, 65535
      %v2472 = vshrl.u32 %v2467, 16
      %v2473 = vmul.u32 %v2469, %v2471
      %v2474 = vmul.u32 %v2469, %v2472
      %v2475 = vmul.u32 %v2470, %v2471
      %v2476 = vmul.u32 %v2470, %v2472
      %v2477 = vshll.u32 %v2474, 16
      %v2478 = vshrl.u32 %v2474, 16
      %v2479 = vshll.u32 %v2475, 16
      %v2480 = vshrl.u32 %v2475, 16
      %vm2481 = vc.u32 %v2473, %v2477
      %v2482 = vsel %vm2481, 1, 0
      %v2483 = vadd.s32 %v2473, %v2477
      %v2484 = vadd.s32 %v2476, %v2482
      %vm2485 = vc.u32 %v2483, %v2479
      %v2486 = vsel %vm2485, 1, 0
      %v2487 = vadd.s32 %v2483, %v2479
      %v2488 = vadd.s32 %v2484, %v2486
      %v2489 = vadd.s32 %v2488, %v2478
      %v2490 = vadd.s32 %v2489, %v2480
      %v2491 = vand.u32 %v2468, 65535
      %v2492 = vshrl.u32 %v2468, 16
      %v2493 = vand.u32 %v2463, 65535
      %v2494 = vshrl.u32 %v2463, 16
      %v2495 = vmul.u32 %v2491, %v2493
      %v2496 = vmul.u32 %v2491, %v2494
      %v2497 = vmul.u32 %v2492, %v2493
      %v2498 = vmul.u32 %v2492, %v2494
      %v2499 = vshll.u32 %v2496, 16
      %v2500 = vshrl.u32 %v2496, 16
      %v2501 = vshll.u32 %v2497, 16
      %v2502 = vshrl.u32 %v2497, 16
      %vm2503 = vc.u32 %v2495, %v2499
      %v2504 = vsel %vm2503, 1, 0
      %v2505 = vadd.s32 %v2495, %v2499
      %v2506 = vadd.s32 %v2498, %v2504
      %vm2507 = vc.u32 %v2505, %v2501
      %v2508 = vsel %vm2507, 1, 0
      %v2509 = vadd.s32 %v2505, %v2501
      %v2510 = vadd.s32 %v2506, %v2508
      %v2511 = vadd.s32 %v2510, %v2500
      %v2512 = vadd.s32 %v2511, %v2502
      %v2513 = vmul.u32 %v2468, %v2459
      %v2514 = vadd.s32 %v2490, %v2509
      %vm2515 = vc.u32 %v2490, %v2509
      %v2516 = vadd.s32 %v2512, 1
      %v2517 = vsel %vm2515, %v2516, %v2512
      %v2518 = vadd.s32 %v2513, %v2517
      %v2519 = vadd.s32 %v2518, 536870912
      %v2520 = vshrl.u32 %v2519, 30
      %v2521 = vshll.u32 %v2520, 30
      %v2522 = vsub.s32 %v2518, %v2521
      %vm2523 = vcmp.lt.s32.totalorder %v2522, 0
      %v2524 = vsub.s32 0, %v2522
      %v2525 = vsel %vm2523, %v2524, %v2522
      %v2526 = vclz %v2525
      %v2527 = vsub.s32 %v2526, 2
      %vm2528 = vcmp.gt.s32.totalorder 0, %v2527
      %v2529 = vsel %vm2528, 0, %v2527
      %v2530 = vsub.s32 32, %v2529
      %v2531 = vshll.u32 %v2522, %v2529
      %v2532 = vshrl.u32 %v2514, %v2530
      %v2533 = vor.u32 %v2531, %v2532
      %v2534 = vsub.s32 4294967266, %v2529
      %v2535 = vadd.s32 %v2534, 127
      %v2536 = vshll.u32 %v2535, 23
      %v2537 = vor.u32 4788187, %v2536
      %v2538 = vand.u32 2147483647, %v2537
      %v2540 = vcvt.s32.f32 %v2533
      %v2541 = vmul.f32 %v2540, %v2538
      %v2542 = vxor.u32 %v2541, 2147483648
      %v2543 = vsel %vm2422, %v2542, %v2541
      %v2544 = vsub.s32 4, %v2520
      %v2545 = vsel %vm2422, %v2544, %v2520
      %v2546 = vsel %vm2421, %v367, %v2543
      %v2547 = vsel %vm2421, 0, %v2545
      %v2548 = vmul.f32 %v2546, %v2546
      %v2549 = vmul.f32 %v2548, -0.001358992
      %v2550 = vadd.f32 %v2549, 0.041655596
      %v2551 = vmul.f32 %v2548, %v2550
      %v2552 = vadd.f32 %v2551, -0.4999988
      %v2553 = vmul.f32 %v2548, %v2552
      %v2554 = vadd.f32 1.0, %v2553
      %v2555 = vmul.f32 %v2546, %v2546
      %v2556 = vmul.f32 %v2555, -0.00019511016
      %v2557 = vadd.f32 %v2556, 0.008332121
      %v2558 = vmul.f32 %v2555, %v2557
      %v2559 = vadd.f32 %v2558, -0.16666654
      %v2560 = vmul.f32 %v2555, %v2559
      %v2561 = vadd.f32 %v2560, 1.0
      %v2562 = vmul.f32 %v2561, %v2546
      %vm2563 = vweird.f32 %v367
      %v2564 = vand.u32 %v2547, 3
      %vm2565 = vcmp.lt.s32.totalorder %v2564, 2
      %vm2566 = vcmp.eq.s32.totalorder %v2564, 0
      %v2567 = vxor.u32 %v2562, 2147483648
      %v2568 = vsel %vm2566, %v2554, %v2567
      %vm2569 = vcmp.eq.s32.totalorder %v2564, 2
      %v2570 = vxor.u32 %v2554, 2147483648
      %v2571 = vsel %vm2569, %v2570, %v2562
      %v2572 = vsel %vm2565, %v2568, %v2571
      %v2573 = vsel %vm2563, nan, %v2572
      %v2574 = vand.u32 2147483647, %v368
      %vm2575 = vcmp.le.f32.partialorder %v2574, 0.7853982
      %vm2576 = vcmp.lt.s32.totalorder %v368, 0
      %v2577 = vand.u32 %v368, 2139095040
      %v2578 = vshrl.u32 %v2577, 23
      %v2579 = vsub.s32 %v2578, 127
      %v2580 = vand.u32 2147483647, %v368
      %v2581 = vand.u32 %v2580, 8388607
      %v2582 = vor.u32 %v2581, 8388608
      %v2583 = vsub.s32 0, %v2582
      %v2584 = vadd.s32 %v2579, 1
      %vm2585 = vcmp.gt.s32.totalorder %v2584, 0
      %v2586 = vsel %vm2585, %v2584, 0
      %v2587 = vshrl.u32 %v2586, 5
      %v2588 = vand.u32 %v2586, 31
      %v2589 = vsub.s32 32, %v2588
      %v2590 = vshrl.u32 683565275, %v2589
      %v2591 = vshll.u32 683565275, %v2588
      %v2592 = vshrl.u32 2475754826, %v2589
      %v2593 = vor.u32 %v2591, %v2592
      %v2594 = vshll.u32 2475754826, %v2588
      %v2595 = vshrl.u32 2131351028, %v2589
      %v2596 = vor.u32 %v2594, %v2595
      %v2597 = vshll.u32 2131351028, %v2588
      %v2598 = vshrl.u32 2102212464, %v2589
      %v2599 = vor.u32 %v2597, %v2598
      %v2600 = vshll.u32 2102212464, %v2588
      %v2601 = vshrl.u32 920167782, %v2589
      %v2602 = vor.u32 %v2600, %v2601
      %v2603 = vshll.u32 920167782, %v2588
      %v2604 = vshrl.u32 1326507024, %v2589
      %v2605 = vor.u32 %v2603, %v2604
      %vm2606 = vcmp.lt.s32.totalorder %v2587, 1
      %vm2607 = vcmp.lt.s32.totalorder %v2587, 2
      %vm2608 = vcmp.lt.s32.totalorder %v2587, 3
      %vm2609 = vcmp.lt.s32.totalorder %v2587, 4
      %v2610 = vsel %vm2606, %v2590, %v2593
      %v2611 = vsel %vm2609, %v2599, 2102212464
      %v2612 = vsel %vm2608, %v2596, %v2611
      %v2613 = vsel %vm2607, %v2610, %v2612
      %v2614 = vsel %vm2606, %v2593, %v2596
      %v2615 = vsel %vm2609, %v2602, 920167782
      %v2616 = vsel %vm2608, %v2599, %v2615
      %v2617 = vsel %vm2607, %v2614, %v2616
      %v2618 = vsel %vm2606, %v2596, %v2599
      %v2619 = vsel %vm2609, %v2605, 1326507024
      %v2620 = vsel %vm2608, %v2602, %v2619
      %v2621 = vsel %vm2607, %v2618, %v2620
      %v2622 = vshll.u32 %v2582, 8
      %v2623 = vand.u32 %v2622, 65535
      %v2624 = vshrl.u32 %v2622, 16
      %v2625 = vand.u32 %v2621, 65535
      %v2626 = vshrl.u32 %v2621, 16
      %v2627 = vmul.u32 %v2623, %v2625
      %v2628 = vmul.u32 %v2623, %v2626
      %v2629 = vmul.u32 %v2624, %v2625
      %v2630 = vmul.u32 %v2624, %v2626
      %v2631 = vshll.u32 %v2628, 16
      %v2632 = vshrl.u32 %v2628, 16
      %v2633 = vshll.u32 %v2629, 16
      %v2634 = vshrl.u32 %v2629, 16
      %vm2635 = vc.u32 %v2627, %v2631
      %v2636 = vsel %vm2635, 1, 0
      %v2637 = vadd.s32 %v2627, %v2631
      %v2638 = vadd.s32 %v2630, %v2636
      %vm2639 = vc.u32 %v2637, %v2633
      %v2640 = vsel %vm2639, 1, 0
      %v2641 = vadd.s32 %v2637, %v2633
      %v2642 = vadd.s32 %v2638, %v2640
      %v2643 = vadd.s32 %v2642, %v2632
      %v2644 = vadd.s32 %v2643, %v2634
      %v2645 = vand.u32 %v2622, 65535
      %v2646 = vshrl.u32 %v2622, 16
      %v2647 = vand.u32 %v2617, 65535
      %v2648 = vshrl.u32 %v2617, 16
      %v2649 = vmul.u32 %v2645, %v2647
      %v2650 = vmul.u32 %v2645, %v2648
      %v2651 = vmul.u32 %v2646, %v2647
      %v2652 = vmul.u32 %v2646, %v2648
      %v2653 = vshll.u32 %v2650, 16
      %v2654 = vshrl.u32 %v2650, 16
      %v2655 = vshll.u32 %v2651, 16
      %v2656 = vshrl.u32 %v2651, 16
      %vm2657 = vc.u32 %v2649, %v2653
      %v2658 = vsel %vm2657, 1, 0
      %v2659 = vadd.s32 %v2649, %v2653
      %v2660 = vadd.s32 %v2652, %v2658
      %vm2661 = vc.u32 %v2659, %v2655
      %v2662 = vsel %vm2661, 1, 0
      %v2663 = vadd.s32 %v2659, %v2655
      %v2664 = vadd.s32 %v2660, %v2662
      %v2665 = vadd.s32 %v2664, %v2654
      %v2666 = vadd.s32 %v2665, %v2656
      %v2667 = vmul.u32 %v2622, %v2613
      %v2668 = vadd.s32 %v2644, %v2663
      %vm2669 = vc.u32 %v2644, %v2663
      %v2670 = vadd.s32 %v2666, 1
      %v2671 = vsel %vm2669, %v2670, %v2666
      %v2672 = vadd.s32 %v2667, %v2671
      %v2673 = vadd.s32 %v2672, 536870912
      %v2674 = vshrl.u32 %v2673, 30
      %v2675 = vshll.u32 %v2674, 30
      %v2676 = vsub.s32 %v2672, %v2675
      %vm2677 = vcmp.lt.s32.totalorder %v2676, 0
      %v2678 = vsub.s32 0, %v2676
      %v2679 = vsel %vm2677, %v2678, %v2676
      %v2680 = vclz %v2679
      %v2681 = vsub.s32 %v2680, 2
      %vm2682 = vcmp.gt.s32.totalorder 0, %v2681
      %v2683 = vsel %vm2682, 0, %v2681
      %v2684 = vsub.s32 32, %v2683
      %v2685 = vshll.u32 %v2676, %v2683
      %v2686 = vshrl.u32 %v2668, %v2684
      %v2687 = vor.u32 %v2685, %v2686
      %v2688 = vsub.s32 4294967266, %v2683
      %v2689 = vadd.s32 %v2688, 127
      %v2690 = vshll.u32 %v2689, 23
      %v2691 = vor.u32 4788187, %v2690
      %v2692 = vand.u32 2147483647, %v2691
      %v2694 = vcvt.s32.f32 %v2687
      %v2695 = vmul.f32 %v2694, %v2692
      %v2696 = vxor.u32 %v2695, 2147483648
      %v2697 = vsel %vm2576, %v2696, %v2695
      %v2698 = vsub.s32 4, %v2674
      %v2699 = vsel %vm2576, %v2698, %v2674
      %v2700 = vsel %vm2575, %v368, %v2697
      %v2701 = vsel %vm2575, 0, %v2699
      %v2702 = vmul.f32 %v2700, %v2700
      %v2703 = vmul.f32 %v2702, -0.001358992
      %v2704 = vadd.f32 %v2703, 0.041655596
      %v2705 = vmul.f32 %v2702, %v2704
      %v2706 = vadd.f32 %v2705, -0.4999988
      %v2707 = vmul.f32 %v2702, %v2706
      %v2708 = vadd.f32 1.0, %v2707
      %v2709 = vmul.f32 %v2700, %v2700
      %v2710 = vmul.f32 %v2709, -0.00019511016
      %v2711 = vadd.f32 %v2710, 0.008332121
      %v2712 = vmul.f32 %v2709, %v2711
      %v2713 = vadd.f32 %v2712, -0.16666654
      %v2714 = vmul.f32 %v2709, %v2713
      %v2715 = vadd.f32 %v2714, 1.0
      %v2716 = vmul.f32 %v2715, %v2700
      %vm2717 = vweird.f32 %v368
      %v2718 = vand.u32 %v2701, 3
      %vm2719 = vcmp.lt.s32.totalorder %v2718, 2
      %vm2720 = vcmp.eq.s32.totalorder %v2718, 0
      %v2721 = vxor.u32 %v2716, 2147483648
      %v2722 = vsel %vm2720, %v2708, %v2721
      %vm2723 = vcmp.eq.s32.totalorder %v2718, 2
      %v2724 = vxor.u32 %v2708, 2147483648
      %v2725 = vsel %vm2723, %v2724, %v2716
      %v2726 = vsel %vm2719, %v2722, %v2725
      %v2727 = vsel %vm2717, nan, %v2726
      %v2728 = vand.u32 2147483647, %v369
      %vm2729 = vcmp.le.f32.partialorder %v2728, 0.7853982
      %vm2730 = vcmp.lt.s32.totalorder %v369, 0
      %v2731 = vand.u32 %v369, 2139095040
      %v2732 = vshrl.u32 %v2731, 23
      %v2733 = vsub.s32 %v2732, 127
      %v2734 = vand.u32 2147483647, %v369
      %v2735 = vand.u32 %v2734, 8388607
      %v2736 = vor.u32 %v2735, 8388608
      %v2737 = vsub.s32 0, %v2736
      %v2738 = vadd.s32 %v2733, 1
      %vm2739 = vcmp.gt.s32.totalorder %v2738, 0
      %v2740 = vsel %vm2739, %v2738, 0
      %v2741 = vshrl.u32 %v2740, 5
      %v2742 = vand.u32 %v2740, 31
      %v2743 = vsub.s32 32, %v2742
      %v2744 = vshrl.u32 683565275, %v2743
      %v2745 = vshll.u32 683565275, %v2742
      %v2746 = vshrl.u32 2475754826, %v2743
      %v2747 = vor.u32 %v2745, %v2746
      %v2748 = vshll.u32 2475754826, %v2742
      %v2749 = vshrl.u32 2131351028, %v2743
      %v2750 = vor.u32 %v2748, %v2749
      %v2751 = vshll.u32 2131351028, %v2742
      %v2752 = vshrl.u32 2102212464, %v2743
      %v2753 = vor.u32 %v2751, %v2752
      %v2754 = vshll.u32 2102212464, %v2742
      %v2755 = vshrl.u32 920167782, %v2743
      %v2756 = vor.u32 %v2754, %v2755
      %v2757 = vshll.u32 920167782, %v2742
      %v2758 = vshrl.u32 1326507024, %v2743
      %v2759 = vor.u32 %v2757, %v2758
      %vm2760 = vcmp.lt.s32.totalorder %v2741, 1
      %vm2761 = vcmp.lt.s32.totalorder %v2741, 2
      %vm2762 = vcmp.lt.s32.totalorder %v2741, 3
      %vm2763 = vcmp.lt.s32.totalorder %v2741, 4
      %v2764 = vsel %vm2760, %v2744, %v2747
      %v2765 = vsel %vm2763, %v2753, 2102212464
      %v2766 = vsel %vm2762, %v2750, %v2765
      %v2767 = vsel %vm2761, %v2764, %v2766
      %v2768 = vsel %vm2760, %v2747, %v2750
      %v2769 = vsel %vm2763, %v2756, 920167782
      %v2770 = vsel %vm2762, %v2753, %v2769
      %v2771 = vsel %vm2761, %v2768, %v2770
      %v2772 = vsel %vm2760, %v2750, %v2753
      %v2773 = vsel %vm2763, %v2759, 1326507024
      %v2774 = vsel %vm2762, %v2756, %v2773
      %v2775 = vsel %vm2761, %v2772, %v2774
      %v2776 = vshll.u32 %v2736, 8
      %v2777 = vand.u32 %v2776, 65535
      %v2778 = vshrl.u32 %v2776, 16
      %v2779 = vand.u32 %v2775, 65535
      %v2780 = vshrl.u32 %v2775, 16
      %v2781 = vmul.u32 %v2777, %v2779
      %v2782 = vmul.u32 %v2777, %v2780
      %v2783 = vmul.u32 %v2778, %v2779
      %v2784 = vmul.u32 %v2778, %v2780
      %v2785 = vshll.u32 %v2782, 16
      %v2786 = vshrl.u32 %v2782, 16
      %v2787 = vshll.u32 %v2783, 16
      %v2788 = vshrl.u32 %v2783, 16
      %vm2789 = vc.u32 %v2781, %v2785
      %v2790 = vsel %vm2789, 1, 0
      %v2791 = vadd.s32 %v2781, %v2785
      %v2792 = vadd.s32 %v2784, %v2790
      %vm2793 = vc.u32 %v2791, %v2787
      %v2794 = vsel %vm2793, 1, 0
      %v2795 = vadd.s32 %v2791, %v2787
      %v2796 = vadd.s32 %v2792, %v2794
      %v2797 = vadd.s32 %v2796, %v2786
      %v2798 = vadd.s32 %v2797, %v2788
      %v2799 = vand.u32 %v2776, 65535
      %v2800 = vshrl.u32 %v2776, 16
      %v2801 = vand.u32 %v2771, 65535
      %v2802 = vshrl.u32 %v2771, 16
      %v2803 = vmul.u32 %v2799, %v2801
      %v2804 = vmul.u32 %v2799, %v2802
      %v2805 = vmul.u32 %v2800, %v2801
      %v2806 = vmul.u32 %v2800, %v2802
      %v2807 = vshll.u32 %v2804, 16
      %v2808 = vshrl.u32 %v2804, 16
      %v2809 = vshll.u32 %v2805, 16
      %v2810 = vshrl.u32 %v2805, 16
      %vm2811 = vc.u32 %v2803, %v2807
      %v2812 = vsel %vm2811, 1, 0
      %v2813 = vadd.s32 %v2803, %v2807
      %v2814 = vadd.s32 %v2806, %v2812
      %vm2815 = vc.u32 %v2813, %v2809
      %v2816 = vsel %vm2815, 1, 0
      %v2817 = vadd.s32 %v2813, %v2809
      %v2818 = vadd.s32 %v2814, %v2816
      %v2819 = vadd.s32 %v2818, %v2808
      %v2820 = vadd.s32 %v2819, %v2810
      %v2821 = vmul.u32 %v2776, %v2767
      %v2822 = vadd.s32 %v2798, %v2817
      %vm2823 = vc.u32 %v2798, %v2817
      %v2824 = vadd.s32 %v2820, 1
      %v2825 = vsel %vm2823, %v2824, %v2820
      %v2826 = vadd.s32 %v2821, %v2825
      %v2827 = vadd.s32 %v2826, 536870912
      %v2828 = vshrl.u32 %v2827, 30
      %v2829 = vshll.u32 %v2828, 30
      %v2830 = vsub.s32 %v2826, %v2829
      %vm2831 = vcmp.lt.s32.totalorder %v2830, 0
      %v2832 = vsub.s32 0, %v2830
      %v2833 = vsel %vm2831, %v2832, %v2830
      %v2834 = vclz %v2833
      %v2835 = vsub.s32 %v2834, 2
      %vm2836 = vcmp.gt.s32.totalorder 0, %v2835
      %v2837 = vsel %vm2836, 0, %v2835
      %v2838 = vsub.s32 32, %v2837
      %v2839 = vshll.u32 %v2830, %v2837
      %v2840 = vshrl.u32 %v2822, %v2838
      %v2841 = vor.u32 %v2839, %v2840
      %v2842 = vsub.s32 4294967266, %v2837
      %v2843 = vadd.s32 %v2842, 127
      %v2844 = vshll.u32 %v2843, 23
      %v2845 = vor.u32 4788187, %v2844
      %v2846 = vand.u32 2147483647, %v2845
      %v2848 = vcvt.s32.f32 %v2841
      %v2849 = vmul.f32 %v2848, %v2846
      %v2850 = vxor.u32 %v2849, 2147483648
      %v2851 = vsel %vm2730, %v2850, %v2849
      %v2852 = vsub.s32 4, %v2828
      %v2853 = vsel %vm2730, %v2852, %v2828
      %v2854 = vsel %vm2729, %v369, %v2851
      %v2855 = vsel %vm2729, 0, %v2853
      %v2856 = vmul.f32 %v2854, %v2854
      %v2857 = vmul.f32 %v2856, -0.001358992
      %v2858 = vadd.f32 %v2857, 0.041655596
      %v2859 = vmul.f32 %v2856, %v2858
      %v2860 = vadd.f32 %v2859, -0.4999988
      %v2861 = vmul.f32 %v2856, %v2860
      %v2862 = vadd.f32 1.0, %v2861
      %v2863 = vmul.f32 %v2854, %v2854
      %v2864 = vmul.f32 %v2863, -0.00019511016
      %v2865 = vadd.f32 %v2864, 0.008332121
      %v2866 = vmul.f32 %v2863, %v2865
      %v2867 = vadd.f32 %v2866, -0.16666654
      %v2868 = vmul.f32 %v2863, %v2867
      %v2869 = vadd.f32 %v2868, 1.0
      %v2870 = vmul.f32 %v2869, %v2854
      %vm2871 = vweird.f32 %v369
      %v2872 = vand.u32 %v2855, 3
      %vm2873 = vcmp.lt.s32.totalorder %v2872, 2
      %vm2874 = vcmp.eq.s32.totalorder %v2872, 0
      %v2875 = vxor.u32 %v2870, 2147483648
      %v2876 = vsel %vm2874, %v2862, %v2875
      %vm2877 = vcmp.eq.s32.totalorder %v2872, 2
      %v2878 = vxor.u32 %v2862, 2147483648
      %v2879 = vsel %vm2877, %v2878, %v2870
      %v2880 = vsel %vm2873, %v2876, %v2879
      %v2881 = vsel %vm2871, nan, %v2880
      %v2882 = vand.u32 2147483647, %v370
      %vm2883 = vcmp.le.f32.partialorder %v2882, 0.7853982
      %vm2884 = vcmp.lt.s32.totalorder %v370, 0
      %v2885 = vand.u32 %v370, 2139095040
      %v2886 = vshrl.u32 %v2885, 23
      %v2887 = vsub.s32 %v2886, 127
      %v2888 = vand.u32 2147483647, %v370
      %v2889 = vand.u32 %v2888, 8388607
      %v2890 = vor.u32 %v2889, 8388608
      %v2891 = vsub.s32 0, %v2890
      %v2892 = vadd.s32 %v2887, 1
      %vm2893 = vcmp.gt.s32.totalorder %v2892, 0
      %v2894 = vsel %vm2893, %v2892, 0
      %v2895 = vshrl.u32 %v2894, 5
      %v2896 = vand.u32 %v2894, 31
      %v2897 = vsub.s32 32, %v2896
      %v2898 = vshrl.u32 683565275, %v2897
      %v2899 = vshll.u32 683565275, %v2896
      %v2900 = vshrl.u32 2475754826, %v2897
      %v2901 = vor.u32 %v2899, %v2900
      %v2902 = vshll.u32 2475754826, %v2896
      %v2903 = vshrl.u32 2131351028, %v2897
      %v2904 = vor.u32 %v2902, %v2903
      %v2905 = vshll.u32 2131351028, %v2896
      %v2906 = vshrl.u32 2102212464, %v2897
      %v2907 = vor.u32 %v2905, %v2906
      %v2908 = vshll.u32 2102212464, %v2896
      %v2909 = vshrl.u32 920167782, %v2897
      %v2910 = vor.u32 %v2908, %v2909
      %v2911 = vshll.u32 920167782, %v2896
      %v2912 = vshrl.u32 1326507024, %v2897
      %v2913 = vor.u32 %v2911, %v2912
      %vm2914 = vcmp.lt.s32.totalorder %v2895, 1
      %vm2915 = vcmp.lt.s32.totalorder %v2895, 2
      %vm2916 = vcmp.lt.s32.totalorder %v2895, 3
      %vm2917 = vcmp.lt.s32.totalorder %v2895, 4
      %v2918 = vsel %vm2914, %v2898, %v2901
      %v2919 = vsel %vm2917, %v2907, 2102212464
      %v2920 = vsel %vm2916, %v2904, %v2919
      %v2921 = vsel %vm2915, %v2918, %v2920
      %v2922 = vsel %vm2914, %v2901, %v2904
      %v2923 = vsel %vm2917, %v2910, 920167782
      %v2924 = vsel %vm2916, %v2907, %v2923
      %v2925 = vsel %vm2915, %v2922, %v2924
      %v2926 = vsel %vm2914, %v2904, %v2907
      %v2927 = vsel %vm2917, %v2913, 1326507024
      %v2928 = vsel %vm2916, %v2910, %v2927
      %v2929 = vsel %vm2915, %v2926, %v2928
      %v2930 = vshll.u32 %v2890, 8
      %v2931 = vand.u32 %v2930, 65535
      %v2932 = vshrl.u32 %v2930, 16
      %v2933 = vand.u32 %v2929, 65535
      %v2934 = vshrl.u32 %v2929, 16
      %v2935 = vmul.u32 %v2931, %v2933
      %v2936 = vmul.u32 %v2931, %v2934
      %v2937 = vmul.u32 %v2932, %v2933
      %v2938 = vmul.u32 %v2932, %v2934
      %v2939 = vshll.u32 %v2936, 16
      %v2940 = vshrl.u32 %v2936, 16
      %v2941 = vshll.u32 %v2937, 16
      %v2942 = vshrl.u32 %v2937, 16
      %vm2943 = vc.u32 %v2935, %v2939
      %v2944 = vsel %vm2943, 1, 0
      %v2945 = vadd.s32 %v2935, %v2939
      %v2946 = vadd.s32 %v2938, %v2944
      %vm2947 = vc.u32 %v2945, %v2941
      %v2948 = vsel %vm2947, 1, 0
      %v2949 = vadd.s32 %v2945, %v2941
      %v2950 = vadd.s32 %v2946, %v2948
      %v2951 = vadd.s32 %v2950, %v2940
      %v2952 = vadd.s32 %v2951, %v2942
      %v2953 = vand.u32 %v2930, 65535
      %v2954 = vshrl.u32 %v2930, 16
      %v2955 = vand.u32 %v2925, 65535
      %v2956 = vshrl.u32 %v2925, 16
      %v2957 = vmul.u32 %v2953, %v2955
      %v2958 = vmul.u32 %v2953, %v2956
      %v2959 = vmul.u32 %v2954, %v2955
      %v2960 = vmul.u32 %v2954, %v2956
      %v2961 = vshll.u32 %v2958, 16
      %v2962 = vshrl.u32 %v2958, 16
      %v2963 = vshll.u32 %v2959, 16
      %v2964 = vshrl.u32 %v2959, 16
      %vm2965 = vc.u32 %v2957, %v2961
      %v2966 = vsel %vm2965, 1, 0
      %v2967 = vadd.s32 %v2957, %v2961
      %v2968 = vadd.s32 %v2960, %v2966
      %vm2969 = vc.u32 %v2967, %v2963
      %v2970 = vsel %vm2969, 1, 0
      %v2971 = vadd.s32 %v2967, %v2963
      %v2972 = vadd.s32 %v2968, %v2970
      %v2973 = vadd.s32 %v2972, %v2962
      %v2974 = vadd.s32 %v2973, %v2964
      %v2975 = vmul.u32 %v2930, %v2921
      %v2976 = vadd.s32 %v2952, %v2971
      %vm2977 = vc.u32 %v2952, %v2971
      %v2978 = vadd.s32 %v2974, 1
      %v2979 = vsel %vm2977, %v2978, %v2974
      %v2980 = vadd.s32 %v2975, %v2979
      %v2981 = vadd.s32 %v2980, 536870912
      %v2982 = vshrl.u32 %v2981, 30
      %v2983 = vshll.u32 %v2982, 30
      %v2984 = vsub.s32 %v2980, %v2983
      %vm2985 = vcmp.lt.s32.totalorder %v2984, 0
      %v2986 = vsub.s32 0, %v2984
      %v2987 = vsel %vm2985, %v2986, %v2984
      %v2988 = vclz %v2987
      %v2989 = vsub.s32 %v2988, 2
      %vm2990 = vcmp.gt.s32.totalorder 0, %v2989
      %v2991 = vsel %vm2990, 0, %v2989
      %v2992 = vsub.s32 32, %v2991
      %v2993 = vshll.u32 %v2984, %v2991
      %v2994 = vshrl.u32 %v2976, %v2992
      %v2995 = vor.u32 %v2993, %v2994
      %v2996 = vsub.s32 4294967266, %v2991
      %v2997 = vadd.s32 %v2996, 127
      %v2998 = vshll.u32 %v2997, 23
      %v2999 = vor.u32 4788187, %v2998
      %v3000 = vand.u32 2147483647, %v2999
      %v3002 = vcvt.s32.f32 %v2995
      %v3003 = vmul.f32 %v3002, %v3000
      %v3004 = vxor.u32 %v3003, 2147483648
      %v3005 = vsel %vm2884, %v3004, %v3003
      %v3006 = vsub.s32 4, %v2982
      %v3007 = vsel %vm2884, %v3006, %v2982
      %v3008 = vsel %vm2883, %v370, %v3005
      %v3009 = vsel %vm2883, 0, %v3007
      %v3010 = vmul.f32 %v3008, %v3008
      %v3011 = vmul.f32 %v3010, -0.001358992
      %v3012 = vadd.f32 %v3011, 0.041655596
      %v3013 = vmul.f32 %v3010, %v3012
      %v3014 = vadd.f32 %v3013, -0.4999988
      %v3015 = vmul.f32 %v3010, %v3014
      %v3016 = vadd.f32 1.0, %v3015
      %v3017 = vmul.f32 %v3008, %v3008
      %v3018 = vmul.f32 %v3017, -0.00019511016
      %v3019 = vadd.f32 %v3018, 0.008332121
      %v3020 = vmul.f32 %v3017, %v3019
      %v3021 = vadd.f32 %v3020, -0.16666654
      %v3022 = vmul.f32 %v3017, %v3021
      %v3023 = vadd.f32 %v3022, 1.0
      %v3024 = vmul.f32 %v3023, %v3008
      %vm3025 = vweird.f32 %v370
      %v3026 = vand.u32 %v3009, 3
      %vm3027 = vcmp.lt.s32.totalorder %v3026, 2
      %vm3028 = vcmp.eq.s32.totalorder %v3026, 0
      %v3029 = vxor.u32 %v3024, 2147483648
      %v3030 = vsel %vm3028, %v3016, %v3029
      %vm3031 = vcmp.eq.s32.totalorder %v3026, 2
      %v3032 = vxor.u32 %v3016, 2147483648
      %v3033 = vsel %vm3031, %v3032, %v3024
      %v3034 = vsel %vm3027, %v3030, %v3033
      %v3035 = vsel %vm3025, nan, %v3034
      %v3036 = vand.u32 2147483647, %v371
      %vm3037 = vcmp.le.f32.partialorder %v3036, 0.7853982
      %vm3038 = vcmp.lt.s32.totalorder %v371, 0
      %v3039 = vand.u32 %v371, 2139095040
      %v3040 = vshrl.u32 %v3039, 23
      %v3041 = vsub.s32 %v3040, 127
      %v3042 = vand.u32 2147483647, %v371
      %v3043 = vand.u32 %v3042, 8388607
      %v3044 = vor.u32 %v3043, 8388608
      %v3045 = vsub.s32 0, %v3044
      %v3046 = vadd.s32 %v3041, 1
      %vm3047 = vcmp.gt.s32.totalorder %v3046, 0
      %v3048 = vsel %vm3047, %v3046, 0
      %v3049 = vshrl.u32 %v3048, 5
      %v3050 = vand.u32 %v3048, 31
      %v3051 = vsub.s32 32, %v3050
      %v3052 = vshrl.u32 683565275, %v3051
      %v3053 = vshll.u32 683565275, %v3050
      %v3054 = vshrl.u32 2475754826, %v3051
      %v3055 = vor.u32 %v3053, %v3054
      %v3056 = vshll.u32 2475754826, %v3050
      %v3057 = vshrl.u32 2131351028, %v3051
      %v3058 = vor.u32 %v3056, %v3057
      %v3059 = vshll.u32 2131351028, %v3050
      %v3060 = vshrl.u32 2102212464, %v3051
      %v3061 = vor.u32 %v3059, %v3060
      %v3062 = vshll.u32 2102212464, %v3050
      %v3063 = vshrl.u32 920167782, %v3051
      %v3064 = vor.u32 %v3062, %v3063
      %v3065 = vshll.u32 920167782, %v3050
      %v3066 = vshrl.u32 1326507024, %v3051
      %v3067 = vor.u32 %v3065, %v3066
      %vm3068 = vcmp.lt.s32.totalorder %v3049, 1
      %vm3069 = vcmp.lt.s32.totalorder %v3049, 2
      %vm3070 = vcmp.lt.s32.totalorder %v3049, 3
      %vm3071 = vcmp.lt.s32.totalorder %v3049, 4
      %v3072 = vsel %vm3068, %v3052, %v3055
      %v3073 = vsel %vm3071, %v3061, 2102212464
      %v3074 = vsel %vm3070, %v3058, %v3073
      %v3075 = vsel %vm3069, %v3072, %v3074
      %v3076 = vsel %vm3068, %v3055, %v3058
      %v3077 = vsel %vm3071, %v3064, 920167782
      %v3078 = vsel %vm3070, %v3061, %v3077
      %v3079 = vsel %vm3069, %v3076, %v3078
      %v3080 = vsel %vm3068, %v3058, %v3061
      %v3081 = vsel %vm3071, %v3067, 1326507024
      %v3082 = vsel %vm3070, %v3064, %v3081
      %v3083 = vsel %vm3069, %v3080, %v3082
      %v3084 = vshll.u32 %v3044, 8
      %v3085 = vand.u32 %v3084, 65535
      %v3086 = vshrl.u32 %v3084, 16
      %v3087 = vand.u32 %v3083, 65535
      %v3088 = vshrl.u32 %v3083, 16
      %v3089 = vmul.u32 %v3085, %v3087
      %v3090 = vmul.u32 %v3085, %v3088
      %v3091 = vmul.u32 %v3086, %v3087
      %v3092 = vmul.u32 %v3086, %v3088
      %v3093 = vshll.u32 %v3090, 16
      %v3094 = vshrl.u32 %v3090, 16
      %v3095 = vshll.u32 %v3091, 16
      %v3096 = vshrl.u32 %v3091, 16
      %vm3097 = vc.u32 %v3089, %v3093
      %v3098 = vsel %vm3097, 1, 0
      %v3099 = vadd.s32 %v3089, %v3093
      %v3100 = vadd.s32 %v3092, %v3098
      %vm3101 = vc.u32 %v3099, %v3095
      %v3102 = vsel %vm3101, 1, 0
      %v3103 = vadd.s32 %v3099, %v3095
      %v3104 = vadd.s32 %v3100, %v3102
      %v3105 = vadd.s32 %v3104, %v3094
      %v3106 = vadd.s32 %v3105, %v3096
      %v3107 = vand.u32 %v3084, 65535
      %v3108 = vshrl.u32 %v3084, 16
      %v3109 = vand.u32 %v3079, 65535
      %v3110 = vshrl.u32 %v3079, 16
      %v3111 = vmul.u32 %v3107, %v3109
      %v3112 = vmul.u32 %v3107, %v3110
      %v3113 = vmul.u32 %v3108, %v3109
      %v3114 = vmul.u32 %v3108, %v3110
      %v3115 = vshll.u32 %v3112, 16
      %v3116 = vshrl.u32 %v3112, 16
      %v3117 = vshll.u32 %v3113, 16
      %v3118 = vshrl.u32 %v3113, 16
      %vm3119 = vc.u32 %v3111, %v3115
      %v3120 = vsel %vm3119, 1, 0
      %v3121 = vadd.s32 %v3111, %v3115
      %v3122 = vadd.s32 %v3114, %v3120
      %vm3123 = vc.u32 %v3121, %v3117
      %v3124 = vsel %vm3123, 1, 0
      %v3125 = vadd.s32 %v3121, %v3117
      %v3126 = vadd.s32 %v3122, %v3124
      %v3127 = vadd.s32 %v3126, %v3116
      %v3128 = vadd.s32 %v3127, %v3118
      %v3129 = vmul.u32 %v3084, %v3075
      %v3130 = vadd.s32 %v3106, %v3125
      %vm3131 = vc.u32 %v3106, %v3125
      %v3132 = vadd.s32 %v3128, 1
      %v3133 = vsel %vm3131, %v3132, %v3128
      %v3134 = vadd.s32 %v3129, %v3133
      %v3135 = vadd.s32 %v3134, 536870912
      %v3136 = vshrl.u32 %v3135, 30
      %v3137 = vshll.u32 %v3136, 30
      %v3138 = vsub.s32 %v3134, %v3137
      %vm3139 = vcmp.lt.s32.totalorder %v3138, 0
      %v3140 = vsub.s32 0, %v3138
      %v3141 = vsel %vm3139, %v3140, %v3138
      %v3142 = vclz %v3141
      %v3143 = vsub.s32 %v3142, 2
      %vm3144 = vcmp.gt.s32.totalorder 0, %v3143
      %v3145 = vsel %vm3144, 0, %v3143
      %v3146 = vsub.s32 32, %v3145
      %v3147 = vshll.u32 %v3138, %v3145
      %v3148 = vshrl.u32 %v3130, %v3146
      %v3149 = vor.u32 %v3147, %v3148
      %v3150 = vsub.s32 4294967266, %v3145
      %v3151 = vadd.s32 %v3150, 127
      %v3152 = vshll.u32 %v3151, 23
      %v3153 = vor.u32 4788187, %v3152
      %v3154 = vand.u32 2147483647, %v3153
      %v3156 = vcvt.s32.f32 %v3149
      %v3157 = vmul.f32 %v3156, %v3154
      %v3158 = vxor.u32 %v3157, 2147483648
      %v3159 = vsel %vm3038, %v3158, %v3157
      %v3160 = vsub.s32 4, %v3136
      %v3161 = vsel %vm3038, %v3160, %v3136
      %v3162 = vsel %vm3037, %v371, %v3159
      %v3163 = vsel %vm3037, 0, %v3161
      %v3164 = vmul.f32 %v3162, %v3162
      %v3165 = vmul.f32 %v3164, -0.001358992
      %v3166 = vadd.f32 %v3165, 0.041655596
      %v3167 = vmul.f32 %v3164, %v3166
      %v3168 = vadd.f32 %v3167, -0.4999988
      %v3169 = vmul.f32 %v3164, %v3168
      %v3170 = vadd.f32 1.0, %v3169
      %v3171 = vmul.f32 %v3162, %v3162
      %v3172 = vmul.f32 %v3171, -0.00019511016
      %v3173 = vadd.f32 %v3172, 0.008332121
      %v3174 = vmul.f32 %v3171, %v3173
      %v3175 = vadd.f32 %v3174, -0.16666654
      %v3176 = vmul.f32 %v3171, %v3175
      %v3177 = vadd.f32 %v3176, 1.0
      %v3178 = vmul.f32 %v3177, %v3162
      %vm3179 = vweird.f32 %v371
      %v3180 = vand.u32 %v3163, 3
      %vm3181 = vcmp.lt.s32.totalorder %v3180, 2
      %vm3182 = vcmp.eq.s32.totalorder %v3180, 0
      %v3183 = vxor.u32 %v3178, 2147483648
      %v3184 = vsel %vm3182, %v3170, %v3183
      %vm3185 = vcmp.eq.s32.totalorder %v3180, 2
      %v3186 = vxor.u32 %v3170, 2147483648
      %v3187 = vsel %vm3185, %v3186, %v3178
      %v3188 = vsel %vm3181, %v3184, %v3187
      %v3189 = vsel %vm3179, nan, %v3188
      %v3190 = vand.u32 2147483647, %v372
      %vm3191 = vcmp.le.f32.partialorder %v3190, 0.7853982
      %vm3192 = vcmp.lt.s32.totalorder %v372, 0
      %v3193 = vand.u32 %v372, 2139095040
      %v3194 = vshrl.u32 %v3193, 23
      %v3195 = vsub.s32 %v3194, 127
      %v3196 = vand.u32 2147483647, %v372
      %v3197 = vand.u32 %v3196, 8388607
      %v3198 = vor.u32 %v3197, 8388608
      %v3199 = vsub.s32 0, %v3198
      %v3200 = vadd.s32 %v3195, 1
      %vm3201 = vcmp.gt.s32.totalorder %v3200, 0
      %v3202 = vsel %vm3201, %v3200, 0
      %v3203 = vshrl.u32 %v3202, 5
      %v3204 = vand.u32 %v3202, 31
      %v3205 = vsub.s32 32, %v3204
      %v3206 = vshrl.u32 683565275, %v3205
      %v3207 = vshll.u32 683565275, %v3204
      %v3208 = vshrl.u32 2475754826, %v3205
      %v3209 = vor.u32 %v3207, %v3208
      %v3210 = vshll.u32 2475754826, %v3204
      %v3211 = vshrl.u32 2131351028, %v3205
      %v3212 = vor.u32 %v3210, %v3211
      %v3213 = vshll.u32 2131351028, %v3204
      %v3214 = vshrl.u32 2102212464, %v3205
      %v3215 = vor.u32 %v3213, %v3214
      %v3216 = vshll.u32 2102212464, %v3204
      %v3217 = vshrl.u32 920167782, %v3205
      %v3218 = vor.u32 %v3216, %v3217
      %v3219 = vshll.u32 920167782, %v3204
      %v3220 = vshrl.u32 1326507024, %v3205
      %v3221 = vor.u32 %v3219, %v3220
      %vm3222 = vcmp.lt.s32.totalorder %v3203, 1
      %vm3223 = vcmp.lt.s32.totalorder %v3203, 2
      %vm3224 = vcmp.lt.s32.totalorder %v3203, 3
      %vm3225 = vcmp.lt.s32.totalorder %v3203, 4
      %v3226 = vsel %vm3222, %v3206, %v3209
      %v3227 = vsel %vm3225, %v3215, 2102212464
      %v3228 = vsel %vm3224, %v3212, %v3227
      %v3229 = vsel %vm3223, %v3226, %v3228
      %v3230 = vsel %vm3222, %v3209, %v3212
      %v3231 = vsel %vm3225, %v3218, 920167782
      %v3232 = vsel %vm3224, %v3215, %v3231
      %v3233 = vsel %vm3223, %v3230, %v3232
      %v3234 = vsel %vm3222, %v3212, %v3215
      %v3235 = vsel %vm3225, %v3221, 1326507024
      %v3236 = vsel %vm3224, %v3218, %v3235
      %v3237 = vsel %vm3223, %v3234, %v3236
      %v3238 = vshll.u32 %v3198, 8
      %v3239 = vand.u32 %v3238, 65535
      %v3240 = vshrl.u32 %v3238, 16
      %v3241 = vand.u32 %v3237, 65535
      %v3242 = vshrl.u32 %v3237, 16
      %v3243 = vmul.u32 %v3239, %v3241
      %v3244 = vmul.u32 %v3239, %v3242
      %v3245 = vmul.u32 %v3240, %v3241
      %v3246 = vmul.u32 %v3240, %v3242
      %v3247 = vshll.u32 %v3244, 16
      %v3248 = vshrl.u32 %v3244, 16
      %v3249 = vshll.u32 %v3245, 16
      %v3250 = vshrl.u32 %v3245, 16
      %vm3251 = vc.u32 %v3243, %v3247
      %v3252 = vsel %vm3251, 1, 0
      %v3253 = vadd.s32 %v3243, %v3247
      %v3254 = vadd.s32 %v3246, %v3252
      %vm3255 = vc.u32 %v3253, %v3249
      %v3256 = vsel %vm3255, 1, 0
      %v3257 = vadd.s32 %v3253, %v3249
      %v3258 = vadd.s32 %v3254, %v3256
      %v3259 = vadd.s32 %v3258, %v3248
      %v3260 = vadd.s32 %v3259, %v3250
      %v3261 = vand.u32 %v3238, 65535
      %v3262 = vshrl.u32 %v3238, 16
      %v3263 = vand.u32 %v3233, 65535
      %v3264 = vshrl.u32 %v3233, 16
      %v3265 = vmul.u32 %v3261, %v3263
      %v3266 = vmul.u32 %v3261, %v3264
      %v3267 = vmul.u32 %v3262, %v3263
      %v3268 = vmul.u32 %v3262, %v3264
      %v3269 = vshll.u32 %v3266, 16
      %v3270 = vshrl.u32 %v3266, 16
      %v3271 = vshll.u32 %v3267, 16
      %v3272 = vshrl.u32 %v3267, 16
      %vm3273 = vc.u32 %v3265, %v3269
      %v3274 = vsel %vm3273, 1, 0
      %v3275 = vadd.s32 %v3265, %v3269
      %v3276 = vadd.s32 %v3268, %v3274
      %vm3277 = vc.u32 %v3275, %v3271
      %v3278 = vsel %vm3277, 1, 0
      %v3279 = vadd.s32 %v3275, %v3271
      %v3280 = vadd.s32 %v3276, %v3278
      %v3281 = vadd.s32 %v3280, %v3270
      %v3282 = vadd.s32 %v3281, %v3272
      %v3283 = vmul.u32 %v3238, %v3229
      %v3284 = vadd.s32 %v3260, %v3279
      %vm3285 = vc.u32 %v3260, %v3279
      %v3286 = vadd.s32 %v3282, 1
      %v3287 = vsel %vm3285, %v3286, %v3282
      %v3288 = vadd.s32 %v3283, %v3287
      %v3289 = vadd.s32 %v3288, 536870912
      %v3290 = vshrl.u32 %v3289, 30
      %v3291 = vshll.u32 %v3290, 30
      %v3292 = vsub.s32 %v3288, %v3291
      %vm3293 = vcmp.lt.s32.totalorder %v3292, 0
      %v3294 = vsub.s32 0, %v3292
      %v3295 = vsel %vm3293, %v3294, %v3292
      %v3296 = vclz %v3295
      %v3297 = vsub.s32 %v3296, 2
      %vm3298 = vcmp.gt.s32.totalorder 0, %v3297
      %v3299 = vsel %vm3298, 0, %v3297
      %v3300 = vsub.s32 32, %v3299
      %v3301 = vshll.u32 %v3292, %v3299
      %v3302 = vshrl.u32 %v3284, %v3300
      %v3303 = vor.u32 %v3301, %v3302
      %v3304 = vsub.s32 4294967266, %v3299
      %v3305 = vadd.s32 %v3304, 127
      %v3306 = vshll.u32 %v3305, 23
      %v3307 = vor.u32 4788187, %v3306
      %v3308 = vand.u32 2147483647, %v3307
      %v3310 = vcvt.s32.f32 %v3303
      %v3311 = vmul.f32 %v3310, %v3308
      %v3312 = vxor.u32 %v3311, 2147483648
      %v3313 = vsel %vm3192, %v3312, %v3311
      %v3314 = vsub.s32 4, %v3290
      %v3315 = vsel %vm3192, %v3314, %v3290
      %v3316 = vsel %vm3191, %v372, %v3313
      %v3317 = vsel %vm3191, 0, %v3315
      %v3318 = vmul.f32 %v3316, %v3316
      %v3319 = vmul.f32 %v3318, -0.001358992
      %v3320 = vadd.f32 %v3319, 0.041655596
      %v3321 = vmul.f32 %v3318, %v3320
      %v3322 = vadd.f32 %v3321, -0.4999988
      %v3323 = vmul.f32 %v3318, %v3322
      %v3324 = vadd.f32 1.0, %v3323
      %v3325 = vmul.f32 %v3316, %v3316
      %v3326 = vmul.f32 %v3325, -0.00019511016
      %v3327 = vadd.f32 %v3326, 0.008332121
      %v3328 = vmul.f32 %v3325, %v3327
      %v3329 = vadd.f32 %v3328, -0.16666654
      %v3330 = vmul.f32 %v3325, %v3329
      %v3331 = vadd.f32 %v3330, 1.0
      %v3332 = vmul.f32 %v3331, %v3316
      %vm3333 = vweird.f32 %v372
      %v3334 = vand.u32 %v3317, 3
      %vm3335 = vcmp.lt.s32.totalorder %v3334, 2
      %vm3336 = vcmp.eq.s32.totalorder %v3334, 0
      %v3337 = vxor.u32 %v3332, 2147483648
      %v3338 = vsel %vm3336, %v3324, %v3337
      %vm3339 = vcmp.eq.s32.totalorder %v3334, 2
      %v3340 = vxor.u32 %v3324, 2147483648
      %v3341 = vsel %vm3339, %v3340, %v3332
      %v3342 = vsel %vm3335, %v3338, %v3341
      %v3343 = vsel %vm3333, nan, %v3342
      %v3344 = vand.u32 2147483647, %v373
      %vm3345 = vcmp.le.f32.partialorder %v3344, 0.7853982
      %vm3346 = vcmp.lt.s32.totalorder %v373, 0
      %v3347 = vand.u32 %v373, 2139095040
      %v3348 = vshrl.u32 %v3347, 23
      %v3349 = vsub.s32 %v3348, 127
      %v3350 = vand.u32 2147483647, %v373
      %v3351 = vand.u32 %v3350, 8388607
      %v3352 = vor.u32 %v3351, 8388608
      %v3353 = vsub.s32 0, %v3352
      %v3354 = vadd.s32 %v3349, 1
      %vm3355 = vcmp.gt.s32.totalorder %v3354, 0
      %v3356 = vsel %vm3355, %v3354, 0
      %v3357 = vshrl.u32 %v3356, 5
      %v3358 = vand.u32 %v3356, 31
      %v3359 = vsub.s32 32, %v3358
      %v3360 = vshrl.u32 683565275, %v3359
      %v3361 = vshll.u32 683565275, %v3358
      %v3362 = vshrl.u32 2475754826, %v3359
      %v3363 = vor.u32 %v3361, %v3362
      %v3364 = vshll.u32 2475754826, %v3358
      %v3365 = vshrl.u32 2131351028, %v3359
      %v3366 = vor.u32 %v3364, %v3365
      %v3367 = vshll.u32 2131351028, %v3358
      %v3368 = vshrl.u32 2102212464, %v3359
      %v3369 = vor.u32 %v3367, %v3368
      %v3370 = vshll.u32 2102212464, %v3358
      %v3371 = vshrl.u32 920167782, %v3359
      %v3372 = vor.u32 %v3370, %v3371
      %v3373 = vshll.u32 920167782, %v3358
      %v3374 = vshrl.u32 1326507024, %v3359
      %v3375 = vor.u32 %v3373, %v3374
      %vm3376 = vcmp.lt.s32.totalorder %v3357, 1
      %vm3377 = vcmp.lt.s32.totalorder %v3357, 2
      %vm3378 = vcmp.lt.s32.totalorder %v3357, 3
      %vm3379 = vcmp.lt.s32.totalorder %v3357, 4
      %v3380 = vsel %vm3376, %v3360, %v3363
      %v3381 = vsel %vm3379, %v3369, 2102212464
      %v3382 = vsel %vm3378, %v3366, %v3381
      %v3383 = vsel %vm3377, %v3380, %v3382
      %v3384 = vsel %vm3376, %v3363, %v3366
      %v3385 = vsel %vm3379, %v3372, 920167782
      %v3386 = vsel %vm3378, %v3369, %v3385
      %v3387 = vsel %vm3377, %v3384, %v3386
      %v3388 = vsel %vm3376, %v3366, %v3369
      %v3389 = vsel %vm3379, %v3375, 1326507024
      %v3390 = vsel %vm3378, %v3372, %v3389
      %v3391 = vsel %vm3377, %v3388, %v3390
      %v3392 = vshll.u32 %v3352, 8
      %v3393 = vand.u32 %v3392, 65535
      %v3394 = vshrl.u32 %v3392, 16
      %v3395 = vand.u32 %v3391, 65535
      %v3396 = vshrl.u32 %v3391, 16
      %v3397 = vmul.u32 %v3393, %v3395
      %v3398 = vmul.u32 %v3393, %v3396
      %v3399 = vmul.u32 %v3394, %v3395
      %v3400 = vmul.u32 %v3394, %v3396
      %v3401 = vshll.u32 %v3398, 16
      %v3402 = vshrl.u32 %v3398, 16
      %v3403 = vshll.u32 %v3399, 16
      %v3404 = vshrl.u32 %v3399, 16
      %vm3405 = vc.u32 %v3397, %v3401
      %v3406 = vsel %vm3405, 1, 0
      %v3407 = vadd.s32 %v3397, %v3401
      %v3408 = vadd.s32 %v3400, %v3406
      %vm3409 = vc.u32 %v3407, %v3403
      %v3410 = vsel %vm3409, 1, 0
      %v3411 = vadd.s32 %v3407, %v3403
      %v3412 = vadd.s32 %v3408, %v3410
      %v3413 = vadd.s32 %v3412, %v3402
      %v3414 = vadd.s32 %v3413, %v3404
      %v3415 = vand.u32 %v3392, 65535
      %v3416 = vshrl.u32 %v3392, 16
      %v3417 = vand.u32 %v3387, 65535
      %v3418 = vshrl.u32 %v3387, 16
      %v3419 = vmul.u32 %v3415, %v3417
      %v3420 = vmul.u32 %v3415, %v3418
      %v3421 = vmul.u32 %v3416, %v3417
      %v3422 = vmul.u32 %v3416, %v3418
      %v3423 = vshll.u32 %v3420, 16
      %v3424 = vshrl.u32 %v3420, 16
      %v3425 = vshll.u32 %v3421, 16
      %v3426 = vshrl.u32 %v3421, 16
      %vm3427 = vc.u32 %v3419, %v3423
      %v3428 = vsel %vm3427, 1, 0
      %v3429 = vadd.s32 %v3419, %v3423
      %v3430 = vadd.s32 %v3422, %v3428
      %vm3431 = vc.u32 %v3429, %v3425
      %v3432 = vsel %vm3431, 1, 0
      %v3433 = vadd.s32 %v3429, %v3425
      %v3434 = vadd.s32 %v3430, %v3432
      %v3435 = vadd.s32 %v3434, %v3424
      %v3436 = vadd.s32 %v3435, %v3426
      %v3437 = vmul.u32 %v3392, %v3383
      %v3438 = vadd.s32 %v3414, %v3433
      %vm3439 = vc.u32 %v3414, %v3433
      %v3440 = vadd.s32 %v3436, 1
      %v3441 = vsel %vm3439, %v3440, %v3436
      %v3442 = vadd.s32 %v3437, %v3441
      %v3443 = vadd.s32 %v3442, 536870912
      %v3444 = vshrl.u32 %v3443, 30
      %v3445 = vshll.u32 %v3444, 30
      %v3446 = vsub.s32 %v3442, %v3445
      %vm3447 = vcmp.lt.s32.totalorder %v3446, 0
      %v3448 = vsub.s32 0, %v3446
      %v3449 = vsel %vm3447, %v3448, %v3446
      %v3450 = vclz %v3449
      %v3451 = vsub.s32 %v3450, 2
      %vm3452 = vcmp.gt.s32.totalorder 0, %v3451
      %v3453 = vsel %vm3452, 0, %v3451
      %v3454 = vsub.s32 32, %v3453
      %v3455 = vshll.u32 %v3446, %v3453
      %v3456 = vshrl.u32 %v3438, %v3454
      %v3457 = vor.u32 %v3455, %v3456
      %v3458 = vsub.s32 4294967266, %v3453
      %v3459 = vadd.s32 %v3458, 127
      %v3460 = vshll.u32 %v3459, 23
      %v3461 = vor.u32 4788187, %v3460
      %v3462 = vand.u32 2147483647, %v3461
      %v3464 = vcvt.s32.f32 %v3457
      %v3465 = vmul.f32 %v3464, %v3462
      %v3466 = vxor.u32 %v3465, 2147483648
      %v3467 = vsel %vm3346, %v3466, %v3465
      %v3468 = vsub.s32 4, %v3444
      %v3469 = vsel %vm3346, %v3468, %v3444
      %v3470 = vsel %vm3345, %v373, %v3467
      %v3471 = vsel %vm3345, 0, %v3469
      %v3472 = vmul.f32 %v3470, %v3470
      %v3473 = vmul.f32 %v3472, -0.001358992
      %v3474 = vadd.f32 %v3473, 0.041655596
      %v3475 = vmul.f32 %v3472, %v3474
      %v3476 = vadd.f32 %v3475, -0.4999988
      %v3477 = vmul.f32 %v3472, %v3476
      %v3478 = vadd.f32 1.0, %v3477
      %v3479 = vmul.f32 %v3470, %v3470
      %v3480 = vmul.f32 %v3479, -0.00019511016
      %v3481 = vadd.f32 %v3480, 0.008332121
      %v3482 = vmul.f32 %v3479, %v3481
      %v3483 = vadd.f32 %v3482, -0.16666654
      %v3484 = vmul.f32 %v3479, %v3483
      %v3485 = vadd.f32 %v3484, 1.0
      %v3486 = vmul.f32 %v3485, %v3470
      %vm3487 = vweird.f32 %v373
      %v3488 = vand.u32 %v3471, 3
      %vm3489 = vcmp.lt.s32.totalorder %v3488, 2
      %vm3490 = vcmp.eq.s32.totalorder %v3488, 0
      %v3491 = vxor.u32 %v3486, 2147483648
      %v3492 = vsel %vm3490, %v3478, %v3491
      %vm3493 = vcmp.eq.s32.totalorder %v3488, 2
      %v3494 = vxor.u32 %v3478, 2147483648
      %v3495 = vsel %vm3493, %v3494, %v3486
      %v3496 = vsel %vm3489, %v3492, %v3495
      %v3497 = vsel %vm3487, nan, %v3496
      %v3498 = vand.u32 2147483647, %v374
      %vm3499 = vcmp.le.f32.partialorder %v3498, 0.7853982
      %vm3500 = vcmp.lt.s32.totalorder %v374, 0
      %v3501 = vand.u32 %v374, 2139095040
      %v3502 = vshrl.u32 %v3501, 23
      %v3503 = vsub.s32 %v3502, 127
      %v3504 = vand.u32 2147483647, %v374
      %v3505 = vand.u32 %v3504, 8388607
      %v3506 = vor.u32 %v3505, 8388608
      %v3507 = vsub.s32 0, %v3506
      %v3508 = vadd.s32 %v3503, 1
      %vm3509 = vcmp.gt.s32.totalorder %v3508, 0
      %v3510 = vsel %vm3509, %v3508, 0
      %v3511 = vshrl.u32 %v3510, 5
      %v3512 = vand.u32 %v3510, 31
      %v3513 = vsub.s32 32, %v3512
      %v3514 = vshrl.u32 683565275, %v3513
      %v3515 = vshll.u32 683565275, %v3512
      %v3516 = vshrl.u32 2475754826, %v3513
      %v3517 = vor.u32 %v3515, %v3516
      %v3518 = vshll.u32 2475754826, %v3512
      %v3519 = vshrl.u32 2131351028, %v3513
      %v3520 = vor.u32 %v3518, %v3519
      %v3521 = vshll.u32 2131351028, %v3512
      %v3522 = vshrl.u32 2102212464, %v3513
      %v3523 = vor.u32 %v3521, %v3522
      %v3524 = vshll.u32 2102212464, %v3512
      %v3525 = vshrl.u32 920167782, %v3513
      %v3526 = vor.u32 %v3524, %v3525
      %v3527 = vshll.u32 920167782, %v3512
      %v3528 = vshrl.u32 1326507024, %v3513
      %v3529 = vor.u32 %v3527, %v3528
      %vm3530 = vcmp.lt.s32.totalorder %v3511, 1
      %vm3531 = vcmp.lt.s32.totalorder %v3511, 2
      %vm3532 = vcmp.lt.s32.totalorder %v3511, 3
      %vm3533 = vcmp.lt.s32.totalorder %v3511, 4
      %v3534 = vsel %vm3530, %v3514, %v3517
      %v3535 = vsel %vm3533, %v3523, 2102212464
      %v3536 = vsel %vm3532, %v3520, %v3535
      %v3537 = vsel %vm3531, %v3534, %v3536
      %v3538 = vsel %vm3530, %v3517, %v3520
      %v3539 = vsel %vm3533, %v3526, 920167782
      %v3540 = vsel %vm3532, %v3523, %v3539
      %v3541 = vsel %vm3531, %v3538, %v3540
      %v3542 = vsel %vm3530, %v3520, %v3523
      %v3543 = vsel %vm3533, %v3529, 1326507024
      %v3544 = vsel %vm3532, %v3526, %v3543
      %v3545 = vsel %vm3531, %v3542, %v3544
      %v3546 = vshll.u32 %v3506, 8
      %v3547 = vand.u32 %v3546, 65535
      %v3548 = vshrl.u32 %v3546, 16
      %v3549 = vand.u32 %v3545, 65535
      %v3550 = vshrl.u32 %v3545, 16
      %v3551 = vmul.u32 %v3547, %v3549
      %v3552 = vmul.u32 %v3547, %v3550
      %v3553 = vmul.u32 %v3548, %v3549
      %v3554 = vmul.u32 %v3548, %v3550
      %v3555 = vshll.u32 %v3552, 16
      %v3556 = vshrl.u32 %v3552, 16
      %v3557 = vshll.u32 %v3553, 16
      %v3558 = vshrl.u32 %v3553, 16
      %vm3559 = vc.u32 %v3551, %v3555
      %v3560 = vsel %vm3559, 1, 0
      %v3561 = vadd.s32 %v3551, %v3555
      %v3562 = vadd.s32 %v3554, %v3560
      %vm3563 = vc.u32 %v3561, %v3557
      %v3564 = vsel %vm3563, 1, 0
      %v3565 = vadd.s32 %v3561, %v3557
      %v3566 = vadd.s32 %v3562, %v3564
      %v3567 = vadd.s32 %v3566, %v3556
      %v3568 = vadd.s32 %v3567, %v3558
      %v3569 = vand.u32 %v3546, 65535
      %v3570 = vshrl.u32 %v3546, 16
      %v3571 = vand.u32 %v3541, 65535
      %v3572 = vshrl.u32 %v3541, 16
      %v3573 = vmul.u32 %v3569, %v3571
      %v3574 = vmul.u32 %v3569, %v3572
      %v3575 = vmul.u32 %v3570, %v3571
      %v3576 = vmul.u32 %v3570, %v3572
      %v3577 = vshll.u32 %v3574, 16
      %v3578 = vshrl.u32 %v3574, 16
      %v3579 = vshll.u32 %v3575, 16
      %v3580 = vshrl.u32 %v3575, 16
      %vm3581 = vc.u32 %v3573, %v3577
      %v3582 = vsel %vm3581, 1, 0
      %v3583 = vadd.s32 %v3573, %v3577
      %v3584 = vadd.s32 %v3576, %v3582
      %vm3585 = vc.u32 %v3583, %v3579
      %v3586 = vsel %vm3585, 1, 0
      %v3587 = vadd.s32 %v3583, %v3579
      %v3588 = vadd.s32 %v3584, %v3586
      %v3589 = vadd.s32 %v3588, %v3578
      %v3590 = vadd.s32 %v3589, %v3580
      %v3591 = vmul.u32 %v3546, %v3537
      %v3592 = vadd.s32 %v3568, %v3587
      %vm3593 = vc.u32 %v3568, %v3587
      %v3594 = vadd.s32 %v3590, 1
      %v3595 = vsel %vm3593, %v3594, %v3590
      %v3596 = vadd.s32 %v3591, %v3595
      %v3597 = vadd.s32 %v3596, 536870912
      %v3598 = vshrl.u32 %v3597, 30
      %v3599 = vshll.u32 %v3598, 30
      %v3600 = vsub.s32 %v3596, %v3599
      %vm3601 = vcmp.lt.s32.totalorder %v3600, 0
      %v3602 = vsub.s32 0, %v3600
      %v3603 = vsel %vm3601, %v3602, %v3600
      %v3604 = vclz %v3603
      %v3605 = vsub.s32 %v3604, 2
      %vm3606 = vcmp.gt.s32.totalorder 0, %v3605
      %v3607 = vsel %vm3606, 0, %v3605
      %v3608 = vsub.s32 32, %v3607
      %v3609 = vshll.u32 %v3600, %v3607
      %v3610 = vshrl.u32 %v3592, %v3608
      %v3611 = vor.u32 %v3609, %v3610
      %v3612 = vsub.s32 4294967266, %v3607
      %v3613 = vadd.s32 %v3612, 127
      %v3614 = vshll.u32 %v3613, 23
      %v3615 = vor.u32 4788187, %v3614
      %v3616 = vand.u32 2147483647, %v3615
      %v3618 = vcvt.s32.f32 %v3611
      %v3619 = vmul.f32 %v3618, %v3616
      %v3620 = vxor.u32 %v3619, 2147483648
      %v3621 = vsel %vm3500, %v3620, %v3619
      %v3622 = vsub.s32 4, %v3598
      %v3623 = vsel %vm3500, %v3622, %v3598
      %v3624 = vsel %vm3499, %v374, %v3621
      %v3625 = vsel %vm3499, 0, %v3623
      %v3626 = vmul.f32 %v3624, %v3624
      %v3627 = vmul.f32 %v3626, -0.001358992
      %v3628 = vadd.f32 %v3627, 0.041655596
      %v3629 = vmul.f32 %v3626, %v3628
      %v3630 = vadd.f32 %v3629, -0.4999988
      %v3631 = vmul.f32 %v3626, %v3630
      %v3632 = vadd.f32 1.0, %v3631
      %v3633 = vmul.f32 %v3624, %v3624
      %v3634 = vmul.f32 %v3633, -0.00019511016
      %v3635 = vadd.f32 %v3634, 0.008332121
      %v3636 = vmul.f32 %v3633, %v3635
      %v3637 = vadd.f32 %v3636, -0.16666654
      %v3638 = vmul.f32 %v3633, %v3637
      %v3639 = vadd.f32 %v3638, 1.0
      %v3640 = vmul.f32 %v3639, %v3624
      %vm3641 = vweird.f32 %v374
      %v3642 = vand.u32 %v3625, 3
      %vm3643 = vcmp.lt.s32.totalorder %v3642, 2
      %vm3644 = vcmp.eq.s32.totalorder %v3642, 0
      %v3645 = vxor.u32 %v3640, 2147483648
      %v3646 = vsel %vm3644, %v3632, %v3645
      %vm3647 = vcmp.eq.s32.totalorder %v3642, 2
      %v3648 = vxor.u32 %v3632, 2147483648
      %v3649 = vsel %vm3647, %v3648, %v3640
      %v3650 = vsel %vm3643, %v3646, %v3649
      %v3651 = vsel %vm3641, nan, %v3650
      %v3652 = vand.u32 2147483647, %v375
      %vm3653 = vcmp.le.f32.partialorder %v3652, 0.7853982
      %vm3654 = vcmp.lt.s32.totalorder %v375, 0
      %v3655 = vand.u32 %v375, 2139095040
      %v3656 = vshrl.u32 %v3655, 23
      %v3657 = vsub.s32 %v3656, 127
      %v3658 = vand.u32 2147483647, %v375
      %v3659 = vand.u32 %v3658, 8388607
      %v3660 = vor.u32 %v3659, 8388608
      %v3661 = vsub.s32 0, %v3660
      %v3662 = vadd.s32 %v3657, 1
      %vm3663 = vcmp.gt.s32.totalorder %v3662, 0
      %v3664 = vsel %vm3663, %v3662, 0
      %v3665 = vshrl.u32 %v3664, 5
      %v3666 = vand.u32 %v3664, 31
      %v3667 = vsub.s32 32, %v3666
      %v3668 = vshrl.u32 683565275, %v3667
      %v3669 = vshll.u32 683565275, %v3666
      %v3670 = vshrl.u32 2475754826, %v3667
      %v3671 = vor.u32 %v3669, %v3670
      %v3672 = vshll.u32 2475754826, %v3666
      %v3673 = vshrl.u32 2131351028, %v3667
      %v3674 = vor.u32 %v3672, %v3673
      %v3675 = vshll.u32 2131351028, %v3666
      %v3676 = vshrl.u32 2102212464, %v3667
      %v3677 = vor.u32 %v3675, %v3676
      %v3678 = vshll.u32 2102212464, %v3666
      %v3679 = vshrl.u32 920167782, %v3667
      %v3680 = vor.u32 %v3678, %v3679
      %v3681 = vshll.u32 920167782, %v3666
      %v3682 = vshrl.u32 1326507024, %v3667
      %v3683 = vor.u32 %v3681, %v3682
      %vm3684 = vcmp.lt.s32.totalorder %v3665, 1
      %vm3685 = vcmp.lt.s32.totalorder %v3665, 2
      %vm3686 = vcmp.lt.s32.totalorder %v3665, 3
      %vm3687 = vcmp.lt.s32.totalorder %v3665, 4
      %v3688 = vsel %vm3684, %v3668, %v3671
      %v3689 = vsel %vm3687, %v3677, 2102212464
      %v3690 = vsel %vm3686, %v3674, %v3689
      %v3691 = vsel %vm3685, %v3688, %v3690
      %v3692 = vsel %vm3684, %v3671, %v3674
      %v3693 = vsel %vm3687, %v3680, 920167782
      %v3694 = vsel %vm3686, %v3677, %v3693
      %v3695 = vsel %vm3685, %v3692, %v3694
      %v3696 = vsel %vm3684, %v3674, %v3677
      %v3697 = vsel %vm3687, %v3683, 1326507024
      %v3698 = vsel %vm3686, %v3680, %v3697
      %v3699 = vsel %vm3685, %v3696, %v3698
      %v3700 = vshll.u32 %v3660, 8
      %v3701 = vand.u32 %v3700, 65535
      %v3702 = vshrl.u32 %v3700, 16
      %v3703 = vand.u32 %v3699, 65535
      %v3704 = vshrl.u32 %v3699, 16
      %v3705 = vmul.u32 %v3701, %v3703
      %v3706 = vmul.u32 %v3701, %v3704
      %v3707 = vmul.u32 %v3702, %v3703
      %v3708 = vmul.u32 %v3702, %v3704
      %v3709 = vshll.u32 %v3706, 16
      %v3710 = vshrl.u32 %v3706, 16
      %v3711 = vshll.u32 %v3707, 16
      %v3712 = vshrl.u32 %v3707, 16
      %vm3713 = vc.u32 %v3705, %v3709
      %v3714 = vsel %vm3713, 1, 0
      %v3715 = vadd.s32 %v3705, %v3709
      %v3716 = vadd.s32 %v3708, %v3714
      %vm3717 = vc.u32 %v3715, %v3711
      %v3718 = vsel %vm3717, 1, 0
      %v3719 = vadd.s32 %v3715, %v3711
      %v3720 = vadd.s32 %v3716, %v3718
      %v3721 = vadd.s32 %v3720, %v3710
      %v3722 = vadd.s32 %v3721, %v3712
      %v3723 = vand.u32 %v3700, 65535
      %v3724 = vshrl.u32 %v3700, 16
      %v3725 = vand.u32 %v3695, 65535
      %v3726 = vshrl.u32 %v3695, 16
      %v3727 = vmul.u32 %v3723, %v3725
      %v3728 = vmul.u32 %v3723, %v3726
      %v3729 = vmul.u32 %v3724, %v3725
      %v3730 = vmul.u32 %v3724, %v3726
      %v3731 = vshll.u32 %v3728, 16
      %v3732 = vshrl.u32 %v3728, 16
      %v3733 = vshll.u32 %v3729, 16
      %v3734 = vshrl.u32 %v3729, 16
      %vm3735 = vc.u32 %v3727, %v3731
      %v3736 = vsel %vm3735, 1, 0
      %v3737 = vadd.s32 %v3727, %v3731
      %v3738 = vadd.s32 %v3730, %v3736
      %vm3739 = vc.u32 %v3737, %v3733
      %v3740 = vsel %vm3739, 1, 0
      %v3741 = vadd.s32 %v3737, %v3733
      %v3742 = vadd.s32 %v3738, %v3740
      %v3743 = vadd.s32 %v3742, %v3732
      %v3744 = vadd.s32 %v3743, %v3734
      %v3745 = vmul.u32 %v3700, %v3691
      %v3746 = vadd.s32 %v3722, %v3741
      %vm3747 = vc.u32 %v3722, %v3741
      %v3748 = vadd.s32 %v3744, 1
      %v3749 = vsel %vm3747, %v3748, %v3744
      %v3750 = vadd.s32 %v3745, %v3749
      %v3751 = vadd.s32 %v3750, 536870912
      %v3752 = vshrl.u32 %v3751, 30
      %v3753 = vshll.u32 %v3752, 30
      %v3754 = vsub.s32 %v3750, %v3753
      %vm3755 = vcmp.lt.s32.totalorder %v3754, 0
      %v3756 = vsub.s32 0, %v3754
      %v3757 = vsel %vm3755, %v3756, %v3754
      %v3758 = vclz %v3757
      %v3759 = vsub.s32 %v3758, 2
      %vm3760 = vcmp.gt.s32.totalorder 0, %v3759
      %v3761 = vsel %vm3760, 0, %v3759
      %v3762 = vsub.s32 32, %v3761
      %v3763 = vshll.u32 %v3754, %v3761
      %v3764 = vshrl.u32 %v3746, %v3762
      %v3765 = vor.u32 %v3763, %v3764
      %v3766 = vsub.s32 4294967266, %v3761
      %v3767 = vadd.s32 %v3766, 127
      %v3768 = vshll.u32 %v3767, 23
      %v3769 = vor.u32 4788187, %v3768
      %v3770 = vand.u32 2147483647, %v3769
      %v3772 = vcvt.s32.f32 %v3765
      %v3773 = vmul.f32 %v3772, %v3770
      %v3774 = vxor.u32 %v3773, 2147483648
      %v3775 = vsel %vm3654, %v3774, %v3773
      %v3776 = vsub.s32 4, %v3752
      %v3777 = vsel %vm3654, %v3776, %v3752
      %v3778 = vsel %vm3653, %v375, %v3775
      %v3779 = vsel %vm3653, 0, %v3777
      %v3780 = vmul.f32 %v3778, %v3778
      %v3781 = vmul.f32 %v3780, -0.001358992
      %v3782 = vadd.f32 %v3781, 0.041655596
      %v3783 = vmul.f32 %v3780, %v3782
      %v3784 = vadd.f32 %v3783, -0.4999988
      %v3785 = vmul.f32 %v3780, %v3784
      %v3786 = vadd.f32 1.0, %v3785
      %v3787 = vmul.f32 %v3778, %v3778
      %v3788 = vmul.f32 %v3787, -0.00019511016
      %v3789 = vadd.f32 %v3788, 0.008332121
      %v3790 = vmul.f32 %v3787, %v3789
      %v3791 = vadd.f32 %v3790, -0.16666654
      %v3792 = vmul.f32 %v3787, %v3791
      %v3793 = vadd.f32 %v3792, 1.0
      %v3794 = vmul.f32 %v3793, %v3778
      %vm3795 = vweird.f32 %v375
      %v3796 = vand.u32 %v3779, 3
      %vm3797 = vcmp.lt.s32.totalorder %v3796, 2
      %vm3798 = vcmp.eq.s32.totalorder %v3796, 0
      %v3799 = vxor.u32 %v3794, 2147483648
      %v3800 = vsel %vm3798, %v3786, %v3799
      %vm3801 = vcmp.eq.s32.totalorder %v3796, 2
      %v3802 = vxor.u32 %v3786, 2147483648
      %v3803 = vsel %vm3801, %v3802, %v3794
      %v3804 = vsel %vm3797, %v3800, %v3803
      %v3805 = vsel %vm3795, nan, %v3804
      %v3806 = vand.u32 2147483647, %v376
      %vm3807 = vcmp.le.f32.partialorder %v3806, 0.7853982
      %vm3808 = vcmp.lt.s32.totalorder %v376, 0
      %v3809 = vand.u32 %v376, 2139095040
      %v3810 = vshrl.u32 %v3809, 23
      %v3811 = vsub.s32 %v3810, 127
      %v3812 = vand.u32 2147483647, %v376
      %v3813 = vand.u32 %v3812, 8388607
      %v3814 = vor.u32 %v3813, 8388608
      %v3815 = vsub.s32 0, %v3814
      %v3816 = vadd.s32 %v3811, 1
      %vm3817 = vcmp.gt.s32.totalorder %v3816, 0
      %v3818 = vsel %vm3817, %v3816, 0
      %v3819 = vshrl.u32 %v3818, 5
      %v3820 = vand.u32 %v3818, 31
      %v3821 = vsub.s32 32, %v3820
      %v3822 = vshrl.u32 683565275, %v3821
      %v3823 = vshll.u32 683565275, %v3820
      %v3824 = vshrl.u32 2475754826, %v3821
      %v3825 = vor.u32 %v3823, %v3824
      %v3826 = vshll.u32 2475754826, %v3820
      %v3827 = vshrl.u32 2131351028, %v3821
      %v3828 = vor.u32 %v3826, %v3827
      %v3829 = vshll.u32 2131351028, %v3820
      %v3830 = vshrl.u32 2102212464, %v3821
      %v3831 = vor.u32 %v3829, %v3830
      %v3832 = vshll.u32 2102212464, %v3820
      %v3833 = vshrl.u32 920167782, %v3821
      %v3834 = vor.u32 %v3832, %v3833
      %v3835 = vshll.u32 920167782, %v3820
      %v3836 = vshrl.u32 1326507024, %v3821
      %v3837 = vor.u32 %v3835, %v3836
      %vm3838 = vcmp.lt.s32.totalorder %v3819, 1
      %vm3839 = vcmp.lt.s32.totalorder %v3819, 2
      %vm3840 = vcmp.lt.s32.totalorder %v3819, 3
      %vm3841 = vcmp.lt.s32.totalorder %v3819, 4
      %v3842 = vsel %vm3838, %v3822, %v3825
      %v3843 = vsel %vm3841, %v3831, 2102212464
      %v3844 = vsel %vm3840, %v3828, %v3843
      %v3845 = vsel %vm3839, %v3842, %v3844
      %v3846 = vsel %vm3838, %v3825, %v3828
      %v3847 = vsel %vm3841, %v3834, 920167782
      %v3848 = vsel %vm3840, %v3831, %v3847
      %v3849 = vsel %vm3839, %v3846, %v3848
      %v3850 = vsel %vm3838, %v3828, %v3831
      %v3851 = vsel %vm3841, %v3837, 1326507024
      %v3852 = vsel %vm3840, %v3834, %v3851
      %v3853 = vsel %vm3839, %v3850, %v3852
      %v3854 = vshll.u32 %v3814, 8
      %v3855 = vand.u32 %v3854, 65535
      %v3856 = vshrl.u32 %v3854, 16
      %v3857 = vand.u32 %v3853, 65535
      %v3858 = vshrl.u32 %v3853, 16
      %v3859 = vmul.u32 %v3855, %v3857
      %v3860 = vmul.u32 %v3855, %v3858
      %v3861 = vmul.u32 %v3856, %v3857
      %v3862 = vmul.u32 %v3856, %v3858
      %v3863 = vshll.u32 %v3860, 16
      %v3864 = vshrl.u32 %v3860, 16
      %v3865 = vshll.u32 %v3861, 16
      %v3866 = vshrl.u32 %v3861, 16
      %vm3867 = vc.u32 %v3859, %v3863
      %v3868 = vsel %vm3867, 1, 0
      %v3869 = vadd.s32 %v3859, %v3863
      %v3870 = vadd.s32 %v3862, %v3868
      %vm3871 = vc.u32 %v3869, %v3865
      %v3872 = vsel %vm3871, 1, 0
      %v3873 = vadd.s32 %v3869, %v3865
      %v3874 = vadd.s32 %v3870, %v3872
      %v3875 = vadd.s32 %v3874, %v3864
      %v3876 = vadd.s32 %v3875, %v3866
      %v3877 = vand.u32 %v3854, 65535
      %v3878 = vshrl.u32 %v3854, 16
      %v3879 = vand.u32 %v3849, 65535
      %v3880 = vshrl.u32 %v3849, 16
      %v3881 = vmul.u32 %v3877, %v3879
      %v3882 = vmul.u32 %v3877, %v3880
      %v3883 = vmul.u32 %v3878, %v3879
      %v3884 = vmul.u32 %v3878, %v3880
      %v3885 = vshll.u32 %v3882, 16
      %v3886 = vshrl.u32 %v3882, 16
      %v3887 = vshll.u32 %v3883, 16
      %v3888 = vshrl.u32 %v3883, 16
      %vm3889 = vc.u32 %v3881, %v3885
      %v3890 = vsel %vm3889, 1, 0
      %v3891 = vadd.s32 %v3881, %v3885
      %v3892 = vadd.s32 %v3884, %v3890
      %vm3893 = vc.u32 %v3891, %v3887
      %v3894 = vsel %vm3893, 1, 0
      %v3895 = vadd.s32 %v3891, %v3887
      %v3896 = vadd.s32 %v3892, %v3894
      %v3897 = vadd.s32 %v3896, %v3886
      %v3898 = vadd.s32 %v3897, %v3888
      %v3899 = vmul.u32 %v3854, %v3845
      %v3900 = vadd.s32 %v3876, %v3895
      %vm3901 = vc.u32 %v3876, %v3895
      %v3902 = vadd.s32 %v3898, 1
      %v3903 = vsel %vm3901, %v3902, %v3898
      %v3904 = vadd.s32 %v3899, %v3903
      %v3905 = vadd.s32 %v3904, 536870912
      %v3906 = vshrl.u32 %v3905, 30
      %v3907 = vshll.u32 %v3906, 30
      %v3908 = vsub.s32 %v3904, %v3907
      %vm3909 = vcmp.lt.s32.totalorder %v3908, 0
      %v3910 = vsub.s32 0, %v3908
      %v3911 = vsel %vm3909, %v3910, %v3908
      %v3912 = vclz %v3911
      %v3913 = vsub.s32 %v3912, 2
      %vm3914 = vcmp.gt.s32.totalorder 0, %v3913
      %v3915 = vsel %vm3914, 0, %v3913
      %v3916 = vsub.s32 32, %v3915
      %v3917 = vshll.u32 %v3908, %v3915
      %v3918 = vshrl.u32 %v3900, %v3916
      %v3919 = vor.u32 %v3917, %v3918
      %v3920 = vsub.s32 4294967266, %v3915
      %v3921 = vadd.s32 %v3920, 127
      %v3922 = vshll.u32 %v3921, 23
      %v3923 = vor.u32 4788187, %v3922
      %v3924 = vand.u32 2147483647, %v3923
      %v3926 = vcvt.s32.f32 %v3919
      %v3927 = vmul.f32 %v3926, %v3924
      %v3928 = vxor.u32 %v3927, 2147483648
      %v3929 = vsel %vm3808, %v3928, %v3927
      %v3930 = vsub.s32 4, %v3906
      %v3931 = vsel %vm3808, %v3930, %v3906
      %v3932 = vsel %vm3807, %v376, %v3929
      %v3933 = vsel %vm3807, 0, %v3931
      %v3934 = vmul.f32 %v3932, %v3932
      %v3935 = vmul.f32 %v3934, -0.001358992
      %v3936 = vadd.f32 %v3935, 0.041655596
      %v3937 = vmul.f32 %v3934, %v3936
      %v3938 = vadd.f32 %v3937, -0.4999988
      %v3939 = vmul.f32 %v3934, %v3938
      %v3940 = vadd.f32 1.0, %v3939
      %v3941 = vmul.f32 %v3932, %v3932
      %v3942 = vmul.f32 %v3941, -0.00019511016
      %v3943 = vadd.f32 %v3942, 0.008332121
      %v3944 = vmul.f32 %v3941, %v3943
      %v3945 = vadd.f32 %v3944, -0.16666654
      %v3946 = vmul.f32 %v3941, %v3945
      %v3947 = vadd.f32 %v3946, 1.0
      %v3948 = vmul.f32 %v3947, %v3932
      %vm3949 = vweird.f32 %v376
      %v3950 = vand.u32 %v3933, 3
      %vm3951 = vcmp.lt.s32.totalorder %v3950, 2
      %vm3952 = vcmp.eq.s32.totalorder %v3950, 0
      %v3953 = vxor.u32 %v3948, 2147483648
      %v3954 = vsel %vm3952, %v3940, %v3953
      %vm3955 = vcmp.eq.s32.totalorder %v3950, 2
      %v3956 = vxor.u32 %v3940, 2147483648
      %v3957 = vsel %vm3955, %v3956, %v3948
      %v3958 = vsel %vm3951, %v3954, %v3957
      %v3959 = vsel %vm3949, nan, %v3958
      %v3960 = vand.u32 2147483647, %v377
      %vm3961 = vcmp.le.f32.partialorder %v3960, 0.7853982
      %vm3962 = vcmp.lt.s32.totalorder %v377, 0
      %v3963 = vand.u32 %v377, 2139095040
      %v3964 = vshrl.u32 %v3963, 23
      %v3965 = vsub.s32 %v3964, 127
      %v3966 = vand.u32 2147483647, %v377
      %v3967 = vand.u32 %v3966, 8388607
      %v3968 = vor.u32 %v3967, 8388608
      %v3969 = vsub.s32 0, %v3968
      %v3970 = vadd.s32 %v3965, 1
      %vm3971 = vcmp.gt.s32.totalorder %v3970, 0
      %v3972 = vsel %vm3971, %v3970, 0
      %v3973 = vshrl.u32 %v3972, 5
      %v3974 = vand.u32 %v3972, 31
      %v3975 = vsub.s32 32, %v3974
      %v3976 = vshrl.u32 683565275, %v3975
      %v3977 = vshll.u32 683565275, %v3974
      %v3978 = vshrl.u32 2475754826, %v3975
      %v3979 = vor.u32 %v3977, %v3978
      %v3980 = vshll.u32 2475754826, %v3974
      %v3981 = vshrl.u32 2131351028, %v3975
      %v3982 = vor.u32 %v3980, %v3981
      %v3983 = vshll.u32 2131351028, %v3974
      %v3984 = vshrl.u32 2102212464, %v3975
      %v3985 = vor.u32 %v3983, %v3984
      %v3986 = vshll.u32 2102212464, %v3974
      %v3987 = vshrl.u32 920167782, %v3975
      %v3988 = vor.u32 %v3986, %v3987
      %v3989 = vshll.u32 920167782, %v3974
      %v3990 = vshrl.u32 1326507024, %v3975
      %v3991 = vor.u32 %v3989, %v3990
      %vm3992 = vcmp.lt.s32.totalorder %v3973, 1
      %vm3993 = vcmp.lt.s32.totalorder %v3973, 2
      %vm3994 = vcmp.lt.s32.totalorder %v3973, 3
      %vm3995 = vcmp.lt.s32.totalorder %v3973, 4
      %v3996 = vsel %vm3992, %v3976, %v3979
      %v3997 = vsel %vm3995, %v3985, 2102212464
      %v3998 = vsel %vm3994, %v3982, %v3997
      %v3999 = vsel %vm3993, %v3996, %v3998
      %v4000 = vsel %vm3992, %v3979, %v3982
      %v4001 = vsel %vm3995, %v3988, 920167782
      %v4002 = vsel %vm3994, %v3985, %v4001
      %v4003 = vsel %vm3993, %v4000, %v4002
      %v4004 = vsel %vm3992, %v3982, %v3985
      %v4005 = vsel %vm3995, %v3991, 1326507024
      %v4006 = vsel %vm3994, %v3988, %v4005
      %v4007 = vsel %vm3993, %v4004, %v4006
      %v4008 = vshll.u32 %v3968, 8
      %v4009 = vand.u32 %v4008, 65535
      %v4010 = vshrl.u32 %v4008, 16
      %v4011 = vand.u32 %v4007, 65535
      %v4012 = vshrl.u32 %v4007, 16
      %v4013 = vmul.u32 %v4009, %v4011
      %v4014 = vmul.u32 %v4009, %v4012
      %v4015 = vmul.u32 %v4010, %v4011
      %v4016 = vmul.u32 %v4010, %v4012
      %v4017 = vshll.u32 %v4014, 16
      %v4018 = vshrl.u32 %v4014, 16
      %v4019 = vshll.u32 %v4015, 16
      %v4020 = vshrl.u32 %v4015, 16
      %vm4021 = vc.u32 %v4013, %v4017
      %v4022 = vsel %vm4021, 1, 0
      %v4023 = vadd.s32 %v4013, %v4017
      %v4024 = vadd.s32 %v4016, %v4022
      %vm4025 = vc.u32 %v4023, %v4019
      %v4026 = vsel %vm4025, 1, 0
      %v4027 = vadd.s32 %v4023, %v4019
      %v4028 = vadd.s32 %v4024, %v4026
      %v4029 = vadd.s32 %v4028, %v4018
      %v4030 = vadd.s32 %v4029, %v4020
      %v4031 = vand.u32 %v4008, 65535
      %v4032 = vshrl.u32 %v4008, 16
      %v4033 = vand.u32 %v4003, 65535
      %v4034 = vshrl.u32 %v4003, 16
      %v4035 = vmul.u32 %v4031, %v4033
      %v4036 = vmul.u32 %v4031, %v4034
      %v4037 = vmul.u32 %v4032, %v4033
      %v4038 = vmul.u32 %v4032, %v4034
      %v4039 = vshll.u32 %v4036, 16
      %v4040 = vshrl.u32 %v4036, 16
      %v4041 = vshll.u32 %v4037, 16
      %v4042 = vshrl.u32 %v4037, 16
      %vm4043 = vc.u32 %v4035, %v4039
      %v4044 = vsel %vm4043, 1, 0
      %v4045 = vadd.s32 %v4035, %v4039
      %v4046 = vadd.s32 %v4038, %v4044
      %vm4047 = vc.u32 %v4045, %v4041
      %v4048 = vsel %vm4047, 1, 0
      %v4049 = vadd.s32 %v4045, %v4041
      %v4050 = vadd.s32 %v4046, %v4048
      %v4051 = vadd.s32 %v4050, %v4040
      %v4052 = vadd.s32 %v4051, %v4042
      %v4053 = vmul.u32 %v4008, %v3999
      %v4054 = vadd.s32 %v4030, %v4049
      %vm4055 = vc.u32 %v4030, %v4049
      %v4056 = vadd.s32 %v4052, 1
      %v4057 = vsel %vm4055, %v4056, %v4052
      %v4058 = vadd.s32 %v4053, %v4057
      %v4059 = vadd.s32 %v4058, 536870912
      %v4060 = vshrl.u32 %v4059, 30
      %v4061 = vshll.u32 %v4060, 30
      %v4062 = vsub.s32 %v4058, %v4061
      %vm4063 = vcmp.lt.s32.totalorder %v4062, 0
      %v4064 = vsub.s32 0, %v4062
      %v4065 = vsel %vm4063, %v4064, %v4062
      %v4066 = vclz %v4065
      %v4067 = vsub.s32 %v4066, 2
      %vm4068 = vcmp.gt.s32.totalorder 0, %v4067
      %v4069 = vsel %vm4068, 0, %v4067
      %v4070 = vsub.s32 32, %v4069
      %v4071 = vshll.u32 %v4062, %v4069
      %v4072 = vshrl.u32 %v4054, %v4070
      %v4073 = vor.u32 %v4071, %v4072
      %v4074 = vsub.s32 4294967266, %v4069
      %v4075 = vadd.s32 %v4074, 127
      %v4076 = vshll.u32 %v4075, 23
      %v4077 = vor.u32 4788187, %v4076
      %v4078 = vand.u32 2147483647, %v4077
      %v4080 = vcvt.s32.f32 %v4073
      %v4081 = vmul.f32 %v4080, %v4078
      %v4082 = vxor.u32 %v4081, 2147483648
      %v4083 = vsel %vm3962, %v4082, %v4081
      %v4084 = vsub.s32 4, %v4060
      %v4085 = vsel %vm3962, %v4084, %v4060
      %v4086 = vsel %vm3961, %v377, %v4083
      %v4087 = vsel %vm3961, 0, %v4085
      %v4088 = vmul.f32 %v4086, %v4086
      %v4089 = vmul.f32 %v4088, -0.001358992
      %v4090 = vadd.f32 %v4089, 0.041655596
      %v4091 = vmul.f32 %v4088, %v4090
      %v4092 = vadd.f32 %v4091, -0.4999988
      %v4093 = vmul.f32 %v4088, %v4092
      %v4094 = vadd.f32 1.0, %v4093
      %v4095 = vmul.f32 %v4086, %v4086
      %v4096 = vmul.f32 %v4095, -0.00019511016
      %v4097 = vadd.f32 %v4096, 0.008332121
      %v4098 = vmul.f32 %v4095, %v4097
      %v4099 = vadd.f32 %v4098, -0.16666654
      %v4100 = vmul.f32 %v4095, %v4099
      %v4101 = vadd.f32 %v4100, 1.0
      %v4102 = vmul.f32 %v4101, %v4086
      %vm4103 = vweird.f32 %v377
      %v4104 = vand.u32 %v4087, 3
      %vm4105 = vcmp.lt.s32.totalorder %v4104, 2
      %vm4106 = vcmp.eq.s32.totalorder %v4104, 0
      %v4107 = vxor.u32 %v4102, 2147483648
      %v4108 = vsel %vm4106, %v4094, %v4107
      %vm4109 = vcmp.eq.s32.totalorder %v4104, 2
      %v4110 = vxor.u32 %v4094, 2147483648
      %v4111 = vsel %vm4109, %v4110, %v4102
      %v4112 = vsel %vm4105, %v4108, %v4111
      %v4113 = vsel %vm4103, nan, %v4112
      %v4114 = vand.u32 2147483647, %v378
      %vm4115 = vcmp.le.f32.partialorder %v4114, 0.7853982
      %vm4116 = vcmp.lt.s32.totalorder %v378, 0
      %v4117 = vand.u32 %v378, 2139095040
      %v4118 = vshrl.u32 %v4117, 23
      %v4119 = vsub.s32 %v4118, 127
      %v4120 = vand.u32 2147483647, %v378
      %v4121 = vand.u32 %v4120, 8388607
      %v4122 = vor.u32 %v4121, 8388608
      %v4123 = vsub.s32 0, %v4122
      %v4124 = vadd.s32 %v4119, 1
      %vm4125 = vcmp.gt.s32.totalorder %v4124, 0
      %v4126 = vsel %vm4125, %v4124, 0
      %v4127 = vshrl.u32 %v4126, 5
      %v4128 = vand.u32 %v4126, 31
      %v4129 = vsub.s32 32, %v4128
      %v4130 = vshrl.u32 683565275, %v4129
      %v4131 = vshll.u32 683565275, %v4128
      %v4132 = vshrl.u32 2475754826, %v4129
      %v4133 = vor.u32 %v4131, %v4132
      %v4134 = vshll.u32 2475754826, %v4128
      %v4135 = vshrl.u32 2131351028, %v4129
      %v4136 = vor.u32 %v4134, %v4135
      %v4137 = vshll.u32 2131351028, %v4128
      %v4138 = vshrl.u32 2102212464, %v4129
      %v4139 = vor.u32 %v4137, %v4138
      %v4140 = vshll.u32 2102212464, %v4128
      %v4141 = vshrl.u32 920167782, %v4129
      %v4142 = vor.u32 %v4140, %v4141
      %v4143 = vshll.u32 920167782, %v4128
      %v4144 = vshrl.u32 1326507024, %v4129
      %v4145 = vor.u32 %v4143, %v4144
      %vm4146 = vcmp.lt.s32.totalorder %v4127, 1
      %vm4147 = vcmp.lt.s32.totalorder %v4127, 2
      %vm4148 = vcmp.lt.s32.totalorder %v4127, 3
      %vm4149 = vcmp.lt.s32.totalorder %v4127, 4
      %v4150 = vsel %vm4146, %v4130, %v4133
      %v4151 = vsel %vm4149, %v4139, 2102212464
      %v4152 = vsel %vm4148, %v4136, %v4151
      %v4153 = vsel %vm4147, %v4150, %v4152
      %v4154 = vsel %vm4146, %v4133, %v4136
      %v4155 = vsel %vm4149, %v4142, 920167782
      %v4156 = vsel %vm4148, %v4139, %v4155
      %v4157 = vsel %vm4147, %v4154, %v4156
      %v4158 = vsel %vm4146, %v4136, %v4139
      %v4159 = vsel %vm4149, %v4145, 1326507024
      %v4160 = vsel %vm4148, %v4142, %v4159
      %v4161 = vsel %vm4147, %v4158, %v4160
      %v4162 = vshll.u32 %v4122, 8
      %v4163 = vand.u32 %v4162, 65535
      %v4164 = vshrl.u32 %v4162, 16
      %v4165 = vand.u32 %v4161, 65535
      %v4166 = vshrl.u32 %v4161, 16
      %v4167 = vmul.u32 %v4163, %v4165
      %v4168 = vmul.u32 %v4163, %v4166
      %v4169 = vmul.u32 %v4164, %v4165
      %v4170 = vmul.u32 %v4164, %v4166
      %v4171 = vshll.u32 %v4168, 16
      %v4172 = vshrl.u32 %v4168, 16
      %v4173 = vshll.u32 %v4169, 16
      %v4174 = vshrl.u32 %v4169, 16
      %vm4175 = vc.u32 %v4167, %v4171
      %v4176 = vsel %vm4175, 1, 0
      %v4177 = vadd.s32 %v4167, %v4171
      %v4178 = vadd.s32 %v4170, %v4176
      %vm4179 = vc.u32 %v4177, %v4173
      %v4180 = vsel %vm4179, 1, 0
      %v4181 = vadd.s32 %v4177, %v4173
      %v4182 = vadd.s32 %v4178, %v4180
      %v4183 = vadd.s32 %v4182, %v4172
      %v4184 = vadd.s32 %v4183, %v4174
      %v4185 = vand.u32 %v4162, 65535
      %v4186 = vshrl.u32 %v4162, 16
      %v4187 = vand.u32 %v4157, 65535
      %v4188 = vshrl.u32 %v4157, 16
      %v4189 = vmul.u32 %v4185, %v4187
      %v4190 = vmul.u32 %v4185, %v4188
      %v4191 = vmul.u32 %v4186, %v4187
      %v4192 = vmul.u32 %v4186, %v4188
      %v4193 = vshll.u32 %v4190, 16
      %v4194 = vshrl.u32 %v4190, 16
      %v4195 = vshll.u32 %v4191, 16
      %v4196 = vshrl.u32 %v4191, 16
      %vm4197 = vc.u32 %v4189, %v4193
      %v4198 = vsel %vm4197, 1, 0
      %v4199 = vadd.s32 %v4189, %v4193
      %v4200 = vadd.s32 %v4192, %v4198
      %vm4201 = vc.u32 %v4199, %v4195
      %v4202 = vsel %vm4201, 1, 0
      %v4203 = vadd.s32 %v4199, %v4195
      %v4204 = vadd.s32 %v4200, %v4202
      %v4205 = vadd.s32 %v4204, %v4194
      %v4206 = vadd.s32 %v4205, %v4196
      %v4207 = vmul.u32 %v4162, %v4153
      %v4208 = vadd.s32 %v4184, %v4203
      %vm4209 = vc.u32 %v4184, %v4203
      %v4210 = vadd.s32 %v4206, 1
      %v4211 = vsel %vm4209, %v4210, %v4206
      %v4212 = vadd.s32 %v4207, %v4211
      %v4213 = vadd.s32 %v4212, 536870912
      %v4214 = vshrl.u32 %v4213, 30
      %v4215 = vshll.u32 %v4214, 30
      %v4216 = vsub.s32 %v4212, %v4215
      %vm4217 = vcmp.lt.s32.totalorder %v4216, 0
      %v4218 = vsub.s32 0, %v4216
      %v4219 = vsel %vm4217, %v4218, %v4216
      %v4220 = vclz %v4219
      %v4221 = vsub.s32 %v4220, 2
      %vm4222 = vcmp.gt.s32.totalorder 0, %v4221
      %v4223 = vsel %vm4222, 0, %v4221
      %v4224 = vsub.s32 32, %v4223
      %v4225 = vshll.u32 %v4216, %v4223
      %v4226 = vshrl.u32 %v4208, %v4224
      %v4227 = vor.u32 %v4225, %v4226
      %v4228 = vsub.s32 4294967266, %v4223
      %v4229 = vadd.s32 %v4228, 127
      %v4230 = vshll.u32 %v4229, 23
      %v4231 = vor.u32 4788187, %v4230
      %v4232 = vand.u32 2147483647, %v4231
      %v4234 = vcvt.s32.f32 %v4227
      %v4235 = vmul.f32 %v4234, %v4232
      %v4236 = vxor.u32 %v4235, 2147483648
      %v4237 = vsel %vm4116, %v4236, %v4235
      %v4238 = vsub.s32 4, %v4214
      %v4239 = vsel %vm4116, %v4238, %v4214
      %v4240 = vsel %vm4115, %v378, %v4237
      %v4241 = vsel %vm4115, 0, %v4239
      %v4242 = vmul.f32 %v4240, %v4240
      %v4243 = vmul.f32 %v4242, -0.001358992
      %v4244 = vadd.f32 %v4243, 0.041655596
      %v4245 = vmul.f32 %v4242, %v4244
      %v4246 = vadd.f32 %v4245, -0.4999988
      %v4247 = vmul.f32 %v4242, %v4246
      %v4248 = vadd.f32 1.0, %v4247
      %v4249 = vmul.f32 %v4240, %v4240
      %v4250 = vmul.f32 %v4249, -0.00019511016
      %v4251 = vadd.f32 %v4250, 0.008332121
      %v4252 = vmul.f32 %v4249, %v4251
      %v4253 = vadd.f32 %v4252, -0.16666654
      %v4254 = vmul.f32 %v4249, %v4253
      %v4255 = vadd.f32 %v4254, 1.0
      %v4256 = vmul.f32 %v4255, %v4240
      %vm4257 = vweird.f32 %v378
      %v4258 = vand.u32 %v4241, 3
      %vm4259 = vcmp.lt.s32.totalorder %v4258, 2
      %vm4260 = vcmp.eq.s32.totalorder %v4258, 0
      %v4261 = vxor.u32 %v4256, 2147483648
      %v4262 = vsel %vm4260, %v4248, %v4261
      %vm4263 = vcmp.eq.s32.totalorder %v4258, 2
      %v4264 = vxor.u32 %v4248, 2147483648
      %v4265 = vsel %vm4263, %v4264, %v4256
      %v4266 = vsel %vm4259, %v4262, %v4265
      %v4267 = vsel %vm4257, nan, %v4266
      %v4268 = vand.u32 2147483647, %v379
      %vm4269 = vcmp.le.f32.partialorder %v4268, 0.7853982
      %vm4270 = vcmp.lt.s32.totalorder %v379, 0
      %v4271 = vand.u32 %v379, 2139095040
      %v4272 = vshrl.u32 %v4271, 23
      %v4273 = vsub.s32 %v4272, 127
      %v4274 = vand.u32 2147483647, %v379
      %v4275 = vand.u32 %v4274, 8388607
      %v4276 = vor.u32 %v4275, 8388608
      %v4277 = vsub.s32 0, %v4276
      %v4278 = vadd.s32 %v4273, 1
      %vm4279 = vcmp.gt.s32.totalorder %v4278, 0
      %v4280 = vsel %vm4279, %v4278, 0
      %v4281 = vshrl.u32 %v4280, 5
      %v4282 = vand.u32 %v4280, 31
      %v4283 = vsub.s32 32, %v4282
      %v4284 = vshrl.u32 683565275, %v4283
      %v4285 = vshll.u32 683565275, %v4282
      %v4286 = vshrl.u32 2475754826, %v4283
      %v4287 = vor.u32 %v4285, %v4286
      %v4288 = vshll.u32 2475754826, %v4282
      %v4289 = vshrl.u32 2131351028, %v4283
      %v4290 = vor.u32 %v4288, %v4289
      %v4291 = vshll.u32 2131351028, %v4282
      %v4292 = vshrl.u32 2102212464, %v4283
      %v4293 = vor.u32 %v4291, %v4292
      %v4294 = vshll.u32 2102212464, %v4282
      %v4295 = vshrl.u32 920167782, %v4283
      %v4296 = vor.u32 %v4294, %v4295
      %v4297 = vshll.u32 920167782, %v4282
      %v4298 = vshrl.u32 1326507024, %v4283
      %v4299 = vor.u32 %v4297, %v4298
      %vm4300 = vcmp.lt.s32.totalorder %v4281, 1
      %vm4301 = vcmp.lt.s32.totalorder %v4281, 2
      %vm4302 = vcmp.lt.s32.totalorder %v4281, 3
      %vm4303 = vcmp.lt.s32.totalorder %v4281, 4
      %v4304 = vsel %vm4300, %v4284, %v4287
      %v4305 = vsel %vm4303, %v4293, 2102212464
      %v4306 = vsel %vm4302, %v4290, %v4305
      %v4307 = vsel %vm4301, %v4304, %v4306
      %v4308 = vsel %vm4300, %v4287, %v4290
      %v4309 = vsel %vm4303, %v4296, 920167782
      %v4310 = vsel %vm4302, %v4293, %v4309
      %v4311 = vsel %vm4301, %v4308, %v4310
      %v4312 = vsel %vm4300, %v4290, %v4293
      %v4313 = vsel %vm4303, %v4299, 1326507024
      %v4314 = vsel %vm4302, %v4296, %v4313
      %v4315 = vsel %vm4301, %v4312, %v4314
      %v4316 = vshll.u32 %v4276, 8
      %v4317 = vand.u32 %v4316, 65535
      %v4318 = vshrl.u32 %v4316, 16
      %v4319 = vand.u32 %v4315, 65535
      %v4320 = vshrl.u32 %v4315, 16
      %v4321 = vmul.u32 %v4317, %v4319
      %v4322 = vmul.u32 %v4317, %v4320
      %v4323 = vmul.u32 %v4318, %v4319
      %v4324 = vmul.u32 %v4318, %v4320
      %v4325 = vshll.u32 %v4322, 16
      %v4326 = vshrl.u32 %v4322, 16
      %v4327 = vshll.u32 %v4323, 16
      %v4328 = vshrl.u32 %v4323, 16
      %vm4329 = vc.u32 %v4321, %v4325
      %v4330 = vsel %vm4329, 1, 0
      %v4331 = vadd.s32 %v4321, %v4325
      %v4332 = vadd.s32 %v4324, %v4330
      %vm4333 = vc.u32 %v4331, %v4327
      %v4334 = vsel %vm4333, 1, 0
      %v4335 = vadd.s32 %v4331, %v4327
      %v4336 = vadd.s32 %v4332, %v4334
      %v4337 = vadd.s32 %v4336, %v4326
      %v4338 = vadd.s32 %v4337, %v4328
      %v4339 = vand.u32 %v4316, 65535
      %v4340 = vshrl.u32 %v4316, 16
      %v4341 = vand.u32 %v4311, 65535
      %v4342 = vshrl.u32 %v4311, 16
      %v4343 = vmul.u32 %v4339, %v4341
      %v4344 = vmul.u32 %v4339, %v4342
      %v4345 = vmul.u32 %v4340, %v4341
      %v4346 = vmul.u32 %v4340, %v4342
      %v4347 = vshll.u32 %v4344, 16
      %v4348 = vshrl.u32 %v4344, 16
      %v4349 = vshll.u32 %v4345, 16
      %v4350 = vshrl.u32 %v4345, 16
      %vm4351 = vc.u32 %v4343, %v4347
      %v4352 = vsel %vm4351, 1, 0
      %v4353 = vadd.s32 %v4343, %v4347
      %v4354 = vadd.s32 %v4346, %v4352
      %vm4355 = vc.u32 %v4353, %v4349
      %v4356 = vsel %vm4355, 1, 0
      %v4357 = vadd.s32 %v4353, %v4349
      %v4358 = vadd.s32 %v4354, %v4356
      %v4359 = vadd.s32 %v4358, %v4348
      %v4360 = vadd.s32 %v4359, %v4350
      %v4361 = vmul.u32 %v4316, %v4307
      %v4362 = vadd.s32 %v4338, %v4357
      %vm4363 = vc.u32 %v4338, %v4357
      %v4364 = vadd.s32 %v4360, 1
      %v4365 = vsel %vm4363, %v4364, %v4360
      %v4366 = vadd.s32 %v4361, %v4365
      %v4367 = vadd.s32 %v4366, 536870912
      %v4368 = vshrl.u32 %v4367, 30
      %v4369 = vshll.u32 %v4368, 30
      %v4370 = vsub.s32 %v4366, %v4369
      %vm4371 = vcmp.lt.s32.totalorder %v4370, 0
      %v4372 = vsub.s32 0, %v4370
      %v4373 = vsel %vm4371, %v4372, %v4370
      %v4374 = vclz %v4373
      %v4375 = vsub.s32 %v4374, 2
      %vm4376 = vcmp.gt.s32.totalorder 0, %v4375
      %v4377 = vsel %vm4376, 0, %v4375
      %v4378 = vsub.s32 32, %v4377
      %v4379 = vshll.u32 %v4370, %v4377
      %v4380 = vshrl.u32 %v4362, %v4378
      %v4381 = vor.u32 %v4379, %v4380
      %v4382 = vsub.s32 4294967266, %v4377
      %v4383 = vadd.s32 %v4382, 127
      %v4384 = vshll.u32 %v4383, 23
      %v4385 = vor.u32 4788187, %v4384
      %v4386 = vand.u32 2147483647, %v4385
      %v4388 = vcvt.s32.f32 %v4381
      %v4389 = vmul.f32 %v4388, %v4386
      %v4390 = vxor.u32 %v4389, 2147483648
      %v4391 = vsel %vm4270, %v4390, %v4389
      %v4392 = vsub.s32 4, %v4368
      %v4393 = vsel %vm4270, %v4392, %v4368
      %v4394 = vsel %vm4269, %v379, %v4391
      %v4395 = vsel %vm4269, 0, %v4393
      %v4396 = vmul.f32 %v4394, %v4394
      %v4397 = vmul.f32 %v4396, -0.001358992
      %v4398 = vadd.f32 %v4397, 0.041655596
      %v4399 = vmul.f32 %v4396, %v4398
      %v4400 = vadd.f32 %v4399, -0.4999988
      %v4401 = vmul.f32 %v4396, %v4400
      %v4402 = vadd.f32 1.0, %v4401
      %v4403 = vmul.f32 %v4394, %v4394
      %v4404 = vmul.f32 %v4403, -0.00019511016
      %v4405 = vadd.f32 %v4404, 0.008332121
      %v4406 = vmul.f32 %v4403, %v4405
      %v4407 = vadd.f32 %v4406, -0.16666654
      %v4408 = vmul.f32 %v4403, %v4407
      %v4409 = vadd.f32 %v4408, 1.0
      %v4410 = vmul.f32 %v4409, %v4394
      %vm4411 = vweird.f32 %v379
      %v4412 = vand.u32 %v4395, 3
      %vm4413 = vcmp.lt.s32.totalorder %v4412, 2
      %vm4414 = vcmp.eq.s32.totalorder %v4412, 0
      %v4415 = vxor.u32 %v4410, 2147483648
      %v4416 = vsel %vm4414, %v4402, %v4415
      %vm4417 = vcmp.eq.s32.totalorder %v4412, 2
      %v4418 = vxor.u32 %v4402, 2147483648
      %v4419 = vsel %vm4417, %v4418, %v4410
      %v4420 = vsel %vm4413, %v4416, %v4419
      %v4421 = vsel %vm4411, nan, %v4420
      %v4422 = vand.u32 2147483647, %v380
      %vm4423 = vcmp.le.f32.partialorder %v4422, 0.7853982
      %vm4424 = vcmp.lt.s32.totalorder %v380, 0
      %v4425 = vand.u32 %v380, 2139095040
      %v4426 = vshrl.u32 %v4425, 23
      %v4427 = vsub.s32 %v4426, 127
      %v4428 = vand.u32 2147483647, %v380
      %v4429 = vand.u32 %v4428, 8388607
      %v4430 = vor.u32 %v4429, 8388608
      %v4431 = vsub.s32 0, %v4430
      %v4432 = vadd.s32 %v4427, 1
      %vm4433 = vcmp.gt.s32.totalorder %v4432, 0
      %v4434 = vsel %vm4433, %v4432, 0
      %v4435 = vshrl.u32 %v4434, 5
      %v4436 = vand.u32 %v4434, 31
      %v4437 = vsub.s32 32, %v4436
      %v4438 = vshrl.u32 683565275, %v4437
      %v4439 = vshll.u32 683565275, %v4436
      %v4440 = vshrl.u32 2475754826, %v4437
      %v4441 = vor.u32 %v4439, %v4440
      %v4442 = vshll.u32 2475754826, %v4436
      %v4443 = vshrl.u32 2131351028, %v4437
      %v4444 = vor.u32 %v4442, %v4443
      %v4445 = vshll.u32 2131351028, %v4436
      %v4446 = vshrl.u32 2102212464, %v4437
      %v4447 = vor.u32 %v4445, %v4446
      %v4448 = vshll.u32 2102212464, %v4436
      %v4449 = vshrl.u32 920167782, %v4437
      %v4450 = vor.u32 %v4448, %v4449
      %v4451 = vshll.u32 920167782, %v4436
      %v4452 = vshrl.u32 1326507024, %v4437
      %v4453 = vor.u32 %v4451, %v4452
      %vm4454 = vcmp.lt.s32.totalorder %v4435, 1
      %vm4455 = vcmp.lt.s32.totalorder %v4435, 2
      %vm4456 = vcmp.lt.s32.totalorder %v4435, 3
      %vm4457 = vcmp.lt.s32.totalorder %v4435, 4
      %v4458 = vsel %vm4454, %v4438, %v4441
      %v4459 = vsel %vm4457, %v4447, 2102212464
      %v4460 = vsel %vm4456, %v4444, %v4459
      %v4461 = vsel %vm4455, %v4458, %v4460
      %v4462 = vsel %vm4454, %v4441, %v4444
      %v4463 = vsel %vm4457, %v4450, 920167782
      %v4464 = vsel %vm4456, %v4447, %v4463
      %v4465 = vsel %vm4455, %v4462, %v4464
      %v4466 = vsel %vm4454, %v4444, %v4447
      %v4467 = vsel %vm4457, %v4453, 1326507024
      %v4468 = vsel %vm4456, %v4450, %v4467
      %v4469 = vsel %vm4455, %v4466, %v4468
      %v4470 = vshll.u32 %v4430, 8
      %v4471 = vand.u32 %v4470, 65535
      %v4472 = vshrl.u32 %v4470, 16
      %v4473 = vand.u32 %v4469, 65535
      %v4474 = vshrl.u32 %v4469, 16
      %v4475 = vmul.u32 %v4471, %v4473
      %v4476 = vmul.u32 %v4471, %v4474
      %v4477 = vmul.u32 %v4472, %v4473
      %v4478 = vmul.u32 %v4472, %v4474
      %v4479 = vshll.u32 %v4476, 16
      %v4480 = vshrl.u32 %v4476, 16
      %v4481 = vshll.u32 %v4477, 16
      %v4482 = vshrl.u32 %v4477, 16
      %vm4483 = vc.u32 %v4475, %v4479
      %v4484 = vsel %vm4483, 1, 0
      %v4485 = vadd.s32 %v4475, %v4479
      %v4486 = vadd.s32 %v4478, %v4484
      %vm4487 = vc.u32 %v4485, %v4481
      %v4488 = vsel %vm4487, 1, 0
      %v4489 = vadd.s32 %v4485, %v4481
      %v4490 = vadd.s32 %v4486, %v4488
      %v4491 = vadd.s32 %v4490, %v4480
      %v4492 = vadd.s32 %v4491, %v4482
      %v4493 = vand.u32 %v4470, 65535
      %v4494 = vshrl.u32 %v4470, 16
      %v4495 = vand.u32 %v4465, 65535
      %v4496 = vshrl.u32 %v4465, 16
      %v4497 = vmul.u32 %v4493, %v4495
      %v4498 = vmul.u32 %v4493, %v4496
      %v4499 = vmul.u32 %v4494, %v4495
      %v4500 = vmul.u32 %v4494, %v4496
      %v4501 = vshll.u32 %v4498, 16
      %v4502 = vshrl.u32 %v4498, 16
      %v4503 = vshll.u32 %v4499, 16
      %v4504 = vshrl.u32 %v4499, 16
      %vm4505 = vc.u32 %v4497, %v4501
      %v4506 = vsel %vm4505, 1, 0
      %v4507 = vadd.s32 %v4497, %v4501
      %v4508 = vadd.s32 %v4500, %v4506
      %vm4509 = vc.u32 %v4507, %v4503
      %v4510 = vsel %vm4509, 1, 0
      %v4511 = vadd.s32 %v4507, %v4503
      %v4512 = vadd.s32 %v4508, %v4510
      %v4513 = vadd.s32 %v4512, %v4502
      %v4514 = vadd.s32 %v4513, %v4504
      %v4515 = vmul.u32 %v4470, %v4461
      %v4516 = vadd.s32 %v4492, %v4511
      %vm4517 = vc.u32 %v4492, %v4511
      %v4518 = vadd.s32 %v4514, 1
      %v4519 = vsel %vm4517, %v4518, %v4514
      %v4520 = vadd.s32 %v4515, %v4519
      %v4521 = vadd.s32 %v4520, 536870912
      %v4522 = vshrl.u32 %v4521, 30
      %v4523 = vshll.u32 %v4522, 30
      %v4524 = vsub.s32 %v4520, %v4523
      %vm4525 = vcmp.lt.s32.totalorder %v4524, 0
      %v4526 = vsub.s32 0, %v4524
      %v4527 = vsel %vm4525, %v4526, %v4524
      %v4528 = vclz %v4527
      %v4529 = vsub.s32 %v4528, 2
      %vm4530 = vcmp.gt.s32.totalorder 0, %v4529
      %v4531 = vsel %vm4530, 0, %v4529
      %v4532 = vsub.s32 32, %v4531
      %v4533 = vshll.u32 %v4524, %v4531
      %v4534 = vshrl.u32 %v4516, %v4532
      %v4535 = vor.u32 %v4533, %v4534
      %v4536 = vsub.s32 4294967266, %v4531
      %v4537 = vadd.s32 %v4536, 127
      %v4538 = vshll.u32 %v4537, 23
      %v4539 = vor.u32 4788187, %v4538
      %v4540 = vand.u32 2147483647, %v4539
      %v4542 = vcvt.s32.f32 %v4535
      %v4543 = vmul.f32 %v4542, %v4540
      %v4544 = vxor.u32 %v4543, 2147483648
      %v4545 = vsel %vm4424, %v4544, %v4543
      %v4546 = vsub.s32 4, %v4522
      %v4547 = vsel %vm4424, %v4546, %v4522
      %v4548 = vsel %vm4423, %v380, %v4545
      %v4549 = vsel %vm4423, 0, %v4547
      %v4550 = vmul.f32 %v4548, %v4548
      %v4551 = vmul.f32 %v4550, -0.001358992
      %v4552 = vadd.f32 %v4551, 0.041655596
      %v4553 = vmul.f32 %v4550, %v4552
      %v4554 = vadd.f32 %v4553, -0.4999988
      %v4555 = vmul.f32 %v4550, %v4554
      %v4556 = vadd.f32 1.0, %v4555
      %v4557 = vmul.f32 %v4548, %v4548
      %v4558 = vmul.f32 %v4557, -0.00019511016
      %v4559 = vadd.f32 %v4558, 0.008332121
      %v4560 = vmul.f32 %v4557, %v4559
      %v4561 = vadd.f32 %v4560, -0.16666654
      %v4562 = vmul.f32 %v4557, %v4561
      %v4563 = vadd.f32 %v4562, 1.0
      %v4564 = vmul.f32 %v4563, %v4548
      %vm4565 = vweird.f32 %v380
      %v4566 = vand.u32 %v4549, 3
      %vm4567 = vcmp.lt.s32.totalorder %v4566, 2
      %vm4568 = vcmp.eq.s32.totalorder %v4566, 0
      %v4569 = vxor.u32 %v4564, 2147483648
      %v4570 = vsel %vm4568, %v4556, %v4569
      %vm4571 = vcmp.eq.s32.totalorder %v4566, 2
      %v4572 = vxor.u32 %v4556, 2147483648
      %v4573 = vsel %vm4571, %v4572, %v4564
      %v4574 = vsel %vm4567, %v4570, %v4573
      %v4575 = vsel %vm4565, nan, %v4574
      %v4576 = vand.u32 2147483647, %v381
      %vm4577 = vcmp.le.f32.partialorder %v4576, 0.7853982
      %vm4578 = vcmp.lt.s32.totalorder %v381, 0
      %v4579 = vand.u32 %v381, 2139095040
      %v4580 = vshrl.u32 %v4579, 23
      %v4581 = vsub.s32 %v4580, 127
      %v4582 = vand.u32 2147483647, %v381
      %v4583 = vand.u32 %v4582, 8388607
      %v4584 = vor.u32 %v4583, 8388608
      %v4585 = vsub.s32 0, %v4584
      %v4586 = vadd.s32 %v4581, 1
      %vm4587 = vcmp.gt.s32.totalorder %v4586, 0
      %v4588 = vsel %vm4587, %v4586, 0
      %v4589 = vshrl.u32 %v4588, 5
      %v4590 = vand.u32 %v4588, 31
      %v4591 = vsub.s32 32, %v4590
      %v4592 = vshrl.u32 683565275, %v4591
      %v4593 = vshll.u32 683565275, %v4590
      %v4594 = vshrl.u32 2475754826, %v4591
      %v4595 = vor.u32 %v4593, %v4594
      %v4596 = vshll.u32 2475754826, %v4590
      %v4597 = vshrl.u32 2131351028, %v4591
      %v4598 = vor.u32 %v4596, %v4597
      %v4599 = vshll.u32 2131351028, %v4590
      %v4600 = vshrl.u32 2102212464, %v4591
      %v4601 = vor.u32 %v4599, %v4600
      %v4602 = vshll.u32 2102212464, %v4590
      %v4603 = vshrl.u32 920167782, %v4591
      %v4604 = vor.u32 %v4602, %v4603
      %v4605 = vshll.u32 920167782, %v4590
      %v4606 = vshrl.u32 1326507024, %v4591
      %v4607 = vor.u32 %v4605, %v4606
      %vm4608 = vcmp.lt.s32.totalorder %v4589, 1
      %vm4609 = vcmp.lt.s32.totalorder %v4589, 2
      %vm4610 = vcmp.lt.s32.totalorder %v4589, 3
      %vm4611 = vcmp.lt.s32.totalorder %v4589, 4
      %v4612 = vsel %vm4608, %v4592, %v4595
      %v4613 = vsel %vm4611, %v4601, 2102212464
      %v4614 = vsel %vm4610, %v4598, %v4613
      %v4615 = vsel %vm4609, %v4612, %v4614
      %v4616 = vsel %vm4608, %v4595, %v4598
      %v4617 = vsel %vm4611, %v4604, 920167782
      %v4618 = vsel %vm4610, %v4601, %v4617
      %v4619 = vsel %vm4609, %v4616, %v4618
      %v4620 = vsel %vm4608, %v4598, %v4601
      %v4621 = vsel %vm4611, %v4607, 1326507024
      %v4622 = vsel %vm4610, %v4604, %v4621
      %v4623 = vsel %vm4609, %v4620, %v4622
      %v4624 = vshll.u32 %v4584, 8
      %v4625 = vand.u32 %v4624, 65535
      %v4626 = vshrl.u32 %v4624, 16
      %v4627 = vand.u32 %v4623, 65535
      %v4628 = vshrl.u32 %v4623, 16
      %v4629 = vmul.u32 %v4625, %v4627
      %v4630 = vmul.u32 %v4625, %v4628
      %v4631 = vmul.u32 %v4626, %v4627
      %v4632 = vmul.u32 %v4626, %v4628
      %v4633 = vshll.u32 %v4630, 16
      %v4634 = vshrl.u32 %v4630, 16
      %v4635 = vshll.u32 %v4631, 16
      %v4636 = vshrl.u32 %v4631, 16
      %vm4637 = vc.u32 %v4629, %v4633
      %v4638 = vsel %vm4637, 1, 0
      %v4639 = vadd.s32 %v4629, %v4633
      %v4640 = vadd.s32 %v4632, %v4638
      %vm4641 = vc.u32 %v4639, %v4635
      %v4642 = vsel %vm4641, 1, 0
      %v4643 = vadd.s32 %v4639, %v4635
      %v4644 = vadd.s32 %v4640, %v4642
      %v4645 = vadd.s32 %v4644, %v4634
      %v4646 = vadd.s32 %v4645, %v4636
      %v4647 = vand.u32 %v4624, 65535
      %v4648 = vshrl.u32 %v4624, 16
      %v4649 = vand.u32 %v4619, 65535
      %v4650 = vshrl.u32 %v4619, 16
      %v4651 = vmul.u32 %v4647, %v4649
      %v4652 = vmul.u32 %v4647, %v4650
      %v4653 = vmul.u32 %v4648, %v4649
      %v4654 = vmul.u32 %v4648, %v4650
      %v4655 = vshll.u32 %v4652, 16
      %v4656 = vshrl.u32 %v4652, 16
      %v4657 = vshll.u32 %v4653, 16
      %v4658 = vshrl.u32 %v4653, 16
      %vm4659 = vc.u32 %v4651, %v4655
      %v4660 = vsel %vm4659, 1, 0
      %v4661 = vadd.s32 %v4651, %v4655
      %v4662 = vadd.s32 %v4654, %v4660
      %vm4663 = vc.u32 %v4661, %v4657
      %v4664 = vsel %vm4663, 1, 0
      %v4665 = vadd.s32 %v4661, %v4657
      %v4666 = vadd.s32 %v4662, %v4664
      %v4667 = vadd.s32 %v4666, %v4656
      %v4668 = vadd.s32 %v4667, %v4658
      %v4669 = vmul.u32 %v4624, %v4615
      %v4670 = vadd.s32 %v4646, %v4665
      %vm4671 = vc.u32 %v4646, %v4665
      %v4672 = vadd.s32 %v4668, 1
      %v4673 = vsel %vm4671, %v4672, %v4668
      %v4674 = vadd.s32 %v4669, %v4673
      %v4675 = vadd.s32 %v4674, 536870912
      %v4676 = vshrl.u32 %v4675, 30
      %v4677 = vshll.u32 %v4676, 30
      %v4678 = vsub.s32 %v4674, %v4677
      %vm4679 = vcmp.lt.s32.totalorder %v4678, 0
      %v4680 = vsub.s32 0, %v4678
      %v4681 = vsel %vm4679, %v4680, %v4678
      %v4682 = vclz %v4681
      %v4683 = vsub.s32 %v4682, 2
      %vm4684 = vcmp.gt.s32.totalorder 0, %v4683
      %v4685 = vsel %vm4684, 0, %v4683
      %v4686 = vsub.s32 32, %v4685
      %v4687 = vshll.u32 %v4678, %v4685
      %v4688 = vshrl.u32 %v4670, %v4686
      %v4689 = vor.u32 %v4687, %v4688
      %v4690 = vsub.s32 4294967266, %v4685
      %v4691 = vadd.s32 %v4690, 127
      %v4692 = vshll.u32 %v4691, 23
      %v4693 = vor.u32 4788187, %v4692
      %v4694 = vand.u32 2147483647, %v4693
      %v4696 = vcvt.s32.f32 %v4689
      %v4697 = vmul.f32 %v4696, %v4694
      %v4698 = vxor.u32 %v4697, 2147483648
      %v4699 = vsel %vm4578, %v4698, %v4697
      %v4700 = vsub.s32 4, %v4676
      %v4701 = vsel %vm4578, %v4700, %v4676
      %v4702 = vsel %vm4577, %v381, %v4699
      %v4703 = vsel %vm4577, 0, %v4701
      %v4704 = vmul.f32 %v4702, %v4702
      %v4705 = vmul.f32 %v4704, -0.001358992
      %v4706 = vadd.f32 %v4705, 0.041655596
      %v4707 = vmul.f32 %v4704, %v4706
      %v4708 = vadd.f32 %v4707, -0.4999988
      %v4709 = vmul.f32 %v4704, %v4708
      %v4710 = vadd.f32 1.0, %v4709
      %v4711 = vmul.f32 %v4702, %v4702
      %v4712 = vmul.f32 %v4711, -0.00019511016
      %v4713 = vadd.f32 %v4712, 0.008332121
      %v4714 = vmul.f32 %v4711, %v4713
      %v4715 = vadd.f32 %v4714, -0.16666654
      %v4716 = vmul.f32 %v4711, %v4715
      %v4717 = vadd.f32 %v4716, 1.0
      %v4718 = vmul.f32 %v4717, %v4702
      %vm4719 = vweird.f32 %v381
      %v4720 = vand.u32 %v4703, 3
      %vm4721 = vcmp.lt.s32.totalorder %v4720, 2
      %vm4722 = vcmp.eq.s32.totalorder %v4720, 0
      %v4723 = vxor.u32 %v4718, 2147483648
      %v4724 = vsel %vm4722, %v4710, %v4723
      %vm4725 = vcmp.eq.s32.totalorder %v4720, 2
      %v4726 = vxor.u32 %v4710, 2147483648
      %v4727 = vsel %vm4725, %v4726, %v4718
      %v4728 = vsel %vm4721, %v4724, %v4727
      %v4729 = vsel %vm4719, nan, %v4728
      %v4730 = vand.u32 2147483647, %v382
      %vm4731 = vcmp.le.f32.partialorder %v4730, 0.7853982
      %vm4732 = vcmp.lt.s32.totalorder %v382, 0
      %v4733 = vand.u32 %v382, 2139095040
      %v4734 = vshrl.u32 %v4733, 23
      %v4735 = vsub.s32 %v4734, 127
      %v4736 = vand.u32 2147483647, %v382
      %v4737 = vand.u32 %v4736, 8388607
      %v4738 = vor.u32 %v4737, 8388608
      %v4739 = vsub.s32 0, %v4738
      %v4740 = vadd.s32 %v4735, 1
      %vm4741 = vcmp.gt.s32.totalorder %v4740, 0
      %v4742 = vsel %vm4741, %v4740, 0
      %v4743 = vshrl.u32 %v4742, 5
      %v4744 = vand.u32 %v4742, 31
      %v4745 = vsub.s32 32, %v4744
      %v4746 = vshrl.u32 683565275, %v4745
      %v4747 = vshll.u32 683565275, %v4744
      %v4748 = vshrl.u32 2475754826, %v4745
      %v4749 = vor.u32 %v4747, %v4748
      %v4750 = vshll.u32 2475754826, %v4744
      %v4751 = vshrl.u32 2131351028, %v4745
      %v4752 = vor.u32 %v4750, %v4751
      %v4753 = vshll.u32 2131351028, %v4744
      %v4754 = vshrl.u32 2102212464, %v4745
      %v4755 = vor.u32 %v4753, %v4754
      %v4756 = vshll.u32 2102212464, %v4744
      %v4757 = vshrl.u32 920167782, %v4745
      %v4758 = vor.u32 %v4756, %v4757
      %v4759 = vshll.u32 920167782, %v4744
      %v4760 = vshrl.u32 1326507024, %v4745
      %v4761 = vor.u32 %v4759, %v4760
      %vm4762 = vcmp.lt.s32.totalorder %v4743, 1
      %vm4763 = vcmp.lt.s32.totalorder %v4743, 2
      %vm4764 = vcmp.lt.s32.totalorder %v4743, 3
      %vm4765 = vcmp.lt.s32.totalorder %v4743, 4
      %v4766 = vsel %vm4762, %v4746, %v4749
      %v4767 = vsel %vm4765, %v4755, 2102212464
      %v4768 = vsel %vm4764, %v4752, %v4767
      %v4769 = vsel %vm4763, %v4766, %v4768
      %v4770 = vsel %vm4762, %v4749, %v4752
      %v4771 = vsel %vm4765, %v4758, 920167782
      %v4772 = vsel %vm4764, %v4755, %v4771
      %v4773 = vsel %vm4763, %v4770, %v4772
      %v4774 = vsel %vm4762, %v4752, %v4755
      %v4775 = vsel %vm4765, %v4761, 1326507024
      %v4776 = vsel %vm4764, %v4758, %v4775
      %v4777 = vsel %vm4763, %v4774, %v4776
      %v4778 = vshll.u32 %v4738, 8
      %v4779 = vand.u32 %v4778, 65535
      %v4780 = vshrl.u32 %v4778, 16
      %v4781 = vand.u32 %v4777, 65535
      %v4782 = vshrl.u32 %v4777, 16
      %v4783 = vmul.u32 %v4779, %v4781
      %v4784 = vmul.u32 %v4779, %v4782
      %v4785 = vmul.u32 %v4780, %v4781
      %v4786 = vmul.u32 %v4780, %v4782
      %v4787 = vshll.u32 %v4784, 16
      %v4788 = vshrl.u32 %v4784, 16
      %v4789 = vshll.u32 %v4785, 16
      %v4790 = vshrl.u32 %v4785, 16
      %vm4791 = vc.u32 %v4783, %v4787
      %v4792 = vsel %vm4791, 1, 0
      %v4793 = vadd.s32 %v4783, %v4787
      %v4794 = vadd.s32 %v4786, %v4792
      %vm4795 = vc.u32 %v4793, %v4789
      %v4796 = vsel %vm4795, 1, 0
      %v4797 = vadd.s32 %v4793, %v4789
      %v4798 = vadd.s32 %v4794, %v4796
      %v4799 = vadd.s32 %v4798, %v4788
      %v4800 = vadd.s32 %v4799, %v4790
      %v4801 = vand.u32 %v4778, 65535
      %v4802 = vshrl.u32 %v4778, 16
      %v4803 = vand.u32 %v4773, 65535
      %v4804 = vshrl.u32 %v4773, 16
      %v4805 = vmul.u32 %v4801, %v4803
      %v4806 = vmul.u32 %v4801, %v4804
      %v4807 = vmul.u32 %v4802, %v4803
      %v4808 = vmul.u32 %v4802, %v4804
      %v4809 = vshll.u32 %v4806, 16
      %v4810 = vshrl.u32 %v4806, 16
      %v4811 = vshll.u32 %v4807, 16
      %v4812 = vshrl.u32 %v4807, 16
      %vm4813 = vc.u32 %v4805, %v4809
      %v4814 = vsel %vm4813, 1, 0
      %v4815 = vadd.s32 %v4805, %v4809
      %v4816 = vadd.s32 %v4808, %v4814
      %vm4817 = vc.u32 %v4815, %v4811
      %v4818 = vsel %vm4817, 1, 0
      %v4819 = vadd.s32 %v4815, %v4811
      %v4820 = vadd.s32 %v4816, %v4818
      %v4821 = vadd.s32 %v4820, %v4810
      %v4822 = vadd.s32 %v4821, %v4812
      %v4823 = vmul.u32 %v4778, %v4769
      %v4824 = vadd.s32 %v4800, %v4819
      %vm4825 = vc.u32 %v4800, %v4819
      %v4826 = vadd.s32 %v4822, 1
      %v4827 = vsel %vm4825, %v4826, %v4822
      %v4828 = vadd.s32 %v4823, %v4827
      %v4829 = vadd.s32 %v4828, 536870912
      %v4830 = vshrl.u32 %v4829, 30
      %v4831 = vshll.u32 %v4830, 30
      %v4832 = vsub.s32 %v4828, %v4831
      %vm4833 = vcmp.lt.s32.totalorder %v4832, 0
      %v4834 = vsub.s32 0, %v4832
      %v4835 = vsel %vm4833, %v4834, %v4832
      %v4836 = vclz %v4835
      %v4837 = vsub.s32 %v4836, 2
      %vm4838 = vcmp.gt.s32.totalorder 0, %v4837
      %v4839 = vsel %vm4838, 0, %v4837
      %v4840 = vsub.s32 32, %v4839
      %v4841 = vshll.u32 %v4832, %v4839
      %v4842 = vshrl.u32 %v4824, %v4840
      %v4843 = vor.u32 %v4841, %v4842
      %v4844 = vsub.s32 4294967266, %v4839
      %v4845 = vadd.s32 %v4844, 127
      %v4846 = vshll.u32 %v4845, 23
      %v4847 = vor.u32 4788187, %v4846
      %v4848 = vand.u32 2147483647, %v4847
      %v4850 = vcvt.s32.f32 %v4843
      %v4851 = vmul.f32 %v4850, %v4848
      %v4852 = vxor.u32 %v4851, 2147483648
      %v4853 = vsel %vm4732, %v4852, %v4851
      %v4854 = vsub.s32 4, %v4830
      %v4855 = vsel %vm4732, %v4854, %v4830
      %v4856 = vsel %vm4731, %v382, %v4853
      %v4857 = vsel %vm4731, 0, %v4855
      %v4858 = vmul.f32 %v4856, %v4856
      %v4859 = vmul.f32 %v4858, -0.001358992
      %v4860 = vadd.f32 %v4859, 0.041655596
      %v4861 = vmul.f32 %v4858, %v4860
      %v4862 = vadd.f32 %v4861, -0.4999988
      %v4863 = vmul.f32 %v4858, %v4862
      %v4864 = vadd.f32 1.0, %v4863
      %v4865 = vmul.f32 %v4856, %v4856
      %v4866 = vmul.f32 %v4865, -0.00019511016
      %v4867 = vadd.f32 %v4866, 0.008332121
      %v4868 = vmul.f32 %v4865, %v4867
      %v4869 = vadd.f32 %v4868, -0.16666654
      %v4870 = vmul.f32 %v4865, %v4869
      %v4871 = vadd.f32 %v4870, 1.0
      %v4872 = vmul.f32 %v4871, %v4856
      %vm4873 = vweird.f32 %v382
      %v4874 = vand.u32 %v4857, 3
      %vm4875 = vcmp.lt.s32.totalorder %v4874, 2
      %vm4876 = vcmp.eq.s32.totalorder %v4874, 0
      %v4877 = vxor.u32 %v4872, 2147483648
      %v4878 = vsel %vm4876, %v4864, %v4877
      %vm4879 = vcmp.eq.s32.totalorder %v4874, 2
      %v4880 = vxor.u32 %v4864, 2147483648
      %v4881 = vsel %vm4879, %v4880, %v4872
      %v4882 = vsel %vm4875, %v4878, %v4881
      %v4883 = vsel %vm4873, nan, %v4882
      %v4884 = vand.u32 2147483647, %v383
      %vm4885 = vcmp.le.f32.partialorder %v4884, 0.7853982
      %vm4886 = vcmp.lt.s32.totalorder %v383, 0
      %v4887 = vand.u32 %v383, 2139095040
      %v4888 = vshrl.u32 %v4887, 23
      %v4889 = vsub.s32 %v4888, 127
      %v4890 = vand.u32 2147483647, %v383
      %v4891 = vand.u32 %v4890, 8388607
      %v4892 = vor.u32 %v4891, 8388608
      %v4893 = vsub.s32 0, %v4892
      %v4894 = vadd.s32 %v4889, 1
      %vm4895 = vcmp.gt.s32.totalorder %v4894, 0
      %v4896 = vsel %vm4895, %v4894, 0
      %v4897 = vshrl.u32 %v4896, 5
      %v4898 = vand.u32 %v4896, 31
      %v4899 = vsub.s32 32, %v4898
      %v4900 = vshrl.u32 683565275, %v4899
      %v4901 = vshll.u32 683565275, %v4898
      %v4902 = vshrl.u32 2475754826, %v4899
      %v4903 = vor.u32 %v4901, %v4902
      %v4904 = vshll.u32 2475754826, %v4898
      %v4905 = vshrl.u32 2131351028, %v4899
      %v4906 = vor.u32 %v4904, %v4905
      %v4907 = vshll.u32 2131351028, %v4898
      %v4908 = vshrl.u32 2102212464, %v4899
      %v4909 = vor.u32 %v4907, %v4908
      %v4910 = vshll.u32 2102212464, %v4898
      %v4911 = vshrl.u32 920167782, %v4899
      %v4912 = vor.u32 %v4910, %v4911
      %v4913 = vshll.u32 920167782, %v4898
      %v4914 = vshrl.u32 1326507024, %v4899
      %v4915 = vor.u32 %v4913, %v4914
      %vm4916 = vcmp.lt.s32.totalorder %v4897, 1
      %vm4917 = vcmp.lt.s32.totalorder %v4897, 2
      %vm4918 = vcmp.lt.s32.totalorder %v4897, 3
      %vm4919 = vcmp.lt.s32.totalorder %v4897, 4
      %v4920 = vsel %vm4916, %v4900, %v4903
      %v4921 = vsel %vm4919, %v4909, 2102212464
      %v4922 = vsel %vm4918, %v4906, %v4921
      %v4923 = vsel %vm4917, %v4920, %v4922
      %v4924 = vsel %vm4916, %v4903, %v4906
      %v4925 = vsel %vm4919, %v4912, 920167782
      %v4926 = vsel %vm4918, %v4909, %v4925
      %v4927 = vsel %vm4917, %v4924, %v4926
      %v4928 = vsel %vm4916, %v4906, %v4909
      %v4929 = vsel %vm4919, %v4915, 1326507024
      %v4930 = vsel %vm4918, %v4912, %v4929
      %v4931 = vsel %vm4917, %v4928, %v4930
      %v4932 = vshll.u32 %v4892, 8
      %v4933 = vand.u32 %v4932, 65535
      %v4934 = vshrl.u32 %v4932, 16
      %v4935 = vand.u32 %v4931, 65535
      %v4936 = vshrl.u32 %v4931, 16
      %v4937 = vmul.u32 %v4933, %v4935
      %v4938 = vmul.u32 %v4933, %v4936
      %v4939 = vmul.u32 %v4934, %v4935
      %v4940 = vmul.u32 %v4934, %v4936
      %v4941 = vshll.u32 %v4938, 16
      %v4942 = vshrl.u32 %v4938, 16
      %v4943 = vshll.u32 %v4939, 16
      %v4944 = vshrl.u32 %v4939, 16
      %vm4945 = vc.u32 %v4937, %v4941
      %v4946 = vsel %vm4945, 1, 0
      %v4947 = vadd.s32 %v4937, %v4941
      %v4948 = vadd.s32 %v4940, %v4946
      %vm4949 = vc.u32 %v4947, %v4943
      %v4950 = vsel %vm4949, 1, 0
      %v4951 = vadd.s32 %v4947, %v4943
      %v4952 = vadd.s32 %v4948, %v4950
      %v4953 = vadd.s32 %v4952, %v4942
      %v4954 = vadd.s32 %v4953, %v4944
      %v4955 = vand.u32 %v4932, 65535
      %v4956 = vshrl.u32 %v4932, 16
      %v4957 = vand.u32 %v4927, 65535
      %v4958 = vshrl.u32 %v4927, 16
      %v4959 = vmul.u32 %v4955, %v4957
      %v4960 = vmul.u32 %v4955, %v4958
      %v4961 = vmul.u32 %v4956, %v4957
      %v4962 = vmul.u32 %v4956, %v4958
      %v4963 = vshll.u32 %v4960, 16
      %v4964 = vshrl.u32 %v4960, 16
      %v4965 = vshll.u32 %v4961, 16
      %v4966 = vshrl.u32 %v4961, 16
      %vm4967 = vc.u32 %v4959, %v4963
      %v4968 = vsel %vm4967, 1, 0
      %v4969 = vadd.s32 %v4959, %v4963
      %v4970 = vadd.s32 %v4962, %v4968
      %vm4971 = vc.u32 %v4969, %v4965
      %v4972 = vsel %vm4971, 1, 0
      %v4973 = vadd.s32 %v4969, %v4965
      %v4974 = vadd.s32 %v4970, %v4972
      %v4975 = vadd.s32 %v4974, %v4964
      %v4976 = vadd.s32 %v4975, %v4966
      %v4977 = vmul.u32 %v4932, %v4923
      %v4978 = vadd.s32 %v4954, %v4973
      %vm4979 = vc.u32 %v4954, %v4973
      %v4980 = vadd.s32 %v4976, 1
      %v4981 = vsel %vm4979, %v4980, %v4976
      %v4982 = vadd.s32 %v4977, %v4981
      %v4983 = vadd.s32 %v4982, 536870912
      %v4984 = vshrl.u32 %v4983, 30
      %v4985 = vshll.u32 %v4984, 30
      %v4986 = vsub.s32 %v4982, %v4985
      %vm4987 = vcmp.lt.s32.totalorder %v4986, 0
      %v4988 = vsub.s32 0, %v4986
      %v4989 = vsel %vm4987, %v4988, %v4986
      %v4990 = vclz %v4989
      %v4991 = vsub.s32 %v4990, 2
      %vm4992 = vcmp.gt.s32.totalorder 0, %v4991
      %v4993 = vsel %vm4992, 0, %v4991
      %v4994 = vsub.s32 32, %v4993
      %v4995 = vshll.u32 %v4986, %v4993
      %v4996 = vshrl.u32 %v4978, %v4994
      %v4997 = vor.u32 %v4995, %v4996
      %v4998 = vsub.s32 4294967266, %v4993
      %v4999 = vadd.s32 %v4998, 127
      %v5000 = vshll.u32 %v4999, 23
      %v5001 = vor.u32 4788187, %v5000
      %v5002 = vand.u32 2147483647, %v5001
      %v5004 = vcvt.s32.f32 %v4997
      %v5005 = vmul.f32 %v5004, %v5002
      %v5006 = vxor.u32 %v5005, 2147483648
      %v5007 = vsel %vm4886, %v5006, %v5005
      %v5008 = vsub.s32 4, %v4984
      %v5009 = vsel %vm4886, %v5008, %v4984
      %v5010 = vsel %vm4885, %v383, %v5007
      %v5011 = vsel %vm4885, 0, %v5009
      %v5012 = vmul.f32 %v5010, %v5010
      %v5013 = vmul.f32 %v5012, -0.001358992
      %v5014 = vadd.f32 %v5013, 0.041655596
      %v5015 = vmul.f32 %v5012, %v5014
      %v5016 = vadd.f32 %v5015, -0.4999988
      %v5017 = vmul.f32 %v5012, %v5016
      %v5018 = vadd.f32 1.0, %v5017
      %v5019 = vmul.f32 %v5010, %v5010
      %v5020 = vmul.f32 %v5019, -0.00019511016
      %v5021 = vadd.f32 %v5020, 0.008332121
      %v5022 = vmul.f32 %v5019, %v5021
      %v5023 = vadd.f32 %v5022, -0.16666654
      %v5024 = vmul.f32 %v5019, %v5023
      %v5025 = vadd.f32 %v5024, 1.0
      %v5026 = vmul.f32 %v5025, %v5010
      %vm5027 = vweird.f32 %v383
      %v5028 = vand.u32 %v5011, 3
      %vm5029 = vcmp.lt.s32.totalorder %v5028, 2
      %vm5030 = vcmp.eq.s32.totalorder %v5028, 0
      %v5031 = vxor.u32 %v5026, 2147483648
      %v5032 = vsel %vm5030, %v5018, %v5031
      %vm5033 = vcmp.eq.s32.totalorder %v5028, 2
      %v5034 = vxor.u32 %v5018, 2147483648
      %v5035 = vsel %vm5033, %v5034, %v5026
      %v5036 = vsel %vm5029, %v5032, %v5035
      %v5037 = vsel %vm5027, nan, %v5036
      %v5038 = vand.u32 2147483647, %v384
      %vm5039 = vcmp.le.f32.partialorder %v5038, 0.7853982
      %vm5040 = vcmp.lt.s32.totalorder %v384, 0
      %v5041 = vand.u32 %v384, 2139095040
      %v5042 = vshrl.u32 %v5041, 23
      %v5043 = vsub.s32 %v5042, 127
      %v5044 = vand.u32 2147483647, %v384
      %v5045 = vand.u32 %v5044, 8388607
      %v5046 = vor.u32 %v5045, 8388608
      %v5047 = vsub.s32 0, %v5046
      %v5048 = vadd.s32 %v5043, 1
      %vm5049 = vcmp.gt.s32.totalorder %v5048, 0
      %v5050 = vsel %vm5049, %v5048, 0
      %v5051 = vshrl.u32 %v5050, 5
      %v5052 = vand.u32 %v5050, 31
      %v5053 = vsub.s32 32, %v5052
      %v5054 = vshrl.u32 683565275, %v5053
      %v5055 = vshll.u32 683565275, %v5052
      %v5056 = vshrl.u32 2475754826, %v5053
      %v5057 = vor.u32 %v5055, %v5056
      %v5058 = vshll.u32 2475754826, %v5052
      %v5059 = vshrl.u32 2131351028, %v5053
      %v5060 = vor.u32 %v5058, %v5059
      %v5061 = vshll.u32 2131351028, %v5052
      %v5062 = vshrl.u32 2102212464, %v5053
      %v5063 = vor.u32 %v5061, %v5062
      %v5064 = vshll.u32 2102212464, %v5052
      %v5065 = vshrl.u32 920167782, %v5053
      %v5066 = vor.u32 %v5064, %v5065
      %v5067 = vshll.u32 920167782, %v5052
      %v5068 = vshrl.u32 1326507024, %v5053
      %v5069 = vor.u32 %v5067, %v5068
      %vm5070 = vcmp.lt.s32.totalorder %v5051, 1
      %vm5071 = vcmp.lt.s32.totalorder %v5051, 2
      %vm5072 = vcmp.lt.s32.totalorder %v5051, 3
      %vm5073 = vcmp.lt.s32.totalorder %v5051, 4
      %v5074 = vsel %vm5070, %v5054, %v5057
      %v5075 = vsel %vm5073, %v5063, 2102212464
      %v5076 = vsel %vm5072, %v5060, %v5075
      %v5077 = vsel %vm5071, %v5074, %v5076
      %v5078 = vsel %vm5070, %v5057, %v5060
      %v5079 = vsel %vm5073, %v5066, 920167782
      %v5080 = vsel %vm5072, %v5063, %v5079
      %v5081 = vsel %vm5071, %v5078, %v5080
      %v5082 = vsel %vm5070, %v5060, %v5063
      %v5083 = vsel %vm5073, %v5069, 1326507024
      %v5084 = vsel %vm5072, %v5066, %v5083
      %v5085 = vsel %vm5071, %v5082, %v5084
      %v5086 = vshll.u32 %v5046, 8
      %v5087 = vand.u32 %v5086, 65535
      %v5088 = vshrl.u32 %v5086, 16
      %v5089 = vand.u32 %v5085, 65535
      %v5090 = vshrl.u32 %v5085, 16
      %v5091 = vmul.u32 %v5087, %v5089
      %v5092 = vmul.u32 %v5087, %v5090
      %v5093 = vmul.u32 %v5088, %v5089
      %v5094 = vmul.u32 %v5088, %v5090
      %v5095 = vshll.u32 %v5092, 16
      %v5096 = vshrl.u32 %v5092, 16
      %v5097 = vshll.u32 %v5093, 16
      %v5098 = vshrl.u32 %v5093, 16
      %vm5099 = vc.u32 %v5091, %v5095
      %v5100 = vsel %vm5099, 1, 0
      %v5101 = vadd.s32 %v5091, %v5095
      %v5102 = vadd.s32 %v5094, %v5100
      %vm5103 = vc.u32 %v5101, %v5097
      %v5104 = vsel %vm5103, 1, 0
      %v5105 = vadd.s32 %v5101, %v5097
      %v5106 = vadd.s32 %v5102, %v5104
      %v5107 = vadd.s32 %v5106, %v5096
      %v5108 = vadd.s32 %v5107, %v5098
      %v5109 = vand.u32 %v5086, 65535
      %v5110 = vshrl.u32 %v5086, 16
      %v5111 = vand.u32 %v5081, 65535
      %v5112 = vshrl.u32 %v5081, 16
      %v5113 = vmul.u32 %v5109, %v5111
      %v5114 = vmul.u32 %v5109, %v5112
      %v5115 = vmul.u32 %v5110, %v5111
      %v5116 = vmul.u32 %v5110, %v5112
      %v5117 = vshll.u32 %v5114, 16
      %v5118 = vshrl.u32 %v5114, 16
      %v5119 = vshll.u32 %v5115, 16
      %v5120 = vshrl.u32 %v5115, 16
      %vm5121 = vc.u32 %v5113, %v5117
      %v5122 = vsel %vm5121, 1, 0
      %v5123 = vadd.s32 %v5113, %v5117
      %v5124 = vadd.s32 %v5116, %v5122
      %vm5125 = vc.u32 %v5123, %v5119
      %v5126 = vsel %vm5125, 1, 0
      %v5127 = vadd.s32 %v5123, %v5119
      %v5128 = vadd.s32 %v5124, %v5126
      %v5129 = vadd.s32 %v5128, %v5118
      %v5130 = vadd.s32 %v5129, %v5120
      %v5131 = vmul.u32 %v5086, %v5077
      %v5132 = vadd.s32 %v5108, %v5127
      %vm5133 = vc.u32 %v5108, %v5127
      %v5134 = vadd.s32 %v5130, 1
      %v5135 = vsel %vm5133, %v5134, %v5130
      %v5136 = vadd.s32 %v5131, %v5135
      %v5137 = vadd.s32 %v5136, 536870912
      %v5138 = vshrl.u32 %v5137, 30
      %v5139 = vshll.u32 %v5138, 30
      %v5140 = vsub.s32 %v5136, %v5139
      %vm5141 = vcmp.lt.s32.totalorder %v5140, 0
      %v5142 = vsub.s32 0, %v5140
      %v5143 = vsel %vm5141, %v5142, %v5140
      %v5144 = vclz %v5143
      %v5145 = vsub.s32 %v5144, 2
      %vm5146 = vcmp.gt.s32.totalorder 0, %v5145
      %v5147 = vsel %vm5146, 0, %v5145
      %v5148 = vsub.s32 32, %v5147
      %v5149 = vshll.u32 %v5140, %v5147
      %v5150 = vshrl.u32 %v5132, %v5148
      %v5151 = vor.u32 %v5149, %v5150
      %v5152 = vsub.s32 4294967266, %v5147
      %v5153 = vadd.s32 %v5152, 127
      %v5154 = vshll.u32 %v5153, 23
      %v5155 = vor.u32 4788187, %v5154
      %v5156 = vand.u32 2147483647, %v5155
      %v5158 = vcvt.s32.f32 %v5151
      %v5159 = vmul.f32 %v5158, %v5156
      %v5160 = vxor.u32 %v5159, 2147483648
      %v5161 = vsel %vm5040, %v5160, %v5159
      %v5162 = vsub.s32 4, %v5138
      %v5163 = vsel %vm5040, %v5162, %v5138
      %v5164 = vsel %vm5039, %v384, %v5161
      %v5165 = vsel %vm5039, 0, %v5163
      %v5166 = vmul.f32 %v5164, %v5164
      %v5167 = vmul.f32 %v5166, -0.001358992
      %v5168 = vadd.f32 %v5167, 0.041655596
      %v5169 = vmul.f32 %v5166, %v5168
      %v5170 = vadd.f32 %v5169, -0.4999988
      %v5171 = vmul.f32 %v5166, %v5170
      %v5172 = vadd.f32 1.0, %v5171
      %v5173 = vmul.f32 %v5164, %v5164
      %v5174 = vmul.f32 %v5173, -0.00019511016
      %v5175 = vadd.f32 %v5174, 0.008332121
      %v5176 = vmul.f32 %v5173, %v5175
      %v5177 = vadd.f32 %v5176, -0.16666654
      %v5178 = vmul.f32 %v5173, %v5177
      %v5179 = vadd.f32 %v5178, 1.0
      %v5180 = vmul.f32 %v5179, %v5164
      %vm5181 = vweird.f32 %v384
      %v5182 = vand.u32 %v5165, 3
      %vm5183 = vcmp.lt.s32.totalorder %v5182, 2
      %vm5184 = vcmp.eq.s32.totalorder %v5182, 0
      %v5185 = vxor.u32 %v5180, 2147483648
      %v5186 = vsel %vm5184, %v5172, %v5185
      %vm5187 = vcmp.eq.s32.totalorder %v5182, 2
      %v5188 = vxor.u32 %v5172, 2147483648
      %v5189 = vsel %vm5187, %v5188, %v5180
      %v5190 = vsel %vm5183, %v5186, %v5189
      %v5191 = vsel %vm5181, nan, %v5190
      %v5192 = vand.u32 2147483647, %v385
      %vm5193 = vcmp.le.f32.partialorder %v5192, 0.7853982
      %vm5194 = vcmp.lt.s32.totalorder %v385, 0
      %v5195 = vand.u32 %v385, 2139095040
      %v5196 = vshrl.u32 %v5195, 23
      %v5197 = vsub.s32 %v5196, 127
      %v5198 = vand.u32 2147483647, %v385
      %v5199 = vand.u32 %v5198, 8388607
      %v5200 = vor.u32 %v5199, 8388608
      %v5201 = vsub.s32 0, %v5200
      %v5202 = vadd.s32 %v5197, 1
      %vm5203 = vcmp.gt.s32.totalorder %v5202, 0
      %v5204 = vsel %vm5203, %v5202, 0
      %v5205 = vshrl.u32 %v5204, 5
      %v5206 = vand.u32 %v5204, 31
      %v5207 = vsub.s32 32, %v5206
      %v5208 = vshrl.u32 683565275, %v5207
      %v5209 = vshll.u32 683565275, %v5206
      %v5210 = vshrl.u32 2475754826, %v5207
      %v5211 = vor.u32 %v5209, %v5210
      %v5212 = vshll.u32 2475754826, %v5206
      %v5213 = vshrl.u32 2131351028, %v5207
      %v5214 = vor.u32 %v5212, %v5213
      %v5215 = vshll.u32 2131351028, %v5206
      %v5216 = vshrl.u32 2102212464, %v5207
      %v5217 = vor.u32 %v5215, %v5216
      %v5218 = vshll.u32 2102212464, %v5206
      %v5219 = vshrl.u32 920167782, %v5207
      %v5220 = vor.u32 %v5218, %v5219
      %v5221 = vshll.u32 920167782, %v5206
      %v5222 = vshrl.u32 1326507024, %v5207
      %v5223 = vor.u32 %v5221, %v5222
      %vm5224 = vcmp.lt.s32.totalorder %v5205, 1
      %vm5225 = vcmp.lt.s32.totalorder %v5205, 2
      %vm5226 = vcmp.lt.s32.totalorder %v5205, 3
      %vm5227 = vcmp.lt.s32.totalorder %v5205, 4
      %v5228 = vsel %vm5224, %v5208, %v5211
      %v5229 = vsel %vm5227, %v5217, 2102212464
      %v5230 = vsel %vm5226, %v5214, %v5229
      %v5231 = vsel %vm5225, %v5228, %v5230
      %v5232 = vsel %vm5224, %v5211, %v5214
      %v5233 = vsel %vm5227, %v5220, 920167782
      %v5234 = vsel %vm5226, %v5217, %v5233
      %v5235 = vsel %vm5225, %v5232, %v5234
      %v5236 = vsel %vm5224, %v5214, %v5217
      %v5237 = vsel %vm5227, %v5223, 1326507024
      %v5238 = vsel %vm5226, %v5220, %v5237
      %v5239 = vsel %vm5225, %v5236, %v5238
      %v5240 = vshll.u32 %v5200, 8
      %v5241 = vand.u32 %v5240, 65535
      %v5242 = vshrl.u32 %v5240, 16
      %v5243 = vand.u32 %v5239, 65535
      %v5244 = vshrl.u32 %v5239, 16
      %v5245 = vmul.u32 %v5241, %v5243
      %v5246 = vmul.u32 %v5241, %v5244
      %v5247 = vmul.u32 %v5242, %v5243
      %v5248 = vmul.u32 %v5242, %v5244
      %v5249 = vshll.u32 %v5246, 16
      %v5250 = vshrl.u32 %v5246, 16
      %v5251 = vshll.u32 %v5247, 16
      %v5252 = vshrl.u32 %v5247, 16
      %vm5253 = vc.u32 %v5245, %v5249
      %v5254 = vsel %vm5253, 1, 0
      %v5255 = vadd.s32 %v5245, %v5249
      %v5256 = vadd.s32 %v5248, %v5254
      %vm5257 = vc.u32 %v5255, %v5251
      %v5258 = vsel %vm5257, 1, 0
      %v5259 = vadd.s32 %v5255, %v5251
      %v5260 = vadd.s32 %v5256, %v5258
      %v5261 = vadd.s32 %v5260, %v5250
      %v5262 = vadd.s32 %v5261, %v5252
      %v5263 = vand.u32 %v5240, 65535
      %v5264 = vshrl.u32 %v5240, 16
      %v5265 = vand.u32 %v5235, 65535
      %v5266 = vshrl.u32 %v5235, 16
      %v5267 = vmul.u32 %v5263, %v5265
      %v5268 = vmul.u32 %v5263, %v5266
      %v5269 = vmul.u32 %v5264, %v5265
      %v5270 = vmul.u32 %v5264, %v5266
      %v5271 = vshll.u32 %v5268, 16
      %v5272 = vshrl.u32 %v5268, 16
      %v5273 = vshll.u32 %v5269, 16
      %v5274 = vshrl.u32 %v5269, 16
      %vm5275 = vc.u32 %v5267, %v5271
      %v5276 = vsel %vm5275, 1, 0
      %v5277 = vadd.s32 %v5267, %v5271
      %v5278 = vadd.s32 %v5270, %v5276
      %vm5279 = vc.u32 %v5277, %v5273
      %v5280 = vsel %vm5279, 1, 0
      %v5281 = vadd.s32 %v5277, %v5273
      %v5282 = vadd.s32 %v5278, %v5280
      %v5283 = vadd.s32 %v5282, %v5272
      %v5284 = vadd.s32 %v5283, %v5274
      %v5285 = vmul.u32 %v5240, %v5231
      %v5286 = vadd.s32 %v5262, %v5281
      %vm5287 = vc.u32 %v5262, %v5281
      %v5288 = vadd.s32 %v5284, 1
      %v5289 = vsel %vm5287, %v5288, %v5284
      %v5290 = vadd.s32 %v5285, %v5289
      %v5291 = vadd.s32 %v5290, 536870912
      %v5292 = vshrl.u32 %v5291, 30
      %v5293 = vshll.u32 %v5292, 30
      %v5294 = vsub.s32 %v5290, %v5293
      %vm5295 = vcmp.lt.s32.totalorder %v5294, 0
      %v5296 = vsub.s32 0, %v5294
      %v5297 = vsel %vm5295, %v5296, %v5294
      %v5298 = vclz %v5297
      %v5299 = vsub.s32 %v5298, 2
      %vm5300 = vcmp.gt.s32.totalorder 0, %v5299
      %v5301 = vsel %vm5300, 0, %v5299
      %v5302 = vsub.s32 32, %v5301
      %v5303 = vshll.u32 %v5294, %v5301
      %v5304 = vshrl.u32 %v5286, %v5302
      %v5305 = vor.u32 %v5303, %v5304
      %v5306 = vsub.s32 4294967266, %v5301
      %v5307 = vadd.s32 %v5306, 127
      %v5308 = vshll.u32 %v5307, 23
      %v5309 = vor.u32 4788187, %v5308
      %v5310 = vand.u32 2147483647, %v5309
      %v5312 = vcvt.s32.f32 %v5305
      %v5313 = vmul.f32 %v5312, %v5310
      %v5314 = vxor.u32 %v5313, 2147483648
      %v5315 = vsel %vm5194, %v5314, %v5313
      %v5316 = vsub.s32 4, %v5292
      %v5317 = vsel %vm5194, %v5316, %v5292
      %v5318 = vsel %vm5193, %v385, %v5315
      %v5319 = vsel %vm5193, 0, %v5317
      %v5320 = vmul.f32 %v5318, %v5318
      %v5321 = vmul.f32 %v5320, -0.001358992
      %v5322 = vadd.f32 %v5321, 0.041655596
      %v5323 = vmul.f32 %v5320, %v5322
      %v5324 = vadd.f32 %v5323, -0.4999988
      %v5325 = vmul.f32 %v5320, %v5324
      %v5326 = vadd.f32 1.0, %v5325
      %v5327 = vmul.f32 %v5318, %v5318
      %v5328 = vmul.f32 %v5327, -0.00019511016
      %v5329 = vadd.f32 %v5328, 0.008332121
      %v5330 = vmul.f32 %v5327, %v5329
      %v5331 = vadd.f32 %v5330, -0.16666654
      %v5332 = vmul.f32 %v5327, %v5331
      %v5333 = vadd.f32 %v5332, 1.0
      %v5334 = vmul.f32 %v5333, %v5318
      %vm5335 = vweird.f32 %v385
      %v5336 = vand.u32 %v5319, 3
      %vm5337 = vcmp.lt.s32.totalorder %v5336, 2
      %vm5338 = vcmp.eq.s32.totalorder %v5336, 0
      %v5339 = vxor.u32 %v5334, 2147483648
      %v5340 = vsel %vm5338, %v5326, %v5339
      %vm5341 = vcmp.eq.s32.totalorder %v5336, 2
      %v5342 = vxor.u32 %v5326, 2147483648
      %v5343 = vsel %vm5341, %v5342, %v5334
      %v5344 = vsel %vm5337, %v5340, %v5343
      %v5345 = vsel %vm5335, nan, %v5344
      %v5346 = vmul.f32 %v322, %v571
      %v5347 = vmul.f32 %v323, %v725
      %v5348 = vmul.f32 %v324, %v879
      %v5349 = vmul.f32 %v325, %v1033
      %v5350 = vmul.f32 %v326, %v1187
      %v5351 = vmul.f32 %v327, %v1341
      %v5352 = vmul.f32 %v328, %v1495
      %v5353 = vmul.f32 %v329, %v1649
      %v5354 = vmul.f32 %v330, %v1803
      %v5355 = vmul.f32 %v331, %v1957
      %v5356 = vmul.f32 %v332, %v2111
      %v5357 = vmul.f32 %v333, %v2265
      %v5358 = vmul.f32 %v334, %v2419
      %v5359 = vmul.f32 %v335, %v2573
      %v5360 = vmul.f32 %v336, %v2727
      %v5361 = vmul.f32 %v337, %v2881
      %v5362 = vmul.f32 %v338, %v3035
      %v5363 = vmul.f32 %v339, %v3189
      %v5364 = vmul.f32 %v340, %v3343
      %v5365 = vmul.f32 %v341, %v3497
      %v5366 = vmul.f32 %v342, %v3651
      %v5367 = vmul.f32 %v343, %v3805
      %v5368 = vmul.f32 %v344, %v3959
      %v5369 = vmul.f32 %v345, %v4113
      %v5370 = vmul.f32 %v346, %v4267
      %v5371 = vmul.f32 %v347, %v4421
      %v5372 = vmul.f32 %v348, %v4575
      %v5373 = vmul.f32 %v349, %v4729
      %v5374 = vmul.f32 %v350, %v4883
      %v5375 = vmul.f32 %v351, %v5037
      %v5376 = vmul.f32 %v352, %v5191
      %v5377 = vmul.f32 %v353, %v5345
      %v5378 = vld [vmem:[#allocation2] sm:$0xff]
      %v5379 = vmul.f32 %v5346, %v386
      %v5380 = vmul.f32 %v5347, %v387
      %v5381 = vmul.f32 %v5348, %v388
      %v5382 = vmul.f32 %v5349, %v389
      %v5383 = vmul.f32 %v5350, %v390
      %v5384 = vmul.f32 %v5351, %v391
      %v5385 = vmul.f32 %v5352, %v392
      %v5386 = vmul.f32 %v5353, %v393
      %v5387 = vmul.f32 %v5354, %v394
      %v5388 = vmul.f32 %v5355, %v395
      %v5389 = vmul.f32 %v5356, %v396
      %v5390 = vmul.f32 %v5357, %v397
      %v5391 = vmul.f32 %v5358, %v398
      %v5392 = vmul.f32 %v5359, %v399
      %v5393 = vmul.f32 %v5360, %v400
      %v5394 = vmul.f32 %v5361, %v401
      %v5395 = vmul.f32 %v5362, %v402
      %v5396 = vmul.f32 %v5363, %v403
      %v5397 = vmul.f32 %v5364, %v404
      %v5398 = vmul.f32 %v5365, %v405
      %v5399 = vmul.f32 %v5366, %v406
      %v5400 = vmul.f32 %v5367, %v407
      %v5401 = vmul.f32 %v5368, %v408
      %v5402 = vmul.f32 %v5369, %v409
      %v5403 = vmul.f32 %v5370, %v410
      %v5404 = vmul.f32 %v5371, %v411
      %v5405 = vmul.f32 %v5372, %v412
      %v5406 = vmul.f32 %v5373, %v413
      %v5407 = vmul.f32 %v5374, %v414
      %v5408 = vmul.f32 %v5375, %v415
      %v5409 = vmul.f32 %v5376, %v416
      %v5410 = vmul.f32 %v5377, %v417
      %v5411 = vadd.f32 %v5379, %v5380
      %v5412 = vadd.f32 %v5411, %v5381
      %v5413 = vadd.f32 %v5412, %v5382
      %v5414 = vadd.f32 %v5413, %v5383
      %v5415 = vadd.f32 %v5414, %v5384
      %v5416 = vadd.f32 %v5415, %v5385
      %v5417 = vadd.f32 %v5416, %v5386
      %v5418 = vadd.f32 %v5417, %v5387
      %v5419 = vadd.f32 %v5418, %v5388
      %v5420 = vadd.f32 %v5419, %v5389
      %v5421 = vadd.f32 %v5420, %v5390
      %v5422 = vadd.f32 %v5421, %v5391
      %v5423 = vadd.f32 %v5422, %v5392
      %v5424 = vadd.f32 %v5423, %v5393
      %v5425 = vadd.f32 %v5424, %v5394
      %v5426 = vadd.f32 %v5425, %v5395
      %v5427 = vadd.f32 %v5426, %v5396
      %v5428 = vadd.f32 %v5427, %v5397
      %v5429 = vadd.f32 %v5428, %v5398
      %v5430 = vadd.f32 %v5429, %v5399
      %v5431 = vadd.f32 %v5430, %v5400
      %v5432 = vadd.f32 %v5431, %v5401
      %v5433 = vadd.f32 %v5432, %v5402
      %v5434 = vadd.f32 %v5433, %v5403
      %v5435 = vadd.f32 %v5434, %v5404
      %v5436 = vadd.f32 %v5435, %v5405
      %v5437 = vadd.f32 %v5436, %v5406
      %v5438 = vadd.f32 %v5437, %v5407
      %v5439 = vadd.f32 %v5438, %v5408
      %v5440 = vadd.f32 %v5439, %v5409
      %v5441 = vadd.f32 %v5440, %v5410
      %5442 = vadd.xlane.f32.xlu0 %v5441
      %v5443 = vpop.xlane.xlu0 %5442
      %v5444 = vadd.f32 %v5378, %v5443
      %vm5445 = vcmask 7168
      %5446 = vst.msk [vmem:[#allocation2] sm:$0xff] %vm5445, %v5444
      %v5447 = vld [vmem:[#allocation3] sm:$0xff]
      %v5448 = vmul.f32 %v5346, %v5346
      %v5449 = vmul.f32 %v5347, %v5347
      %v5450 = vmul.f32 %v5348, %v5348
      %v5451 = vmul.f32 %v5349, %v5349
      %v5452 = vmul.f32 %v5350, %v5350
      %v5453 = vmul.f32 %v5351, %v5351
      %v5454 = vmul.f32 %v5352, %v5352
      %v5455 = vmul.f32 %v5353, %v5353
      %v5456 = vmul.f32 %v5354, %v5354
      %v5457 = vmul.f32 %v5355, %v5355
      %v5458 = vmul.f32 %v5356, %v5356
      %v5459 = vmul.f32 %v5357, %v5357
      %v5460 = vmul.f32 %v5358, %v5358
      %v5461 = vmul.f32 %v5359, %v5359
      %v5462 = vmul.f32 %v5360, %v5360
      %v5463 = vmul.f32 %v5361, %v5361
      %v5464 = vmul.f32 %v5362, %v5362
      %v5465 = vmul.f32 %v5363, %v5363
      %v5466 = vmul.f32 %v5364, %v5364
      %v5467 = vmul.f32 %v5365, %v5365
      %v5468 = vmul.f32 %v5366, %v5366
      %v5469 = vmul.f32 %v5367, %v5367
      %v5470 = vmul.f32 %v5368, %v5368
      %v5471 = vmul.f32 %v5369, %v5369
      %v5472 = vmul.f32 %v5370, %v5370
      %v5473 = vmul.f32 %v5371, %v5371
      %v5474 = vmul.f32 %v5372, %v5372
      %v5475 = vmul.f32 %v5373, %v5373
      %v5476 = vmul.f32 %v5374, %v5374
      %v5477 = vmul.f32 %v5375, %v5375
      %v5478 = vmul.f32 %v5376, %v5376
      %v5479 = vmul.f32 %v5377, %v5377
      %v5480 = vadd.f32 %v5448, %v5449
      %v5481 = vadd.f32 %v5480, %v5450
      %v5482 = vadd.f32 %v5481, %v5451
      %v5483 = vadd.f32 %v5482, %v5452
      %v5484 = vadd.f32 %v5483, %v5453
      %v5485 = vadd.f32 %v5484, %v5454
      %v5486 = vadd.f32 %v5485, %v5455
      %v5487 = vadd.f32 %v5486, %v5456
      %v5488 = vadd.f32 %v5487, %v5457
      %v5489 = vadd.f32 %v5488, %v5458
      %v5490 = vadd.f32 %v5489, %v5459
      %v5491 = vadd.f32 %v5490, %v5460
      %v5492 = vadd.f32 %v5491, %v5461
      %v5493 = vadd.f32 %v5492, %v5462
      %v5494 = vadd.f32 %v5493, %v5463
      %v5495 = vadd.f32 %v5494, %v5464
      %v5496 = vadd.f32 %v5495, %v5465
      %v5497 = vadd.f32 %v5496, %v5466
      %v5498 = vadd.f32 %v5497, %v5467
      %v5499 = vadd.f32 %v5498, %v5468
      %v5500 = vadd.f32 %v5499, %v5469
      %v5501 = vadd.f32 %v5500, %v5470
      %v5502 = vadd.f32 %v5501, %v5471
      %v5503 = vadd.f32 %v5502, %v5472
      %v5504 = vadd.f32 %v5503, %v5473
      %v5505 = vadd.f32 %v5504, %v5474
      %v5506 = vadd.f32 %v5505, %v5475
      %v5507 = vadd.f32 %v5506, %v5476
      %v5508 = vadd.f32 %v5507, %v5477
      %v5509 = vadd.f32 %v5508, %v5478
      %v5510 = vadd.f32 %v5509, %v5479
      %5511 = vadd.xlane.f32.xlu0 %v5510
      %v5512 = vpop.xlane.xlu0 %5511
      %v5513 = vadd.f32 %v5447, %v5512
      %5514 = vst.msk [vmem:[#allocation3] sm:$0xff] %vm5445, %v5513
      %v5515 = vld [vmem:[#allocation4] sm:$0xff]
      %v5516 = vmul.f32 %v386, %v386
      %v5517 = vmul.f32 %v387, %v387
      %v5518 = vmul.f32 %v388, %v388
      %v5519 = vmul.f32 %v389, %v389
      %v5520 = vmul.f32 %v390, %v390
      %v5521 = vmul.f32 %v391, %v391
      %v5522 = vmul.f32 %v392, %v392
      %v5523 = vmul.f32 %v393, %v393
      %v5524 = vmul.f32 %v394, %v394
      %v5525 = vmul.f32 %v395, %v395
      %v5526 = vmul.f32 %v396, %v396
      %v5527 = vmul.f32 %v397, %v397
      %v5528 = vmul.f32 %v398, %v398
      %v5529 = vmul.f32 %v399, %v399
      %v5530 = vmul.f32 %v400, %v400
      %v5531 = vmul.f32 %v401, %v401
      %v5532 = vmul.f32 %v402, %v402
      %v5533 = vmul.f32 %v403, %v403
      %v5534 = vmul.f32 %v404, %v404
      %v5535 = vmul.f32 %v405, %v405
      %v5536 = vmul.f32 %v406, %v406
      %v5537 = vmul.f32 %v407, %v407
      %v5538 = vmul.f32 %v408, %v408
      %v5539 = vmul.f32 %v409, %v409
      %v5540 = vmul.f32 %v410, %v410
      %v5541 = vmul.f32 %v411, %v411
      %v5542 = vmul.f32 %v412, %v412
      %v5543 = vmul.f32 %v413, %v413
      %v5544 = vmul.f32 %v414, %v414
      %v5545 = vmul.f32 %v415, %v415
      %v5546 = vmul.f32 %v416, %v416
      %v5547 = vmul.f32 %v417, %v417
      %v5548 = vadd.f32 %v5516, %v5517
      %v5549 = vadd.f32 %v5548, %v5518
      %v5550 = vadd.f32 %v5549, %v5519
      %v5551 = vadd.f32 %v5550, %v5520
      %v5552 = vadd.f32 %v5551, %v5521
      %v5553 = vadd.f32 %v5552, %v5522
      %v5554 = vadd.f32 %v5553, %v5523
      %v5555 = vadd.f32 %v5554, %v5524
      %v5556 = vadd.f32 %v5555, %v5525
      %v5557 = vadd.f32 %v5556, %v5526
      %v5558 = vadd.f32 %v5557, %v5527
      %v5559 = vadd.f32 %v5558, %v5528
      %v5560 = vadd.f32 %v5559, %v5529
      %v5561 = vadd.f32 %v5560, %v5530
      %v5562 = vadd.f32 %v5561, %v5531
      %v5563 = vadd.f32 %v5562, %v5532
      %v5564 = vadd.f32 %v5563, %v5533
      %v5565 = vadd.f32 %v5564, %v5534
      %v5566 = vadd.f32 %v5565, %v5535
      %v5567 = vadd.f32 %v5566, %v5536
      %v5568 = vadd.f32 %v5567, %v5537
      %v5569 = vadd.f32 %v5568, %v5538
      %v5570 = vadd.f32 %v5569, %v5539
      %v5571 = vadd.f32 %v5570, %v5540
      %v5572 = vadd.f32 %v5571, %v5541
      %v5573 = vadd.f32 %v5572, %v5542
      %v5574 = vadd.f32 %v5573, %v5543
      %v5575 = vadd.f32 %v5574, %v5544
      %v5576 = vadd.f32 %v5575, %v5545
      %v5577 = vadd.f32 %v5576, %v5546
      %v5578 = vadd.f32 %v5577, %v5547
      %5579 = vadd.xlane.f32.xlu0 %v5578
      %v5580 = vpop.xlane.xlu0 %5579
      %v5581 = vadd.f32 %v5515, %v5580
      %5582 = vst.msk [vmem:[#allocation4] sm:$0xff] %vm5445, %v5581
      %v5583 = vld [vmem:[#allocation5] sm:$0xff]
      %v5584 = vand.u32 2147483647, %v5346
      %v5585 = vand.u32 2147483647, %v5347
      %v5586 = vand.u32 2147483647, %v5348
      %v5587 = vand.u32 2147483647, %v5349
      %v5588 = vand.u32 2147483647, %v5350
      %v5589 = vand.u32 2147483647, %v5351
      %v5590 = vand.u32 2147483647, %v5352
      %v5591 = vand.u32 2147483647, %v5353
      %v5592 = vand.u32 2147483647, %v5354
      %v5593 = vand.u32 2147483647, %v5355
      %v5594 = vand.u32 2147483647, %v5356
      %v5595 = vand.u32 2147483647, %v5357
      %v5596 = vand.u32 2147483647, %v5358
      %v5597 = vand.u32 2147483647, %v5359
      %v5598 = vand.u32 2147483647, %v5360
      %v5599 = vand.u32 2147483647, %v5361
      %v5600 = vand.u32 2147483647, %v5362
      %v5601 = vand.u32 2147483647, %v5363
      %v5602 = vand.u32 2147483647, %v5364
      %v5603 = vand.u32 2147483647, %v5365
      %v5604 = vand.u32 2147483647, %v5366
      %v5605 = vand.u32 2147483647, %v5367
      %v5606 = vand.u32 2147483647, %v5368
      %v5607 = vand.u32 2147483647, %v5369
      %v5608 = vand.u32 2147483647, %v5370
      %v5609 = vand.u32 2147483647, %v5371
      %v5610 = vand.u32 2147483647, %v5372
      %v5611 = vand.u32 2147483647, %v5373
      %v5612 = vand.u32 2147483647, %v5374
      %v5613 = vand.u32 2147483647, %v5375
      %v5614 = vand.u32 2147483647, %v5376
      %v5615 = vand.u32 2147483647, %v5377
      %v5616 = vadd.f32 %v5584, %v5585
      %v5617 = vadd.f32 %v5616, %v5586
      %v5618 = vadd.f32 %v5617, %v5587
      %v5619 = vadd.f32 %v5618, %v5588
      %v5620 = vadd.f32 %v5619, %v5589
      %v5621 = vadd.f32 %v5620, %v5590
      %v5622 = vadd.f32 %v5621, %v5591
      %v5623 = vadd.f32 %v5622, %v5592
      %v5624 = vadd.f32 %v5623, %v5593
      %v5625 = vadd.f32 %v5624, %v5594
      %v5626 = vadd.f32 %v5625, %v5595
      %v5627 = vadd.f32 %v5626, %v5596
      %v5628 = vadd.f32 %v5627, %v5597
      %v5629 = vadd.f32 %v5628, %v5598
      %v5630 = vadd.f32 %v5629, %v5599
      %v5631 = vadd.f32 %v5630, %v5600
      %v5632 = vadd.f32 %v5631, %v5601
      %v5633 = vadd.f32 %v5632, %v5602
      %v5634 = vadd.f32 %v5633, %v5603
      %v5635 = vadd.f32 %v5634, %v5604
      %v5636 = vadd.f32 %v5635, %v5605
      %v5637 = vadd.f32 %v5636, %v5606
      %v5638 = vadd.f32 %v5637, %v5607
      %v5639 = vadd.f32 %v5638, %v5608
      %v5640 = vadd.f32 %v5639, %v5609
      %v5641 = vadd.f32 %v5640, %v5610
      %v5642 = vadd.f32 %v5641, %v5611
      %v5643 = vadd.f32 %v5642, %v5612
      %v5644 = vadd.f32 %v5643, %v5613
      %v5645 = vadd.f32 %v5644, %v5614
      %v5646 = vadd.f32 %v5645, %v5615
      %5647 = vadd.xlane.f32.xlu0 %v5646
      %v5648 = vpop.xlane.xlu0 %5647
      %v5649 = vadd.f32 %v5583, %v5648
      %5650 = vst.msk [vmem:[#allocation5] sm:$0xff] %vm5445, %v5649
      %v5651 = vld [vmem:[#allocation6] sm:$0xff]
      %v5652 = vand.u32 2147483647, %v386
      %v5653 = vand.u32 2147483647, %v387
      %v5654 = vand.u32 2147483647, %v388
      %v5655 = vand.u32 2147483647, %v389
      %v5656 = vand.u32 2147483647, %v390
      %v5657 = vand.u32 2147483647, %v391
      %v5658 = vand.u32 2147483647, %v392
      %v5659 = vand.u32 2147483647, %v393
      %v5660 = vand.u32 2147483647, %v394
      %v5661 = vand.u32 2147483647, %v395
      %v5662 = vand.u32 2147483647, %v396
      %v5663 = vand.u32 2147483647, %v397
      %v5664 = vand.u32 2147483647, %v398
      %v5665 = vand.u32 2147483647, %v399
      %v5666 = vand.u32 2147483647, %v400
      %v5667 = vand.u32 2147483647, %v401
      %v5668 = vand.u32 2147483647, %v402
      %v5669 = vand.u32 2147483647, %v403
      %v5670 = vand.u32 2147483647, %v404
      %v5671 = vand.u32 2147483647, %v405
      %v5672 = vand.u32 2147483647, %v406
      %v5673 = vand.u32 2147483647, %v407
      %v5674 = vand.u32 2147483647, %v408
      %v5675 = vand.u32 2147483647, %v409
      %v5676 = vand.u32 2147483647, %v410
      %v5677 = vand.u32 2147483647, %v411
      %v5678 = vand.u32 2147483647, %v412
      %v5679 = vand.u32 2147483647, %v413
      %v5680 = vand.u32 2147483647, %v414
      %v5681 = vand.u32 2147483647, %v415
      %v5682 = vand.u32 2147483647, %v416
      %v5683 = vand.u32 2147483647, %v417
      %v5684 = vadd.f32 %v5652, %v5653
      %v5685 = vadd.f32 %v5684, %v5654
      %v5686 = vadd.f32 %v5685, %v5655
      %v5687 = vadd.f32 %v5686, %v5656
      %v5688 = vadd.f32 %v5687, %v5657
      %v5689 = vadd.f32 %v5688, %v5658
      %v5690 = vadd.f32 %v5689, %v5659
      %v5691 = vadd.f32 %v5690, %v5660
      %v5692 = vadd.f32 %v5691, %v5661
      %v5693 = vadd.f32 %v5692, %v5662
      %v5694 = vadd.f32 %v5693, %v5663
      %v5695 = vadd.f32 %v5694, %v5664
      %v5696 = vadd.f32 %v5695, %v5665
      %v5697 = vadd.f32 %v5696, %v5666
      %v5698 = vadd.f32 %v5697, %v5667
      %v5699 = vadd.f32 %v5698, %v5668
      %v5700 = vadd.f32 %v5699, %v5669
      %v5701 = vadd.f32 %v5700, %v5670
      %v5702 = vadd.f32 %v5701, %v5671
      %v5703 = vadd.f32 %v5702, %v5672
      %v5704 = vadd.f32 %v5703, %v5673
      %v5705 = vadd.f32 %v5704, %v5674
      %v5706 = vadd.f32 %v5705, %v5675
      %v5707 = vadd.f32 %v5706, %v5676
      %v5708 = vadd.f32 %v5707, %v5677
      %v5709 = vadd.f32 %v5708, %v5678
      %v5710 = vadd.f32 %v5709, %v5679
      %v5711 = vadd.f32 %v5710, %v5680
      %v5712 = vadd.f32 %v5711, %v5681
      %v5713 = vadd.f32 %v5712, %v5682
      %v5714 = vadd.f32 %v5713, %v5683
      %5715 = vadd.xlane.f32.xlu0 %v5714
      %v5716 = vpop.xlane.xlu0 %5715
      %v5717 = vadd.f32 %v5651, %v5716
      %5718 = vst.msk [vmem:[#allocation6] sm:$0xff] %vm5445, %v5717
      // Predicated region
      $region37: #{sxs_loss.1} parent=31 // pred_check
        %p5719 = pneg %p312
      $region38: #{sxs_loss.1} parent=31 // pred_check_branch
        %5721 = sbr.rel (%p5719) target = $region40
      $region39: #{sxs_loss.1} parent=31 // pred_region
        %v5722 = vld [vmem:[#allocation2] sm:$0xff]
        %v5723 = vld [vmem:[#allocation3] sm:$0xff]
        %v5724 = vld [vmem:[#allocation4] sm:$0xff]
        %v5725 = vld [vmem:[#allocation5] sm:$0xff]
        %v5726 = vld [vmem:[#allocation6] sm:$0xff]
        %5728 = vrot.lane.b32.xlu0 %v5723, 1
        %v5729 = vpop.permute.xlu0 %5728
        %5732 = vrot.lane.b32.xlu0 %v5724, 2
        %v5733 = vpop.permute.xlu0 %5732
        %5736 = vrot.lane.b32.xlu0 %v5725, 3
        %v5737 = vpop.permute.xlu0 %5736
        %5740 = vrot.lane.b32.xlu0 %v5726, 4
        %v5741 = vpop.permute.xlu0 %5740
        %v5743 = vsel %vm5445, %v5722, %v5729
        %vm5744 = vcmask 15360
        %v5745 = vsel %vm5744, %v5743, %v5733
        %vm5746 = vcmask 23552
        %v5747 = vsel %vm5746, %v5745, %v5737
        %vm5748 = vcmask 31744
        %v5749 = vsel %vm5748, %v5747, %v5741
        %vm5750 = vcmask 39936
        %v5751 = vsel %vm5750, %v5749, 0.0
        %vm5752 = vcmask 64512
        %5753 = vst.msk [vmem:[%s311] sm:$0xff] %vm5752, %v5751
      $region40: #{sxs_loss.1} parent=31 // pred_fallthru
        _
      %p5754 = scmp.lt.s32.totalorder %s19, 1
      %s5755 = scalar_select %p5754, %s19, 1
      %p5756 = scmp.lt.s32.totalorder %s20, 0
      %s5757 = scalar_select %p5756, %s20, 0
      %s5758 = sadd.s32 %s5757, %s5755
      %s5759 = smul.addr %s5758, 8
      %s5760 = scalar_lea.vmem %s3, %s5759
      // Predicated region
      $region41: #{sxs_loss.1} parent=31 // pred_check
        %p5761 = pneg %p145
      $region42: #{sxs_loss.1} parent=31 // pred_check_branch
        %5763 = sbr.rel (%p5761) target = $region44
      $region43: #{sxs_loss.1} parent=31 // pred_region
        _
      $region44: #{sxs_loss.1} parent=31 // pred_fallthru
        _
    $region32: #{sxs_loss.1} parent=5 // pred_fallthru
      _
    %p5764 = scmp.le.s32.totalorder 2, %s9
    // Predicated region
    $region45: #{sxs_loss.1} parent=5 // pred_check
      %p5765 = pneg %p5764
    $region46: #{sxs_loss.1} parent=5 // pred_check_branch
      %5767 = sbr.rel (%p5765) target = $region48
    $region47: #{sxs_loss.1} parent=5 // pred_region
      %s5768 = ssub.s32 %s9, 2
      // Predicated region
      $region49: #{sxs_loss.1} parent=47 // pred_check
        %p5769 = pneg %p151
      $region50: #{sxs_loss.1} parent=47 // pred_check_branch
        %5771 = sbr.rel (%p5769) target = $region52
      $region51: #{sxs_loss.1} parent=47 // pred_region
        %p5772 = scmp.lt.s32.totalorder %s22, 1
        %s5773 = scalar_select %p5772, %s22, 1
        %p5774 = scmp.lt.s32.totalorder %s23, 0
        %s5775 = scalar_select %p5774, %s23, 0
        %s5776 = sadd.s32 %s5775, %s5773
        %s5777 = smul.addr %s5776, 8
        %s5778 = scalar_lea.vmem %s3, %s5777
      $region52: #{sxs_loss.1} parent=47 // pred_fallthru
        _
    $region48: #{sxs_loss.1} parent=5 // pred_fallthru
      _
  $region6: #{sxs_loss.1} parent=0 // loop_footer
    %s13 = sadd.s32 1, %s9
  $region7: #{sxs_loss.1} parent=0 // loop_footer_branch
    %8 = sbr.rel target = $region3
  $region8: #{sxs_loss.1} parent=0 // loop_exit
    _

</llo_original>
